<compile_context>
chip_gen: v6e
topology: v6e:2x2x1
jax: 0.10.0
libtpu: 0.0.40
codegen_flags: <defaults>
</compile_context>

<pallas_src>
import math
from functools import partial, lru_cache

import numpy as np
import jax
import jax.numpy as jnp
from jax.experimental import pallas as pl
from jax.experimental.pallas import tpu as pltpu

NTYPES = ['word', 'topic', 'doc']
ETYPES = ['wd', 'td', 'tt', 'ww', 'tw', 'dw']
# canonical edge types that actually carry messages per time step in the reference
# forward() ('dw' exists as parameters but never delivers messages).
CANONICAL = [('word', 'wd', 'doc'),
             ('topic', 'td', 'doc'),
             ('topic', 'tt', 'topic'),
             ('word', 'ww', 'word'),
             ('topic', 'tw', 'word')]
# incoming edge types per destination node type (drives the fused per-dst kernels)
DST_ETYPES = (
    ('doc',   (('word', 'wd'), ('topic', 'td'))),
    ('topic', (('topic', 'tt'),)),
    ('word',  (('word', 'ww'), ('topic', 'tw'))),
)

_VMEM = pl.BlockSpec(memory_space=pltpu.MemorySpace.VMEM)
_SMEM = pl.BlockSpec(memory_space=pltpu.MemorySpace.SMEM)

# MXU operands are cast to bf16 (f32 accumulation); softmax / LayerNorm stay f32
# so v5e (no bf16 VPU/EUP) is not penalized.
MXU_DTYPE = jnp.bfloat16


def _dot_t(a, b):
    """a @ b.T with f32 accumulation (contract last dim of both operands)."""
    return jax.lax.dot_general(a, b, dimension_numbers=(((1,), (1,)), ((), ())),
                               preferred_element_type=jnp.float32)


# ----------------------------- Pallas kernels -----------------------------

def _linear_kernel(x_ref, w_ref, b_ref, o_ref):
    # fused projection + bias; weight may be bf16, accumulate f32.
    o_ref[...] = (jnp.dot(x_ref[...].astype(w_ref.dtype), w_ref[...],
                          preferred_element_type=jnp.float32) + b_ref[...])


def linear_pallas(x, w, b):
    # x: (N, F_in) f32, w: (F_in, F_out) bf16/f32, b: (1, F_out) f32 -> (N, F_out) f32
    n, f_out = x.shape[0], w.shape[1]
    return pl.pallas_call(
        _linear_kernel,
        out_shape=jax.ShapeDtypeStruct((n, f_out), jnp.float32),
        in_specs=[_VMEM, _VMEM, _VMEM],
        out_specs=_VMEM,
    )(x, w, b)


@lru_cache(maxsize=None)
def make_dst_attn_kernel(n_et, time_mask_flags, n_heads, d_k, n_hid):
    """Fused per-destination kernel: attention over every incoming edge type,
    cross-etype mean, ReLU and LayerNorm; lane-dense (Nd, n_hid) output."""
    inv_sqrt_dk = 1.0 / math.sqrt(d_k)
    inv_net = 1.0 / float(n_et)

    def kernel(*refs):
        # refs: t(SMEM), kqv_dst, [kqv_src, weight, time, rel_att, rel_msg]*n_et,
        #       ln_gamma, ln_beta, out
        t_ref = refs[0]
        kqv_d = refs[1][...]                      # (Nd, 3*n_hid) f32
        g_ref = refs[2 + 5 * n_et]
        b_ref = refs[3 + 5 * n_et]
        o_ref = refs[4 + 5 * n_et]
        curr_t = t_ref[0]

        acc = None
        for e in range(n_et):
            base = 2 + 5 * e
            kqv_s = refs[base][...]               # (Ns, 3*n_hid) f32
            w = refs[base + 1][...]               # (Nd, Ns) f32 edge weights
            if time_mask_flags[e]:
                # per-step edge selection built on the VPU from the int32 time matrix
                mask = (refs[base + 2][...] == curr_t).astype(jnp.float32)
            else:
                mask = None                       # 'tt': all edges active every step
            ra = refs[base + 3][...]              # (H, dk)      relation_att
            rm = refs[base + 4][...]              # (H*dk, dk)   relation_msg

            heads = []
            for h in range(n_heads):              # small static head count -> unrolled
                lo, hi = h * d_k, (h + 1) * d_k
                qh = kqv_d[:, n_hid + lo:n_hid + hi].astype(MXU_DTYPE)       # (Nd, dk)
                kh = kqv_s[:, lo:hi].astype(MXU_DTYPE)                       # (Ns, dk)
                vh = kqv_s[:, 2 * n_hid + lo:2 * n_hid + hi].astype(MXU_DTYPE)
                rah = ra[h:h + 1, :].astype(MXU_DTYPE)                       # (1, dk)
                rmh = rm[lo:hi, :].astype(MXU_DTYPE)                         # (dk, dk)

                # scores: (q . k) + weight * (relation_att . k), scaled
                rk = _dot_t(rah, kh)                                         # (1, Ns)
                s = (_dot_t(qh, kh) + w * rk) * inv_sqrt_dk                  # (Nd, Ns)
                smax = jnp.max(s, axis=-1, keepdims=True)
                p = jnp.exp(s - smax)
                if mask is not None:
                    p = p * mask                  # single (post-exp) masking
                denom = jnp.sum(p, axis=-1, keepdims=True)
                # rows with no active incoming edge -> att == 0 (denom clamp)
                att = p * pl.reciprocal(jnp.maximum(denom, 1e-30), approx=True)

                # (att @ v) @ rel_msg  (reordered: cheaper when Nd <= Ns)
                av = jnp.dot(att.astype(MXU_DTYPE), vh,
                             preferred_element_type=jnp.float32)             # (Nd, dk)
                heads.append(jnp.dot(av.astype(MXU_DTYPE), rmh,
                                     preferred_element_type=jnp.float32))    # (Nd, dk)

            msg = jnp.concatenate(heads, axis=-1)  # (Nd, n_hid), heads on lanes
            acc = msg if acc is None else acc + msg

        # cross_reducer='mean' + ReLU + LayerNorm epilogue, lane-dense store
        x = jnp.maximum(acc * inv_net, 0.0)
        mu = jnp.mean(x, axis=-1, keepdims=True)
        xc = x - mu
        var = jnp.mean(xc * xc, axis=-1, keepdims=True)
        o_ref[...] = xc * jax.lax.rsqrt(var + 1e-5) * g_ref[...] + b_ref[...]

    return kernel


# ----------------------------- parameter init -----------------------------

RELU_GAIN = math.sqrt(2.0)


def xavier_uniform(key, shape, gain=RELU_GAIN):
    fan_in = shape[1] * int(np.prod(shape[2:])) if len(shape) > 1 else shape[0]
    fan_out = shape[0] * int(np.prod(shape[2:]))
    a = gain * math.sqrt(6.0 / (fan_in + fan_out))
    return jax.random.uniform(key, shape, jnp.float32, -a, a)


def uniform_1d(key, shape):
    stdv = 1.0 / math.sqrt(shape[0])
    return jax.random.uniform(key, shape, jnp.float32, -stdv, stdv)


def init_linear(key, in_dim, out_dim):
    kw, kb = jax.random.split(key)
    w = xavier_uniform(kw, (out_dim, in_dim)).T            # stored (in, out)
    b = uniform_1d(kb, (out_dim,)).reshape(1, out_dim)
    return {'W': w, 'b': b}


def init_params(key, n_inp, n_hid, n_layers, n_heads, num_topic, vocab_size):
    d_k = n_hid // n_heads
    keys = iter(jax.random.split(key, 1024))
    p = {}
    p['word_embeds'] = xavier_uniform(next(keys), (vocab_size, n_inp))
    p['topic_embeds'] = xavier_uniform(next(keys), (num_topic, n_hid))
    p['doc_gen_embeds'] = xavier_uniform(next(keys), (1, n_hid))
    p['temp_skip'] = {'word': uniform_1d(next(keys), (1,)),
                      'topic': uniform_1d(next(keys), (1,))}
    aw = init_linear(next(keys), n_inp, n_hid)
    p['adapt_ws'] = {'W': aw['W'].astype(MXU_DTYPE), 'b': aw['b']}
    layers = []
    for _ in range(n_layers):
        lp = {'kqv': {}, 'norm': {}, 'rel_att': {}, 'rel_msg': {}}
        for nt in NTYPES:
            kl = init_linear(next(keys), n_hid, n_hid)
            ql = init_linear(next(keys), n_hid, n_hid)
            vl = init_linear(next(keys), n_hid, n_hid)
            # fused K|Q|V projection: one (n_hid, 3*n_hid) bf16 weight per node type
            lp['kqv'][nt] = {
                'W': jnp.concatenate([kl['W'], ql['W'], vl['W']],
                                     axis=1).astype(MXU_DTYPE),
                'b': jnp.concatenate([kl['b'], ql['b'], vl['b']], axis=1)}
            lp['norm'][nt] = {
                'g': uniform_1d(next(keys), (n_hid,)).reshape(1, n_hid),
                'b': uniform_1d(next(keys), (n_hid,)).reshape(1, n_hid)}
        for et in ETYPES:
            # relation_att (H, dk, 1) stored as (H, dk); relation_msg as (H*dk, dk)
            lp['rel_att'][et] = xavier_uniform(
                next(keys), (n_heads, d_k, 1)).reshape(n_heads, d_k)
            lp['rel_msg'][et] = xavier_uniform(
                next(keys), (n_heads, d_k, d_k)).reshape(n_heads * d_k, d_k)
        layers.append(lp)
    p['layers'] = layers
    ol = init_linear(next(keys), n_hid * 3, 1)
    p['out_layer'] = {'W': ol['W'], 'b': ol['b']}
    return p


# ----------------------------- graph construction -----------------------------

def build_graph(key, n_nodes, seq_len):
    graph = {}
    for (src, et, dst) in CANONICAL:
        ns, nd = n_nodes[src], n_nodes[dst]
        key, kw_, kt_ = jax.random.split(key, 3)
        graph[et] = {'weight': jax.random.uniform(kw_, (nd, ns), jnp.float32),
                     'time': jax.random.randint(kt_, (nd, ns), 0, seq_len)}
    # make sure every time step has at least one 'ww' edge (reference `continue`s
    # otherwise; we want all time steps exercised)
    graph['ww']['time'] = graph['ww']['time'].at[0, :seq_len].set(
        jnp.arange(seq_len, dtype=jnp.int32))
    return graph


# ----------------------------- message passing layer -----------------------------

def mp_layer(lp, feats, graph, t_arr, *, n_heads, d_k, n_hid):
    # 1) one fused K|Q|V projection per node type (3 pallas_calls per layer)
    kqv = {nt: linear_pallas(feats[nt], lp['kqv'][nt]['W'], lp['kqv'][nt]['b'])
           for nt in NTYPES}

    # 2) one fused attention + mean + ReLU + LayerNorm kernel per destination type
    ht = {}
    for dst, et_list in DST_ETYPES:
        flags = tuple(et != 'tt' for (_, et) in et_list)
        kern = make_dst_attn_kernel(len(et_list), flags, n_heads, d_k, n_hid)
        inputs = [t_arr, kqv[dst]]
        for (src, et) in et_list:
            g = graph[et]
            inputs += [kqv[src], g['weight'], g['time'],
                       lp['rel_att'][et], lp['rel_msg'][et]]
        inputs += [lp['norm'][dst]['g'], lp['norm'][dst]['b']]
        nd = feats[dst].shape[0]
        in_specs = [_SMEM] + [_VMEM] * (len(inputs) - 1)
        ht[dst] = pl.pallas_call(
            kern,
            out_shape=jax.ShapeDtypeStruct((nd, n_hid), jnp.float32),
            in_specs=in_specs,
            out_specs=_VMEM,
        )(*inputs)
        # TODO(synk): nn.Dropout treated as identity (deterministic eval mode).
    return ht


# ----------------------------- full model forward -----------------------------

def model_forward(params, graph, node_ids, y_data, *, n_heads, n_hid, n_layers,
                  active_times, n_doc):
    d_k = n_hid // n_heads
    word_emb = params['word_embeds'][node_ids['word']]
    topic_emb = params['topic_embeds'][node_ids['topic']]
    doc_emb = jnp.tile(params['doc_gen_embeds'], (n_doc, 1))
    word_emb = linear_pallas(word_emb, params['adapt_ws']['W'],
                             params['adapt_ws']['b'])

    h0 = {'word': word_emb, 'topic': topic_emb, 'doc': doc_emb}
    ht_prev = {'word': jnp.zeros_like(word_emb), 'topic': jnp.zeros_like(topic_emb)}
    ht_doc = doc_emb

    # TODO(synk): DGL edge_subgraph node relabeling is approximated by running over
    # the full node set with per-time-step edge masks; destination nodes with no
    # active incoming edges still pass through ReLU+LayerNorm instead of being
    # excluded, and cross_reducer='mean' divides by the static per-dst etype count.
    # (active_times reproduces the reference's host-side "no ww edges -> continue".)
    for curr_time in active_times:
        t_arr = jnp.full((1,), curr_time, dtype=jnp.int32)
        feats = h0
        for i in range(n_layers):
            feats = mp_layer(params['layers'][i], feats, graph, t_arr,
                             n_heads=n_heads, d_k=d_k, n_hid=n_hid)
        for nt in ('word', 'topic'):
            alpha = jax.nn.sigmoid(params['temp_skip'][nt])
            ht_prev[nt] = alpha * feats[nt] + (1.0 - alpha) * ht_prev[nt]
        ht_doc = feats['doc']

    # pool='max' over nodes of each type (single graph in the "batch")
    global_info = jnp.concatenate([
        jnp.max(ht_doc, axis=0, keepdims=True),
        jnp.max(ht_prev['topic'], axis=0, keepdims=True),
        jnp.max(ht_prev['word'], axis=0, keepdims=True)], axis=-1)   # (1, 3*n_hid)

    logits = linear_pallas(global_info, params['out_layer']['W'],
                           params['out_layer']['b'])                  # (1, 1)
    x = logits.reshape(-1)
    loss = jnp.mean(jnp.maximum(x, 0.0) - x * y_data
                    + jnp.log1p(jnp.exp(-jnp.abs(x))))
    y_pred = jax.nn.sigmoid(logits)
    return loss, y_pred


# ----------------------------- driver -----------------------------

if __name__ == "__main__":
    n_inp, n_hid, n_layers, n_heads = 16, 32, 2, 2
    seq_len, num_topic, vocab_size = 3, 10, 50
    n_nodes = {'word': 8, 'topic': 6, 'doc': 2}

    key = jax.random.PRNGKey(0)
    kp, kg, kw, kt, ky = jax.random.split(key, 5)

    params = init_params(kp, n_inp, n_hid, n_layers, n_heads, num_topic, vocab_size)
    graph = build_graph(kg, n_nodes, seq_len)
    node_ids = {
        'word': jax.random.randint(kw, (n_nodes['word'],), 0, vocab_size),
        'topic': jax.random.randint(kt, (n_nodes['topic'],), 0, num_topic),
    }
    y_data = jax.random.bernoulli(ky, 0.5, (1,)).astype(jnp.float32)

    # reference early-skip (time steps without any 'ww' edge), resolved on the host
    ww_times = np.asarray(graph['ww']['time'])
    active_times = tuple(int(t) for t in range(seq_len) if (ww_times == t).any())

    fwd = jax.jit(partial(model_forward,
                          n_heads=n_heads, n_hid=n_hid, n_layers=n_layers,
                          active_times=active_times, n_doc=n_nodes['doc']))
    loss, y_pred = fwd(params, graph, node_ids, y_data)
    loss, y_pred = jax.block_until_ready((loss, y_pred))
    assert np.isfinite(float(loss)) and y_pred.shape == (1, 1)
    print("KERNEL_OK")
</pallas_src>

<mosaic_0001>
module attributes {stable_mosaic.version = 11 : i64} {
  func.func @_linear_kernel(%arg0: memref<6x32xf32, #tpu.memory_space<vmem>>, %arg1: memref<32x96xbf16, #tpu.memory_space<vmem>>, %arg2: memref<1x96xf32, #tpu.memory_space<vmem>>, %arg3: memref<6x96xf32, #tpu.memory_space<vmem>>) attributes {dimension_semantics = [], scalar_prefetch = 0 : i64, scratch_operands = 0 : i64, tpu.core_type = #tpu.core_type<tc>} {
    %c0 = arith.constant 0 : index
    %c0_0 = arith.constant 0 : index
    %0 = vector.load %arg0[%c0, %c0_0] : memref<6x32xf32, #tpu.memory_space<vmem>>, vector<6x32xf32>
    %1 = arith.truncf %0 : vector<6x32xf32> to vector<6x32xbf16>
    %c0_1 = arith.constant 0 : index
    %c0_2 = arith.constant 0 : index
    %2 = vector.load %arg1[%c0_1, %c0_2] : memref<32x96xbf16, #tpu.memory_space<vmem>>, vector<32x96xbf16>
    %cst = arith.constant dense<0.000000e+00> : vector<6x96xf32>
    %3 = tpu.matmul %1, %2, %cst {dimension_numbers = #tpu.dot_dimension_numbers<[1], [0], [0], [1], [0, 0, 1, 1], [], []>} : vector<6x32xbf16>, vector<32x96xbf16>, vector<6x96xf32> -> vector<6x96xf32>
    %c0_3 = arith.constant 0 : index
    %c0_4 = arith.constant 0 : index
    %4 = vector.load %arg2[%c0_3, %c0_4] : memref<1x96xf32, #tpu.memory_space<vmem>>, vector<1x96xf32>
    %5 = vector.broadcast %4 : vector<1x96xf32> to vector<6x96xf32>
    %6 = arith.addf %3, %5 : vector<6x96xf32>
    %c0_5 = arith.constant 0 : index
    %c0_6 = arith.constant 0 : index
    %7 = vector.load %arg3[%c0_5, %c0_6] : memref<6x96xf32, #tpu.memory_space<vmem>>, vector<6x96xf32>
    tpu.vector_store %arg3[%c0_5, %c0_6], %6 {strides = array<i32>} : memref<6x96xf32, #tpu.memory_space<vmem>>, vector<6x96xf32>,
    return
  }
}

module attributes {stable_mosaic.version = 11 : i64} {
  func.func @_linear_kernel(%arg0: memref<8x16xf32, #tpu.memory_space<vmem>>, %arg1: memref<16x32xbf16, #tpu.memory_space<vmem>>, %arg2: memref<1x32xf32, #tpu.memory_space<vmem>>, %arg3: memref<8x32xf32, #tpu.memory_space<vmem>>) attributes {dimension_semantics = [], scalar_prefetch = 0 : i64, scratch_operands = 0 : i64, tpu.core_type = #tpu.core_type<tc>} {
    %c0 = arith.constant 0 : index
    %c0_0 = arith.constant 0 : index
    %0 = vector.load %arg0[%c0, %c0_0] : memref<8x16xf32, #tpu.memory_space<vmem>>, vector<8x16xf32>
    %1 = arith.truncf %0 : vector<8x16xf32> to vector<8x16xbf16>
    %c0_1 = arith.constant 0 : index
    %c0_2 = arith.constant 0 : index
    %2 = vector.load %arg1[%c0_1, %c0_2] : memref<16x32xbf16, #tpu.memory_space<vmem>>, vector<16x32xbf16>
    %cst = arith.constant dense<0.000000e+00> : vector<8x32xf32>
    %3 = tpu.matmul %1, %2, %cst {dimension_numbers = #tpu.dot_dimension_numbers<[1], [0], [0], [1], [0, 0, 1, 1], [], []>} : vector<8x16xbf16>, vector<16x32xbf16>, vector<8x32xf32> -> vector<8x32xf32>
    %c0_3 = arith.constant 0 : index
    %c0_4 = arith.constant 0 : index
    %4 = vector.load %arg2[%c0_3, %c0_4] : memref<1x32xf32, #tpu.memory_space<vmem>>, vector<1x32xf32>
    %5 = vector.broadcast %4 : vector<1x32xf32> to vector<8x32xf32>
    %6 = arith.addf %3, %5 : vector<8x32xf32>
    %c0_5 = arith.constant 0 : index
    %c0_6 = arith.constant 0 : index
    %7 = vector.load %arg3[%c0_5, %c0_6] : memref<8x32xf32, #tpu.memory_space<vmem>>, vector<8x32xf32>
    tpu.vector_store %arg3[%c0_5, %c0_6], %6 {strides = array<i32>} : memref<8x32xf32, #tpu.memory_space<vmem>>, vector<8x32xf32>,
    return
  }
}

module attributes {stable_mosaic.version = 11 : i64} {
  func.func @_linear_kernel(%arg0: memref<8x32xf32, #tpu.memory_space<vmem>>, %arg1: memref<32x96xbf16, #tpu.memory_space<vmem>>, %arg2: memref<1x96xf32, #tpu.memory_space<vmem>>, %arg3: memref<8x96xf32, #tpu.memory_space<vmem>>) attributes {dimension_semantics = [], scalar_prefetch = 0 : i64, scratch_operands = 0 : i64, tpu.core_type = #tpu.core_type<tc>} {
    %c0 = arith.constant 0 : index
    %c0_0 = arith.constant 0 : index
    %0 = vector.load %arg0[%c0, %c0_0] : memref<8x32xf32, #tpu.memory_space<vmem>>, vector<8x32xf32>
    %1 = arith.truncf %0 : vector<8x32xf32> to vector<8x32xbf16>
    %c0_1 = arith.constant 0 : index
    %c0_2 = arith.constant 0 : index
    %2 = vector.load %arg1[%c0_1, %c0_2] : memref<32x96xbf16, #tpu.memory_space<vmem>>, vector<32x96xbf16>
    %cst = arith.constant dense<0.000000e+00> : vector<8x96xf32>
    %3 = tpu.matmul %1, %2, %cst {dimension_numbers = #tpu.dot_dimension_numbers<[1], [0], [0], [1], [0, 0, 1, 1], [], []>} : vector<8x32xbf16>, vector<32x96xbf16>, vector<8x96xf32> -> vector<8x96xf32>
    %c0_3 = arith.constant 0 : index
    %c0_4 = arith.constant 0 : index
    %4 = vector.load %arg2[%c0_3, %c0_4] : memref<1x96xf32, #tpu.memory_space<vmem>>, vector<1x96xf32>
    %5 = vector.broadcast %4 : vector<1x96xf32> to vector<8x96xf32>
    %6 = arith.addf %3, %5 : vector<8x96xf32>
    %c0_5 = arith.constant 0 : index
    %c0_6 = arith.constant 0 : index
    %7 = vector.load %arg3[%c0_5, %c0_6] : memref<8x96xf32, #tpu.memory_space<vmem>>, vector<8x96xf32>
    tpu.vector_store %arg3[%c0_5, %c0_6], %6 {strides = array<i32>} : memref<8x96xf32, #tpu.memory_space<vmem>>, vector<8x96xf32>,
    return
  }
}

module attributes {stable_mosaic.version = 11 : i64} {
  func.func @kernel(%arg0: memref<1xi32, #tpu.memory_space<smem>>, %arg1: memref<8x96xf32, #tpu.memory_space<vmem>>, %arg2: memref<8x96xf32, #tpu.memory_space<vmem>>, %arg3: memref<8x8xf32, #tpu.memory_space<vmem>>, %arg4: memref<8x8xi32, #tpu.memory_space<vmem>>, %arg5: memref<2x16xf32, #tpu.memory_space<vmem>>, %arg6: memref<32x16xf32, #tpu.memory_space<vmem>>, %arg7: memref<6x96xf32, #tpu.memory_space<vmem>>, %arg8: memref<8x6xf32, #tpu.memory_space<vmem>>, %arg9: memref<8x6xi32, #tpu.memory_space<vmem>>, %arg10: memref<2x16xf32, #tpu.memory_space<vmem>>, %arg11: memref<32x16xf32, #tpu.memory_space<vmem>>, %arg12: memref<1x32xf32, #tpu.memory_space<vmem>>, %arg13: memref<1x32xf32, #tpu.memory_space<vmem>>, %arg14: memref<8x32xf32, #tpu.memory_space<vmem>>) attributes {dimension_semantics = [], scalar_prefetch = 0 : i64, scratch_operands = 0 : i64, tpu.core_type = #tpu.core_type<tc>} {
    %c0 = arith.constant 0 : index
    %c0_0 = arith.constant 0 : index
    %0 = vector.load %arg1[%c0, %c0_0] : memref<8x96xf32, #tpu.memory_space<vmem>>, vector<8x96xf32>
    %c0_1 = arith.constant 0 : index
    %1 = memref.load %arg0[%c0_1] : memref<1xi32, #tpu.memory_space<smem>>
    %c0_2 = arith.constant 0 : index
    %c0_3 = arith.constant 0 : index
    %2 = vector.load %arg2[%c0_2, %c0_3] : memref<8x96xf32, #tpu.memory_space<vmem>>, vector<8x96xf32>
    %c0_4 = arith.constant 0 : index
    %c0_5 = arith.constant 0 : index
    %3 = vector.load %arg3[%c0_4, %c0_5] : memref<8x8xf32, #tpu.memory_space<vmem>>, vector<8x8xf32>
    %c0_6 = arith.constant 0 : index
    %c0_7 = arith.constant 0 : index
    %4 = vector.load %arg4[%c0_6, %c0_7] : memref<8x8xi32, #tpu.memory_space<vmem>>, vector<8x8xi32>
    %5 = vector.broadcast %1 : i32 to vector<8x8xi32>
    %6 = arith.cmpi eq, %4, %5 : vector<8x8xi32>
    %7 = arith.extui %6 : vector<8x8xi1> to vector<8x8xi32>
    %8 = arith.sitofp %7 : vector<8x8xi32> to vector<8x8xf32>
    %c0_8 = arith.constant 0 : index
    %c0_9 = arith.constant 0 : index
    %9 = vector.load %arg5[%c0_8, %c0_9] : memref<2x16xf32, #tpu.memory_space<vmem>>, vector<2x16xf32>
    %c0_10 = arith.constant 0 : index
    %c0_11 = arith.constant 0 : index
    %10 = vector.load %arg6[%c0_10, %c0_11] : memref<32x16xf32, #tpu.memory_space<vmem>>, vector<32x16xf32>
    %11 = vector.extract_strided_slice %0 {offsets = [0, 32], sizes = [8, 16], strides = [1, 1]} : vector<8x96xf32> to vector<8x16xf32>
    %12 = arith.truncf %11 : vector<8x16xf32> to vector<8x16xbf16>
    %13 = vector.extract_strided_slice %2 {offsets = [0, 0], sizes = [8, 16], strides = [1, 1]} : vector<8x96xf32> to vector<8x16xf32>
    %14 = arith.truncf %13 : vector<8x16xf32> to vector<8x16xbf16>
    %15 = vector.extract_strided_slice %2 {offsets = [0, 64], sizes = [8, 16], strides = [1, 1]} : vector<8x96xf32> to vector<8x16xf32>
    %16 = arith.truncf %15 : vector<8x16xf32> to vector<8x16xbf16>
    %17 = vector.extract_strided_slice %9 {offsets = [0, 0], sizes = [1, 16], strides = [1, 1]} : vector<2x16xf32> to vector<1x16xf32>
    %18 = arith.truncf %17 : vector<1x16xf32> to vector<1x16xbf16>
    %19 = vector.extract_strided_slice %10 {offsets = [0, 0], sizes = [16, 16], strides = [1, 1]} : vector<32x16xf32> to vector<16x16xf32>
    %20 = arith.truncf %19 : vector<16x16xf32> to vector<16x16xbf16>
    %cst = arith.constant dense<0.000000e+00> : vector<1x8xf32>
    %21 = tpu.matmul %18, %14, %cst {dimension_numbers = #tpu.dot_dimension_numbers<[1], [1], [0], [0], [0, 0, 1, 0], [], []>} : vector<1x16xbf16>, vector<8x16xbf16>, vector<1x8xf32> -> vector<1x8xf32>
    %cst_12 = arith.constant dense<0.000000e+00> : vector<8x8xf32>
    %22 = tpu.matmul %12, %14, %cst_12 {dimension_numbers = #tpu.dot_dimension_numbers<[1], [1], [0], [0], [0, 0, 1, 0], [], []>} : vector<8x16xbf16>, vector<8x16xbf16>, vector<8x8xf32> -> vector<8x8xf32>
    %23 = vector.broadcast %21 : vector<1x8xf32> to vector<8x8xf32>
    %24 = arith.mulf %3, %23 : vector<8x8xf32>
    %25 = arith.addf %22, %24 : vector<8x8xf32>
    %cst_13 = arith.constant 2.500000e-01 : f32
    %26 = vector.broadcast %cst_13 : f32 to vector<8x8xf32>
    %27 = arith.mulf %25, %26 : vector<8x8xf32>
    %cst_14 = arith.constant dense<0xFF800000> : vector<8xf32>
    %28 = vector.multi_reduction <maximumf>, %27, %cst_14 [1] : vector<8x8xf32> to vector<8xf32>
    %29 = vector.shape_cast %28 : vector<8xf32> to vector<8x1xf32>
    %30 = vector.broadcast %29 : vector<8x1xf32> to vector<8x8xf32>
    %31 = arith.subf %27, %30 : vector<8x8xf32>
    %32 = math.exp %31 : vector<8x8xf32>
    %33 = arith.mulf %32, %8 : vector<8x8xf32>
    %cst_15 = arith.constant dense<0.000000e+00> : vector<8xf32>
    %34 = vector.multi_reduction <add>, %33, %cst_15 [1] : vector<8x8xf32> to vector<8xf32>
    %35 = vector.shape_cast %34 : vector<8xf32> to vector<8x1xf32>
    %cst_16 = arith.constant 1.000000e-30 : f32
    %36 = vector.broadcast %cst_16 : f32 to vector<8x1xf32>
    %37 = arith.maximumf %35, %36 : vector<8x1xf32>
    %38 = tpu.reciprocal %37 {approx = true} : vector<8x1xf32> -> vector<8x1xf32>
    %39 = vector.broadcast %38 : vector<8x1xf32> to vector<8x8xf32>
    %40 = arith.mulf %33, %39 : vector<8x8xf32>
    %41 = arith.truncf %40 : vector<8x8xf32> to vector<8x8xbf16>
    %cst_17 = arith.constant dense<0.000000e+00> : vector<8x16xf32>
    %42 = tpu.matmul %41, %16, %cst_17 {dimension_numbers = #tpu.dot_dimension_numbers<[1], [0], [0], [1], [0, 0, 1, 1], [], []>} : vector<8x8xbf16>, vector<8x16xbf16>, vector<8x16xf32> -> vector<8x16xf32>
    %43 = arith.truncf %42 : vector<8x16xf32> to vector<8x16xbf16>
    %cst_18 = arith.constant dense<0.000000e+00> : vector<8x16xf32>
    %44 = tpu.matmul %43, %20, %cst_18 {dimension_numbers = #tpu.dot_dimension_numbers<[1], [0], [0], [1], [0, 0, 1, 1], [], []>} : vector<8x16xbf16>, vector<16x16xbf16>, vector<8x16xf32> -> vector<8x16xf32>
    %45 = vector.extract_strided_slice %0 {offsets = [0, 48], sizes = [8, 16], strides = [1, 1]} : vector<8x96xf32> to vector<8x16xf32>
    %46 = arith.truncf %45 : vector<8x16xf32> to vector<8x16xbf16>
    %47 = vector.extract_strided_slice %2 {offsets = [0, 16], sizes = [8, 16], strides = [1, 1]} : vector<8x96xf32> to vector<8x16xf32>
    %48 = arith.truncf %47 : vector<8x16xf32> to vector<8x16xbf16>
    %49 = vector.extract_strided_slice %2 {offsets = [0, 80], sizes = [8, 16], strides = [1, 1]} : vector<8x96xf32> to vector<8x16xf32>
    %50 = arith.truncf %49 : vector<8x16xf32> to vector<8x16xbf16>
    %51 = vector.extract_strided_slice %9 {offsets = [1, 0], sizes = [1, 16], strides = [1, 1]} : vector<2x16xf32> to vector<1x16xf32>
    %52 = arith.truncf %51 : vector<1x16xf32> to vector<1x16xbf16>
    %53 = vector.extract_strided_slice %10 {offsets = [16, 0], sizes = [16, 16], strides = [1, 1]} : vector<32x16xf32> to vector<16x16xf32>
    %54 = arith.truncf %53 : vector<16x16xf32> to vector<16x16xbf16>
    %cst_19 = arith.constant dense<0.000000e+00> : vector<1x8xf32>
    %55 = tpu.matmul %52, %48, %cst_19 {dimension_numbers = #tpu.dot_dimension_numbers<[1], [1], [0], [0], [0, 0, 1, 0], [], []>} : vector<1x16xbf16>, vector<8x16xbf16>, vector<1x8xf32> -> vector<1x8xf32>
    %cst_20 = arith.constant dense<0.000000e+00> : vector<8x8xf32>
    %56 = tpu.matmul %46, %48, %cst_20 {dimension_numbers = #tpu.dot_dimension_numbers<[1], [1], [0], [0], [0, 0, 1, 0], [], []>} : vector<8x16xbf16>, vector<8x16xbf16>, vector<8x8xf32> -> vector<8x8xf32>
    %57 = vector.broadcast %55 : vector<1x8xf32> to vector<8x8xf32>
    %58 = arith.mulf %3, %57 : vector<8x8xf32>
    %59 = arith.addf %56, %58 : vector<8x8xf32>
    %cst_21 = arith.constant 2.500000e-01 : f32
    %60 = vector.broadcast %cst_21 : f32 to vector<8x8xf32>
    %61 = arith.mulf %59, %60 : vector<8x8xf32>
    %cst_22 = arith.constant dense<0xFF800000> : vector<8xf32>
    %62 = vector.multi_reduction <maximumf>, %61, %cst_22 [1] : vector<8x8xf32> to vector<8xf32>
    %63 = vector.shape_cast %62 : vector<8xf32> to vector<8x1xf32>
    %64 = vector.broadcast %63 : vector<8x1xf32> to vector<8x8xf32>
    %65 = arith.subf %61, %64 : vector<8x8xf32>
    %66 = math.exp %65 : vector<8x8xf32>
    %67 = arith.mulf %66, %8 : vector<8x8xf32>
    %cst_23 = arith.constant dense<0.000000e+00> : vector<8xf32>
    %68 = vector.multi_reduction <add>, %67, %cst_23 [1] : vector<8x8xf32> to vector<8xf32>
    %69 = vector.shape_cast %68 : vector<8xf32> to vector<8x1xf32>
    %cst_24 = arith.constant 1.000000e-30 : f32
    %70 = vector.broadcast %cst_24 : f32 to vector<8x1xf32>
    %71 = arith.maximumf %69, %70 : vector<8x1xf32>
    %72 = tpu.reciprocal %71 {approx = true} : vector<8x1xf32> -> vector<8x1xf32>
    %73 = vector.broadcast %72 : vector<8x1xf32> to vector<8x8xf32>
    %74 = arith.mulf %67, %73 : vector<8x8xf32>
    %75 = arith.truncf %74 : vector<8x8xf32> to vector<8x8xbf16>
    %cst_25 = arith.constant dense<0.000000e+00> : vector<8x16xf32>
    %76 = tpu.matmul %75, %50, %cst_25 {dimension_numbers = #tpu.dot_dimension_numbers<[1], [0], [0], [1], [0, 0, 1, 1], [], []>} : vector<8x8xbf16>, vector<8x16xbf16>, vector<8x16xf32> -> vector<8x16xf32>
    %77 = arith.truncf %76 : vector<8x16xf32> to vector<8x16xbf16>
    %cst_26 = arith.constant dense<0.000000e+00> : vector<8x16xf32>
    %78 = tpu.matmul %77, %54, %cst_26 {dimension_numbers = #tpu.dot_dimension_numbers<[1], [0], [0], [1], [0, 0, 1, 1], [], []>} : vector<8x16xbf16>, vector<16x16xbf16>, vector<8x16xf32> -> vector<8x16xf32>
    %79 = tpu.concatenate %44, %78 in 1 : vector<8x16xf32>, vector<8x16xf32> -> vector<8x32xf32>
    %c0_27 = arith.constant 0 : index
    %c0_28 = arith.constant 0 : index
    %80 = vector.load %arg7[%c0_27, %c0_28] : memref<6x96xf32, #tpu.memory_space<vmem>>, vector<6x96xf32>
    %c0_29 = arith.constant 0 : index
    %c0_30 = arith.constant 0 : index
    %81 = vector.load %arg8[%c0_29, %c0_30] : memref<8x6xf32, #tpu.memory_space<vmem>>, vector<8x6xf32>
    %c0_31 = arith.constant 0 : index
    %c0_32 = arith.constant 0 : index
    %82 = vector.load %arg9[%c0_31, %c0_32] : memref<8x6xi32, #tpu.memory_space<vmem>>, vector<8x6xi32>
    %83 = vector.broadcast %1 : i32 to vector<8x6xi32>
    %84 = arith.cmpi eq, %82, %83 : vector<8x6xi32>
    %85 = arith.extui %84 : vector<8x6xi1> to vector<8x6xi32>
    %86 = arith.sitofp %85 : vector<8x6xi32> to vector<8x6xf32>
    %c0_33 = arith.constant 0 : index
    %c0_34 = arith.constant 0 : index
    %87 = vector.load %arg10[%c0_33, %c0_34] : memref<2x16xf32, #tpu.memory_space<vmem>>, vector<2x16xf32>
    %c0_35 = arith.constant 0 : index
    %c0_36 = arith.constant 0 : index
    %88 = vector.load %arg11[%c0_35, %c0_36] : memref<32x16xf32, #tpu.memory_space<vmem>>, vector<32x16xf32>
    %89 = vector.extract_strided_slice %0 {offsets = [0, 32], sizes = [8, 16], strides = [1, 1]} : vector<8x96xf32> to vector<8x16xf32>
    %90 = arith.truncf %89 : vector<8x16xf32> to vector<8x16xbf16>
    %91 = vector.extract_strided_slice %80 {offsets = [0, 0], sizes = [6, 16], strides = [1, 1]} : vector<6x96xf32> to vector<6x16xf32>
    %92 = arith.truncf %91 : vector<6x16xf32> to vector<6x16xbf16>
    %93 = vector.extract_strided_slice %80 {offsets = [0, 64], sizes = [6, 16], strides = [1, 1]} : vector<6x96xf32> to vector<6x16xf32>
    %94 = arith.truncf %93 : vector<6x16xf32> to vector<6x16xbf16>
    %95 = vector.extract_strided_slice %87 {offsets = [0, 0], sizes = [1, 16], strides = [1, 1]} : vector<2x16xf32> to vector<1x16xf32>
    %96 = arith.truncf %95 : vector<1x16xf32> to vector<1x16xbf16>
    %97 = vector.extract_strided_slice %88 {offsets = [0, 0], sizes = [16, 16], strides = [1, 1]} : vector<32x16xf32> to vector<16x16xf32>
    %98 = arith.truncf %97 : vector<16x16xf32> to vector<16x16xbf16>
    %cst_37 = arith.constant dense<0.000000e+00> : vector<1x6xf32>
    %99 = tpu.matmul %96, %92, %cst_37 {dimension_numbers = #tpu.dot_dimension_numbers<[1], [1], [0], [0], [0, 0, 1, 0], [], []>} : vector<1x16xbf16>, vector<6x16xbf16>, vector<1x6xf32> -> vector<1x6xf32>
    %cst_38 = arith.constant dense<0.000000e+00> : vector<8x6xf32>
    %100 = tpu.matmul %90, %92, %cst_38 {dimension_numbers = #tpu.dot_dimension_numbers<[1], [1], [0], [0], [0, 0, 1, 0], [], []>} : vector<8x16xbf16>, vector<6x16xbf16>, vector<8x6xf32> -> vector<8x6xf32>
    %101 = vector.broadcast %99 : vector<1x6xf32> to vector<8x6xf32>
    %102 = arith.mulf %81, %101 : vector<8x6xf32>
    %103 = arith.addf %100, %102 : vector<8x6xf32>
    %cst_39 = arith.constant 2.500000e-01 : f32
    %104 = vector.broadcast %cst_39 : f32 to vector<8x6xf32>
    %105 = arith.mulf %103, %104 : vector<8x6xf32>
    %cst_40 = arith.constant dense<0xFF800000> : vector<8xf32>
    %106 = vector.multi_reduction <maximumf>, %105, %cst_40 [1] : vector<8x6xf32> to vector<8xf32>
    %107 = vector.shape_cast %106 : vector<8xf32> to vector<8x1xf32>
    %108 = vector.broadcast %107 : vector<8x1xf32> to vector<8x6xf32>
    %109 = arith.subf %105, %108 : vector<8x6xf32>
    %110 = math.exp %109 : vector<8x6xf32>
    %111 = arith.mulf %110, %86 : vector<8x6xf32>
    %cst_41 = arith.constant dense<0.000000e+00> : vector<8xf32>
    %112 = vector.multi_reduction <add>, %111, %cst_41 [1] : vector<8x6xf32> to vector<8xf32>
    %113 = vector.shape_cast %112 : vector<8xf32> to vector<8x1xf32>
    %cst_42 = arith.constant 1.000000e-30 : f32
    %114 = vector.broadcast %cst_42 : f32 to vector<8x1xf32>
    %115 = arith.maximumf %113, %114 : vector<8x1xf32>
    %116 = tpu.reciprocal %115 {approx = true} : vector<8x1xf32> -> vector<8x1xf32>
    %117 = vector.broadcast %116 : vector<8x1xf32> to vector<8x6xf32>
    %118 = arith.mulf %111, %117 : vector<8x6xf32>
    %119 = arith.truncf %118 : vector<8x6xf32> to vector<8x6xbf16>
    %cst_43 = arith.constant dense<0.000000e+00> : vector<8x16xf32>
    %120 = tpu.matmul %119, %94, %cst_43 {dimension_numbers = #tpu.dot_dimension_numbers<[1], [0], [0], [1], [0, 0, 1, 1], [], []>} : vector<8x6xbf16>, vector<6x16xbf16>, vector<8x16xf32> -> vector<8x16xf32>
    %121 = arith.truncf %120 : vector<8x16xf32> to vector<8x16xbf16>
    %cst_44 = arith.constant dense<0.000000e+00> : vector<8x16xf32>
    %122 = tpu.matmul %121, %98, %cst_44 {dimension_numbers = #tpu.dot_dimension_numbers<[1], [0], [0], [1], [0, 0, 1, 1], [], []>} : vector<8x16xbf16>, vector<16x16xbf16>, vector<8x16xf32> -> vector<8x16xf32>
    %123 = vector.extract_strided_slice %0 {offsets = [0, 48], sizes = [8, 16], strides = [1, 1]} : vector<8x96xf32> to vector<8x16xf32>
    %124 = arith.truncf %123 : vector<8x16xf32> to vector<8x16xbf16>
    %125 = vector.extract_strided_slice %80 {offsets = [0, 16], sizes = [6, 16], strides = [1, 1]} : vector<6x96xf32> to vector<6x16xf32>
    %126 = arith.truncf %125 : vector<6x16xf32> to vector<6x16xbf16>
    %127 = vector.extract_strided_slice %80 {offsets = [0, 80], sizes = [6, 16], strides = [1, 1]} : vector<6x96xf32> to vector<6x16xf32>
    %128 = arith.truncf %127 : vector<6x16xf32> to vector<6x16xbf16>
    %129 = vector.extract_strided_slice %87 {offsets = [1, 0], sizes = [1, 16], strides = [1, 1]} : vector<2x16xf32> to vector<1x16xf32>
    %130 = arith.truncf %129 : vector<1x16xf32> to vector<1x16xbf16>
    %131 = vector.extract_strided_slice %88 {offsets = [16, 0], sizes = [16, 16], strides = [1, 1]} : vector<32x16xf32> to vector<16x16xf32>
    %132 = arith.truncf %131 : vector<16x16xf32> to vector<16x16xbf16>
    %cst_45 = arith.constant dense<0.000000e+00> : vector<1x6xf32>
    %133 = tpu.matmul %130, %126, %cst_45 {dimension_numbers = #tpu.dot_dimension_numbers<[1], [1], [0], [0], [0, 0, 1, 0], [], []>} : vector<1x16xbf16>, vector<6x16xbf16>, vector<1x6xf32> -> vector<1x6xf32>
    %cst_46 = arith.constant dense<0.000000e+00> : vector<8x6xf32>
    %134 = tpu.matmul %124, %126, %cst_46 {dimension_numbers = #tpu.dot_dimension_numbers<[1], [1], [0], [0], [0, 0, 1, 0], [], []>} : vector<8x16xbf16>, vector<6x16xbf16>, vector<8x6xf32> -> vector<8x6xf32>
    %135 = vector.broadcast %133 : vector<1x6xf32> to vector<8x6xf32>
    %136 = arith.mulf %81, %135 : vector<8x6xf32>
    %137 = arith.addf %134, %136 : vector<8x6xf32>
    %cst_47 = arith.constant 2.500000e-01 : f32
    %138 = vector.broadcast %cst_47 : f32 to vector<8x6xf32>
    %139 = arith.mulf %137, %138 : vector<8x6xf32>
    %cst_48 = arith.constant dense<0xFF800000> : vector<8xf32>
    %140 = vector.multi_reduction <maximumf>, %139, %cst_48 [1] : vector<8x6xf32> to vector<8xf32>
    %141 = vector.shape_cast %140 : vector<8xf32> to vector<8x1xf32>
    %142 = vector.broadcast %141 : vector<8x1xf32> to vector<8x6xf32>
    %143 = arith.subf %139, %142 : vector<8x6xf32>
    %144 = math.exp %143 : vector<8x6xf32>
    %145 = arith.mulf %144, %86 : vector<8x6xf32>
    %cst_49 = arith.constant dense<0.000000e+00> : vector<8xf32>
    %146 = vector.multi_reduction <add>, %145, %cst_49 [1] : vector<8x6xf32> to vector<8xf32>
    %147 = vector.shape_cast %146 : vector<8xf32> to vector<8x1xf32>
    %cst_50 = arith.constant 1.000000e-30 : f32
    %148 = vector.broadcast %cst_50 : f32 to vector<8x1xf32>
    %149 = arith.maximumf %147, %148 : vector<8x1xf32>
    %150 = tpu.reciprocal %149 {approx = true} : vector<8x1xf32> -> vector<8x1xf32>
    %151 = vector.broadcast %150 : vector<8x1xf32> to vector<8x6xf32>
    %152 = arith.mulf %145, %151 : vector<8x6xf32>
    %153 = arith.truncf %152 : vector<8x6xf32> to vector<8x6xbf16>
    %cst_51 = arith.constant dense<0.000000e+00> : vector<8x16xf32>
    %154 = tpu.matmul %153, %128, %cst_51 {dimension_numbers = #tpu.dot_dimension_numbers<[1], [0], [0], [1], [0, 0, 1, 1], [], []>} : vector<8x6xbf16>, vector<6x16xbf16>, vector<8x16xf32> -> vector<8x16xf32>
    %155 = arith.truncf %154 : vector<8x16xf32> to vector<8x16xbf16>
    %cst_52 = arith.constant dense<0.000000e+00> : vector<8x16xf32>
    %156 = tpu.matmul %155, %132, %cst_52 {dimension_numbers = #tpu.dot_dimension_numbers<[1], [0], [0], [1], [0, 0, 1, 1], [], []>} : vector<8x16xbf16>, vector<16x16xbf16>, vector<8x16xf32> -> vector<8x16xf32>
    %157 = tpu.concatenate %122, %156 in 1 : vector<8x16xf32>, vector<8x16xf32> -> vector<8x32xf32>
    %158 = arith.addf %79, %157 : vector<8x32xf32>
    %cst_53 = arith.constant 5.000000e-01 : f32
    %159 = vector.broadcast %cst_53 : f32 to vector<8x32xf32>
    %160 = arith.mulf %158, %159 : vector<8x32xf32>
    %cst_54 = arith.constant 0.000000e+00 : f32
    %161 = vector.broadcast %cst_54 : f32 to vector<8x32xf32>
    %162 = arith.maximumf %160, %161 : vector<8x32xf32>
    %cst_55 = arith.constant dense<0.000000e+00> : vector<8xf32>
    %163 = vector.multi_reduction <add>, %162, %cst_55 [1] : vector<8x32xf32> to vector<8xf32>
    %164 = vector.shape_cast %163 : vector<8xf32> to vector<8x1xf32>
    %cst_56 = arith.constant 3.200000e+01 : f32
    %165 = vector.broadcast %cst_56 : f32 to vector<8x1xf32>
    %166 = arith.divf %164, %165 : vector<8x1xf32>
    %167 = vector.broadcast %166 : vector<8x1xf32> to vector<8x32xf32>
    %168 = arith.subf %162, %167 : vector<8x32xf32>
    %169 = arith.mulf %168, %168 : vector<8x32xf32>
    %cst_57 = arith.constant dense<0.000000e+00> : vector<8xf32>
    %170 = vector.multi_reduction <add>, %169, %cst_57 [1] : vector<8x32xf32> to vector<8xf32>
    %171 = vector.shape_cast %170 : vector<8xf32> to vector<8x1xf32>
    %cst_58 = arith.constant 3.200000e+01 : f32
    %172 = vector.broadcast %cst_58 : f32 to vector<8x1xf32>
    %173 = arith.divf %171, %172 : vector<8x1xf32>
    %cst_59 = arith.constant 9.99999974E-6 : f32
    %174 = vector.broadcast %cst_59 : f32 to vector<8x1xf32>
    %175 = arith.addf %173, %174 : vector<8x1xf32>
    %176 = math.rsqrt %175 : vector<8x1xf32>
    %177 = vector.broadcast %176 : vector<8x1xf32> to vector<8x32xf32>
    %178 = arith.mulf %168, %177 : vector<8x32xf32>
    %c0_60 = arith.constant 0 : index
    %c0_61 = arith.constant 0 : index
    %179 = vector.load %arg12[%c0_60, %c0_61] : memref<1x32xf32, #tpu.memory_space<vmem>>, vector<1x32xf32>
    %180 = vector.broadcast %179 : vector<1x32xf32> to vector<8x32xf32>
    %181 = arith.mulf %178, %180 : vector<8x32xf32>
    %c0_62 = arith.constant 0 : index
    %c0_63 = arith.constant 0 : index
    %182 = vector.load %arg13[%c0_62, %c0_63] : memref<1x32xf32, #tpu.memory_space<vmem>>, vector<1x32xf32>
    %183 = vector.broadcast %182 : vector<1x32xf32> to vector<8x32xf32>
    %184 = arith.addf %181, %183 : vector<8x32xf32>
    %c0_64 = arith.constant 0 : index
    %c0_65 = arith.constant 0 : index
    %185 = vector.load %arg14[%c0_64, %c0_65] : memref<8x32xf32, #tpu.memory_space<vmem>>, vector<8x32xf32>
    tpu.vector_store %arg14[%c0_64, %c0_65], %184 {strides = array<i32>} : memref<8x32xf32, #tpu.memory_space<vmem>>, vector<8x32xf32>,
    return
  }
}

module attributes {stable_mosaic.version = 11 : i64} {
  func.func @_linear_kernel(%arg0: memref<2x32xf32, #tpu.memory_space<vmem>>, %arg1: memref<32x96xbf16, #tpu.memory_space<vmem>>, %arg2: memref<1x96xf32, #tpu.memory_space<vmem>>, %arg3: memref<2x96xf32, #tpu.memory_space<vmem>>) attributes {dimension_semantics = [], scalar_prefetch = 0 : i64, scratch_operands = 0 : i64, tpu.core_type = #tpu.core_type<tc>} {
    %c0 = arith.constant 0 : index
    %c0_0 = arith.constant 0 : index
    %0 = vector.load %arg0[%c0, %c0_0] : memref<2x32xf32, #tpu.memory_space<vmem>>, vector<2x32xf32>
    %1 = arith.truncf %0 : vector<2x32xf32> to vector<2x32xbf16>
    %c0_1 = arith.constant 0 : index
    %c0_2 = arith.constant 0 : index
    %2 = vector.load %arg1[%c0_1, %c0_2] : memref<32x96xbf16, #tpu.memory_space<vmem>>, vector<32x96xbf16>
    %cst = arith.constant dense<0.000000e+00> : vector<2x96xf32>
    %3 = tpu.matmul %1, %2, %cst {dimension_numbers = #tpu.dot_dimension_numbers<[1], [0], [0], [1], [0, 0, 1, 1], [], []>} : vector<2x32xbf16>, vector<32x96xbf16>, vector<2x96xf32> -> vector<2x96xf32>
    %c0_3 = arith.constant 0 : index
    %c0_4 = arith.constant 0 : index
    %4 = vector.load %arg2[%c0_3, %c0_4] : memref<1x96xf32, #tpu.memory_space<vmem>>, vector<1x96xf32>
    %5 = vector.broadcast %4 : vector<1x96xf32> to vector<2x96xf32>
    %6 = arith.addf %3, %5 : vector<2x96xf32>
    %c0_5 = arith.constant 0 : index
    %c0_6 = arith.constant 0 : index
    %7 = vector.load %arg3[%c0_5, %c0_6] : memref<2x96xf32, #tpu.memory_space<vmem>>, vector<2x96xf32>
    tpu.vector_store %arg3[%c0_5, %c0_6], %6 {strides = array<i32>} : memref<2x96xf32, #tpu.memory_space<vmem>>, vector<2x96xf32>,
    return
  }
}

module attributes {stable_mosaic.version = 11 : i64} {
  func.func @kernel(%arg0: memref<1xi32, #tpu.memory_space<smem>>, %arg1: memref<6x96xf32, #tpu.memory_space<vmem>>, %arg2: memref<6x96xf32, #tpu.memory_space<vmem>>, %arg3: memref<6x6xf32, #tpu.memory_space<vmem>>, %arg4: memref<6x6xi32, #tpu.memory_space<vmem>>, %arg5: memref<2x16xf32, #tpu.memory_space<vmem>>, %arg6: memref<32x16xf32, #tpu.memory_space<vmem>>, %arg7: memref<1x32xf32, #tpu.memory_space<vmem>>, %arg8: memref<1x32xf32, #tpu.memory_space<vmem>>, %arg9: memref<6x32xf32, #tpu.memory_space<vmem>>) attributes {dimension_semantics = [], scalar_prefetch = 0 : i64, scratch_operands = 0 : i64, tpu.core_type = #tpu.core_type<tc>} {
    %c0 = arith.constant 0 : index
    %c0_0 = arith.constant 0 : index
    %0 = vector.load %arg1[%c0, %c0_0] : memref<6x96xf32, #tpu.memory_space<vmem>>, vector<6x96xf32>
    %c0_1 = arith.constant 0 : index
    %c0_2 = arith.constant 0 : index
    %1 = vector.load %arg2[%c0_1, %c0_2] : memref<6x96xf32, #tpu.memory_space<vmem>>, vector<6x96xf32>
    %c0_3 = arith.constant 0 : index
    %c0_4 = arith.constant 0 : index
    %2 = vector.load %arg3[%c0_3, %c0_4] : memref<6x6xf32, #tpu.memory_space<vmem>>, vector<6x6xf32>
    %c0_5 = arith.constant 0 : index
    %c0_6 = arith.constant 0 : index
    %3 = vector.load %arg5[%c0_5, %c0_6] : memref<2x16xf32, #tpu.memory_space<vmem>>, vector<2x16xf32>
    %c0_7 = arith.constant 0 : index
    %c0_8 = arith.constant 0 : index
    %4 = vector.load %arg6[%c0_7, %c0_8] : memref<32x16xf32, #tpu.memory_space<vmem>>, vector<32x16xf32>
    %5 = vector.extract_strided_slice %0 {offsets = [0, 32], sizes = [6, 16], strides = [1, 1]} : vector<6x96xf32> to vector<6x16xf32>
    %6 = arith.truncf %5 : vector<6x16xf32> to vector<6x16xbf16>
    %7 = vector.extract_strided_slice %1 {offsets = [0, 0], sizes = [6, 16], strides = [1, 1]} : vector<6x96xf32> to vector<6x16xf32>
    %8 = arith.truncf %7 : vector<6x16xf32> to vector<6x16xbf16>
    %9 = vector.extract_strided_slice %1 {offsets = [0, 64], sizes = [6, 16], strides = [1, 1]} : vector<6x96xf32> to vector<6x16xf32>
    %10 = arith.truncf %9 : vector<6x16xf32> to vector<6x16xbf16>
    %11 = vector.extract_strided_slice %3 {offsets = [0, 0], sizes = [1, 16], strides = [1, 1]} : vector<2x16xf32> to vector<1x16xf32>
    %12 = arith.truncf %11 : vector<1x16xf32> to vector<1x16xbf16>
    %13 = vector.extract_strided_slice %4 {offsets = [0, 0], sizes = [16, 16], strides = [1, 1]} : vector<32x16xf32> to vector<16x16xf32>
    %14 = arith.truncf %13 : vector<16x16xf32> to vector<16x16xbf16>
    %cst = arith.constant dense<0.000000e+00> : vector<1x6xf32>
    %15 = tpu.matmul %12, %8, %cst {dimension_numbers = #tpu.dot_dimension_numbers<[1], [1], [0], [0], [0, 0, 1, 0], [], []>} : vector<1x16xbf16>, vector<6x16xbf16>, vector<1x6xf32> -> vector<1x6xf32>
    %cst_9 = arith.constant dense<0.000000e+00> : vector<6x6xf32>
    %16 = tpu.matmul %6, %8, %cst_9 {dimension_numbers = #tpu.dot_dimension_numbers<[1], [1], [0], [0], [0, 0, 1, 0], [], []>} : vector<6x16xbf16>, vector<6x16xbf16>, vector<6x6xf32> -> vector<6x6xf32>
    %17 = vector.broadcast %15 : vector<1x6xf32> to vector<6x6xf32>
    %18 = arith.mulf %2, %17 : vector<6x6xf32>
    %19 = arith.addf %16, %18 : vector<6x6xf32>
    %cst_10 = arith.constant 2.500000e-01 : f32
    %20 = vector.broadcast %cst_10 : f32 to vector<6x6xf32>
    %21 = arith.mulf %19, %20 : vector<6x6xf32>
    %cst_11 = arith.constant dense<0xFF800000> : vector<6xf32>
    %22 = vector.multi_reduction <maximumf>, %21, %cst_11 [1] : vector<6x6xf32> to vector<6xf32>
    %23 = vector.shape_cast %22 : vector<6xf32> to vector<6x1xf32>
    %24 = vector.broadcast %23 : vector<6x1xf32> to vector<6x6xf32>
    %25 = arith.subf %21, %24 : vector<6x6xf32>
    %26 = math.exp %25 : vector<6x6xf32>
    %cst_12 = arith.constant dense<0.000000e+00> : vector<6xf32>
    %27 = vector.multi_reduction <add>, %26, %cst_12 [1] : vector<6x6xf32> to vector<6xf32>
    %28 = vector.shape_cast %27 : vector<6xf32> to vector<6x1xf32>
    %cst_13 = arith.constant 1.000000e-30 : f32
    %29 = vector.broadcast %cst_13 : f32 to vector<6x1xf32>
    %30 = arith.maximumf %28, %29 : vector<6x1xf32>
    %31 = tpu.reciprocal %30 {approx = true} : vector<6x1xf32> -> vector<6x1xf32>
    %32 = vector.broadcast %31 : vector<6x1xf32> to vector<6x6xf32>
    %33 = arith.mulf %26, %32 : vector<6x6xf32>
    %34 = arith.truncf %33 : vector<6x6xf32> to vector<6x6xbf16>
    %cst_14 = arith.constant dense<0.000000e+00> : vector<6x16xf32>
    %35 = tpu.matmul %34, %10, %cst_14 {dimension_numbers = #tpu.dot_dimension_numbers<[1], [0], [0], [1], [0, 0, 1, 1], [], []>} : vector<6x6xbf16>, vector<6x16xbf16>, vector<6x16xf32> -> vector<6x16xf32>
    %36 = arith.truncf %35 : vector<6x16xf32> to vector<6x16xbf16>
    %cst_15 = arith.constant dense<0.000000e+00> : vector<6x16xf32>
    %37 = tpu.matmul %36, %14, %cst_15 {dimension_numbers = #tpu.dot_dimension_numbers<[1], [0], [0], [1], [0, 0, 1, 1], [], []>} : vector<6x16xbf16>, vector<16x16xbf16>, vector<6x16xf32> -> vector<6x16xf32>
    %38 = vector.extract_strided_slice %0 {offsets = [0, 48], sizes = [6, 16], strides = [1, 1]} : vector<6x96xf32> to vector<6x16xf32>
    %39 = arith.truncf %38 : vector<6x16xf32> to vector<6x16xbf16>
    %40 = vector.extract_strided_slice %1 {offsets = [0, 16], sizes = [6, 16], strides = [1, 1]} : vector<6x96xf32> to vector<6x16xf32>
    %41 = arith.truncf %40 : vector<6x16xf32> to vector<6x16xbf16>
    %42 = vector.extract_strided_slice %1 {offsets = [0, 80], sizes = [6, 16], strides = [1, 1]} : vector<6x96xf32> to vector<6x16xf32>
    %43 = arith.truncf %42 : vector<6x16xf32> to vector<6x16xbf16>
    %44 = vector.extract_strided_slice %3 {offsets = [1, 0], sizes = [1, 16], strides = [1, 1]} : vector<2x16xf32> to vector<1x16xf32>
    %45 = arith.truncf %44 : vector<1x16xf32> to vector<1x16xbf16>
    %46 = vector.extract_strided_slice %4 {offsets = [16, 0], sizes = [16, 16], strides = [1, 1]} : vector<32x16xf32> to vector<16x16xf32>
    %47 = arith.truncf %46 : vector<16x16xf32> to vector<16x16xbf16>
    %cst_16 = arith.constant dense<0.000000e+00> : vector<1x6xf32>
    %48 = tpu.matmul %45, %41, %cst_16 {dimension_numbers = #tpu.dot_dimension_numbers<[1], [1], [0], [0], [0, 0, 1, 0], [], []>} : vector<1x16xbf16>, vector<6x16xbf16>, vector<1x6xf32> -> vector<1x6xf32>
    %cst_17 = arith.constant dense<0.000000e+00> : vector<6x6xf32>
    %49 = tpu.matmul %39, %41, %cst_17 {dimension_numbers = #tpu.dot_dimension_numbers<[1], [1], [0], [0], [0, 0, 1, 0], [], []>} : vector<6x16xbf16>, vector<6x16xbf16>, vector<6x6xf32> -> vector<6x6xf32>
    %50 = vector.broadcast %48 : vector<1x6xf32> to vector<6x6xf32>
    %51 = arith.mulf %2, %50 : vector<6x6xf32>
    %52 = arith.addf %49, %51 : vector<6x6xf32>
    %cst_18 = arith.constant 2.500000e-01 : f32
    %53 = vector.broadcast %cst_18 : f32 to vector<6x6xf32>
    %54 = arith.mulf %52, %53 : vector<6x6xf32>
    %cst_19 = arith.constant dense<0xFF800000> : vector<6xf32>
    %55 = vector.multi_reduction <maximumf>, %54, %cst_19 [1] : vector<6x6xf32> to vector<6xf32>
    %56 = vector.shape_cast %55 : vector<6xf32> to vector<6x1xf32>
    %57 = vector.broadcast %56 : vector<6x1xf32> to vector<6x6xf32>
    %58 = arith.subf %54, %57 : vector<6x6xf32>
    %59 = math.exp %58 : vector<6x6xf32>
    %cst_20 = arith.constant dense<0.000000e+00> : vector<6xf32>
    %60 = vector.multi_reduction <add>, %59, %cst_20 [1] : vector<6x6xf32> to vector<6xf32>
    %61 = vector.shape_cast %60 : vector<6xf32> to vector<6x1xf32>
    %cst_21 = arith.constant 1.000000e-30 : f32
    %62 = vector.broadcast %cst_21 : f32 to vector<6x1xf32>
    %63 = arith.maximumf %61, %62 : vector<6x1xf32>
    %64 = tpu.reciprocal %63 {approx = true} : vector<6x1xf32> -> vector<6x1xf32>
    %65 = vector.broadcast %64 : vector<6x1xf32> to vector<6x6xf32>
    %66 = arith.mulf %59, %65 : vector<6x6xf32>
    %67 = arith.truncf %66 : vector<6x6xf32> to vector<6x6xbf16>
    %cst_22 = arith.constant dense<0.000000e+00> : vector<6x16xf32>
    %68 = tpu.matmul %67, %43, %cst_22 {dimension_numbers = #tpu.dot_dimension_numbers<[1], [0], [0], [1], [0, 0, 1, 1], [], []>} : vector<6x6xbf16>, vector<6x16xbf16>, vector<6x16xf32> -> vector<6x16xf32>
    %69 = arith.truncf %68 : vector<6x16xf32> to vector<6x16xbf16>
    %cst_23 = arith.constant dense<0.000000e+00> : vector<6x16xf32>
    %70 = tpu.matmul %69, %47, %cst_23 {dimension_numbers = #tpu.dot_dimension_numbers<[1], [0], [0], [1], [0, 0, 1, 1], [], []>} : vector<6x16xbf16>, vector<16x16xbf16>, vector<6x16xf32> -> vector<6x16xf32>
    %71 = tpu.concatenate %37, %70 in 1 : vector<6x16xf32>, vector<6x16xf32> -> vector<6x32xf32>
    %cst_24 = arith.constant 1.000000e+00 : f32
    %72 = vector.broadcast %cst_24 : f32 to vector<6x32xf32>
    %73 = arith.mulf %71, %72 : vector<6x32xf32>
    %cst_25 = arith.constant 0.000000e+00 : f32
    %74 = vector.broadcast %cst_25 : f32 to vector<6x32xf32>
    %75 = arith.maximumf %73, %74 : vector<6x32xf32>
    %cst_26 = arith.constant dense<0.000000e+00> : vector<6xf32>
    %76 = vector.multi_reduction <add>, %75, %cst_26 [1] : vector<6x32xf32> to vector<6xf32>
    %77 = vector.shape_cast %76 : vector<6xf32> to vector<6x1xf32>
    %cst_27 = arith.constant 3.200000e+01 : f32
    %78 = vector.broadcast %cst_27 : f32 to vector<6x1xf32>
    %79 = arith.divf %77, %78 : vector<6x1xf32>
    %80 = vector.broadcast %79 : vector<6x1xf32> to vector<6x32xf32>
    %81 = arith.subf %75, %80 : vector<6x32xf32>
    %82 = arith.mulf %81, %81 : vector<6x32xf32>
    %cst_28 = arith.constant dense<0.000000e+00> : vector<6xf32>
    %83 = vector.multi_reduction <add>, %82, %cst_28 [1] : vector<6x32xf32> to vector<6xf32>
    %84 = vector.shape_cast %83 : vector<6xf32> to vector<6x1xf32>
    %cst_29 = arith.constant 3.200000e+01 : f32
    %85 = vector.broadcast %cst_29 : f32 to vector<6x1xf32>
    %86 = arith.divf %84, %85 : vector<6x1xf32>
    %cst_30 = arith.constant 9.99999974E-6 : f32
    %87 = vector.broadcast %cst_30 : f32 to vector<6x1xf32>
    %88 = arith.addf %86, %87 : vector<6x1xf32>
    %89 = math.rsqrt %88 : vector<6x1xf32>
    %90 = vector.broadcast %89 : vector<6x1xf32> to vector<6x32xf32>
    %91 = arith.mulf %81, %90 : vector<6x32xf32>
    %c0_31 = arith.constant 0 : index
    %c0_32 = arith.constant 0 : index
    %92 = vector.load %arg7[%c0_31, %c0_32] : memref<1x32xf32, #tpu.memory_space<vmem>>, vector<1x32xf32>
    %93 = vector.broadcast %92 : vector<1x32xf32> to vector<6x32xf32>
    %94 = arith.mulf %91, %93 : vector<6x32xf32>
    %c0_33 = arith.constant 0 : index
    %c0_34 = arith.constant 0 : index
    %95 = vector.load %arg8[%c0_33, %c0_34] : memref<1x32xf32, #tpu.memory_space<vmem>>, vector<1x32xf32>
    %96 = vector.broadcast %95 : vector<1x32xf32> to vector<6x32xf32>
    %97 = arith.addf %94, %96 : vector<6x32xf32>
    %c0_35 = arith.constant 0 : index
    %c0_36 = arith.constant 0 : index
    %98 = vector.load %arg9[%c0_35, %c0_36] : memref<6x32xf32, #tpu.memory_space<vmem>>, vector<6x32xf32>
    tpu.vector_store %arg9[%c0_35, %c0_36], %97 {strides = array<i32>} : memref<6x32xf32, #tpu.memory_space<vmem>>, vector<6x32xf32>,
    return
  }
}

module attributes {stable_mosaic.version = 11 : i64} {
  func.func @kernel(%arg0: memref<1xi32, #tpu.memory_space<smem>>, %arg1: memref<2x96xf32, #tpu.memory_space<vmem>>, %arg2: memref<8x96xf32, #tpu.memory_space<vmem>>, %arg3: memref<2x8xf32, #tpu.memory_space<vmem>>, %arg4: memref<2x8xi32, #tpu.memory_space<vmem>>, %arg5: memref<2x16xf32, #tpu.memory_space<vmem>>, %arg6: memref<32x16xf32, #tpu.memory_space<vmem>>, %arg7: memref<6x96xf32, #tpu.memory_space<vmem>>, %arg8: memref<2x6xf32, #tpu.memory_space<vmem>>, %arg9: memref<2x6xi32, #tpu.memory_space<vmem>>, %arg10: memref<2x16xf32, #tpu.memory_space<vmem>>, %arg11: memref<32x16xf32, #tpu.memory_space<vmem>>, %arg12: memref<1x32xf32, #tpu.memory_space<vmem>>, %arg13: memref<1x32xf32, #tpu.memory_space<vmem>>, %arg14: memref<2x32xf32, #tpu.memory_space<vmem>>) attributes {dimension_semantics = [], scalar_prefetch = 0 : i64, scratch_operands = 0 : i64, tpu.core_type = #tpu.core_type<tc>} {
    %c0 = arith.constant 0 : index
    %c0_0 = arith.constant 0 : index
    %0 = vector.load %arg1[%c0, %c0_0] : memref<2x96xf32, #tpu.memory_space<vmem>>, vector<2x96xf32>
    %c0_1 = arith.constant 0 : index
    %1 = memref.load %arg0[%c0_1] : memref<1xi32, #tpu.memory_space<smem>>
    %c0_2 = arith.constant 0 : index
    %c0_3 = arith.constant 0 : index
    %2 = vector.load %arg2[%c0_2, %c0_3] : memref<8x96xf32, #tpu.memory_space<vmem>>, vector<8x96xf32>
    %c0_4 = arith.constant 0 : index
    %c0_5 = arith.constant 0 : index
    %3 = vector.load %arg3[%c0_4, %c0_5] : memref<2x8xf32, #tpu.memory_space<vmem>>, vector<2x8xf32>
    %c0_6 = arith.constant 0 : index
    %c0_7 = arith.constant 0 : index
    %4 = vector.load %arg4[%c0_6, %c0_7] : memref<2x8xi32, #tpu.memory_space<vmem>>, vector<2x8xi32>
    %5 = vector.broadcast %1 : i32 to vector<2x8xi32>
    %6 = arith.cmpi eq, %4, %5 : vector<2x8xi32>
    %7 = arith.extui %6 : vector<2x8xi1> to vector<2x8xi32>
    %8 = arith.sitofp %7 : vector<2x8xi32> to vector<2x8xf32>
    %c0_8 = arith.constant 0 : index
    %c0_9 = arith.constant 0 : index
    %9 = vector.load %arg5[%c0_8, %c0_9] : memref<2x16xf32, #tpu.memory_space<vmem>>, vector<2x16xf32>
    %c0_10 = arith.constant 0 : index
    %c0_11 = arith.constant 0 : index
    %10 = vector.load %arg6[%c0_10, %c0_11] : memref<32x16xf32, #tpu.memory_space<vmem>>, vector<32x16xf32>
    %11 = vector.extract_strided_slice %0 {offsets = [0, 32], sizes = [2, 16], strides = [1, 1]} : vector<2x96xf32> to vector<2x16xf32>
    %12 = arith.truncf %11 : vector<2x16xf32> to vector<2x16xbf16>
    %13 = vector.extract_strided_slice %2 {offsets = [0, 0], sizes = [8, 16], strides = [1, 1]} : vector<8x96xf32> to vector<8x16xf32>
    %14 = arith.truncf %13 : vector<8x16xf32> to vector<8x16xbf16>
    %15 = vector.extract_strided_slice %2 {offsets = [0, 64], sizes = [8, 16], strides = [1, 1]} : vector<8x96xf32> to vector<8x16xf32>
    %16 = arith.truncf %15 : vector<8x16xf32> to vector<8x16xbf16>
    %17 = vector.extract_strided_slice %9 {offsets = [0, 0], sizes = [1, 16], strides = [1, 1]} : vector<2x16xf32> to vector<1x16xf32>
    %18 = arith.truncf %17 : vector<1x16xf32> to vector<1x16xbf16>
    %19 = vector.extract_strided_slice %10 {offsets = [0, 0], sizes = [16, 16], strides = [1, 1]} : vector<32x16xf32> to vector<16x16xf32>
    %20 = arith.truncf %19 : vector<16x16xf32> to vector<16x16xbf16>
    %cst = arith.constant dense<0.000000e+00> : vector<1x8xf32>
    %21 = tpu.matmul %18, %14, %cst {dimension_numbers = #tpu.dot_dimension_numbers<[1], [1], [0], [0], [0, 0, 1, 0], [], []>} : vector<1x16xbf16>, vector<8x16xbf16>, vector<1x8xf32> -> vector<1x8xf32>
    %cst_12 = arith.constant dense<0.000000e+00> : vector<2x8xf32>
    %22 = tpu.matmul %12, %14, %cst_12 {dimension_numbers = #tpu.dot_dimension_numbers<[1], [1], [0], [0], [0, 0, 1, 0], [], []>} : vector<2x16xbf16>, vector<8x16xbf16>, vector<2x8xf32> -> vector<2x8xf32>
    %23 = vector.broadcast %21 : vector<1x8xf32> to vector<2x8xf32>
    %24 = arith.mulf %3, %23 : vector<2x8xf32>
    %25 = arith.addf %22, %24 : vector<2x8xf32>
    %cst_13 = arith.constant 2.500000e-01 : f32
    %26 = vector.broadcast %cst_13 : f32 to vector<2x8xf32>
    %27 = arith.mulf %25, %26 : vector<2x8xf32>
    %cst_14 = arith.constant dense<0xFF800000> : vector<2xf32>
    %28 = vector.multi_reduction <maximumf>, %27, %cst_14 [1] : vector<2x8xf32> to vector<2xf32>
    %29 = vector.shape_cast %28 : vector<2xf32> to vector<2x1xf32>
    %30 = vector.broadcast %29 : vector<2x1xf32> to vector<2x8xf32>
    %31 = arith.subf %27, %30 : vector<2x8xf32>
    %32 = math.exp %31 : vector<2x8xf32>
    %33 = arith.mulf %32, %8 : vector<2x8xf32>
    %cst_15 = arith.constant dense<0.000000e+00> : vector<2xf32>
    %34 = vector.multi_reduction <add>, %33, %cst_15 [1] : vector<2x8xf32> to vector<2xf32>
    %35 = vector.shape_cast %34 : vector<2xf32> to vector<2x1xf32>
    %cst_16 = arith.constant 1.000000e-30 : f32
    %36 = vector.broadcast %cst_16 : f32 to vector<2x1xf32>
    %37 = arith.maximumf %35, %36 : vector<2x1xf32>
    %38 = tpu.reciprocal %37 {approx = true} : vector<2x1xf32> -> vector<2x1xf32>
    %39 = vector.broadcast %38 : vector<2x1xf32> to vector<2x8xf32>
    %40 = arith.mulf %33, %39 : vector<2x8xf32>
    %41 = arith.truncf %40 : vector<2x8xf32> to vector<2x8xbf16>
    %cst_17 = arith.constant dense<0.000000e+00> : vector<2x16xf32>
    %42 = tpu.matmul %41, %16, %cst_17 {dimension_numbers = #tpu.dot_dimension_numbers<[1], [0], [0], [1], [0, 0, 1, 1], [], []>} : vector<2x8xbf16>, vector<8x16xbf16>, vector<2x16xf32> -> vector<2x16xf32>
    %43 = arith.truncf %42 : vector<2x16xf32> to vector<2x16xbf16>
    %cst_18 = arith.constant dense<0.000000e+00> : vector<2x16xf32>
    %44 = tpu.matmul %43, %20, %cst_18 {dimension_numbers = #tpu.dot_dimension_numbers<[1], [0], [0], [1], [0, 0, 1, 1], [], []>} : vector<2x16xbf16>, vector<16x16xbf16>, vector<2x16xf32> -> vector<2x16xf32>
    %45 = vector.extract_strided_slice %0 {offsets = [0, 48], sizes = [2, 16], strides = [1, 1]} : vector<2x96xf32> to vector<2x16xf32>
    %46 = arith.truncf %45 : vector<2x16xf32> to vector<2x16xbf16>
    %47 = vector.extract_strided_slice %2 {offsets = [0, 16], sizes = [8, 16], strides = [1, 1]} : vector<8x96xf32> to vector<8x16xf32>
    %48 = arith.truncf %47 : vector<8x16xf32> to vector<8x16xbf16>
    %49 = vector.extract_strided_slice %2 {offsets = [0, 80], sizes = [8, 16], strides = [1, 1]} : vector<8x96xf32> to vector<8x16xf32>
    %50 = arith.truncf %49 : vector<8x16xf32> to vector<8x16xbf16>
    %51 = vector.extract_strided_slice %9 {offsets = [1, 0], sizes = [1, 16], strides = [1, 1]} : vector<2x16xf32> to vector<1x16xf32>
    %52 = arith.truncf %51 : vector<1x16xf32> to vector<1x16xbf16>
    %53 = vector.extract_strided_slice %10 {offsets = [16, 0], sizes = [16, 16], strides = [1, 1]} : vector<32x16xf32> to vector<16x16xf32>
    %54 = arith.truncf %53 : vector<16x16xf32> to vector<16x16xbf16>
    %cst_19 = arith.constant dense<0.000000e+00> : vector<1x8xf32>
    %55 = tpu.matmul %52, %48, %cst_19 {dimension_numbers = #tpu.dot_dimension_numbers<[1], [1], [0], [0], [0, 0, 1, 0], [], []>} : vector<1x16xbf16>, vector<8x16xbf16>, vector<1x8xf32> -> vector<1x8xf32>
    %cst_20 = arith.constant dense<0.000000e+00> : vector<2x8xf32>
    %56 = tpu.matmul %46, %48, %cst_20 {dimension_numbers = #tpu.dot_dimension_numbers<[1], [1], [0], [0], [0, 0, 1, 0], [], []>} : vector<2x16xbf16>, vector<8x16xbf16>, vector<2x8xf32> -> vector<2x8xf32>
    %57 = vector.broadcast %55 : vector<1x8xf32> to vector<2x8xf32>
    %58 = arith.mulf %3, %57 : vector<2x8xf32>
    %59 = arith.addf %56, %58 : vector<2x8xf32>
    %cst_21 = arith.constant 2.500000e-01 : f32
    %60 = vector.broadcast %cst_21 : f32 to vector<2x8xf32>
    %61 = arith.mulf %59, %60 : vector<2x8xf32>
    %cst_22 = arith.constant dense<0xFF800000> : vector<2xf32>
    %62 = vector.multi_reduction <maximumf>, %61, %cst_22 [1] : vector<2x8xf32> to vector<2xf32>
    %63 = vector.shape_cast %62 : vector<2xf32> to vector<2x1xf32>
    %64 = vector.broadcast %63 : vector<2x1xf32> to vector<2x8xf32>
    %65 = arith.subf %61, %64 : vector<2x8xf32>
    %66 = math.exp %65 : vector<2x8xf32>
    %67 = arith.mulf %66, %8 : vector<2x8xf32>
    %cst_23 = arith.constant dense<0.000000e+00> : vector<2xf32>
    %68 = vector.multi_reduction <add>, %67, %cst_23 [1] : vector<2x8xf32> to vector<2xf32>
    %69 = vector.shape_cast %68 : vector<2xf32> to vector<2x1xf32>
    %cst_24 = arith.constant 1.000000e-30 : f32
    %70 = vector.broadcast %cst_24 : f32 to vector<2x1xf32>
    %71 = arith.maximumf %69, %70 : vector<2x1xf32>
    %72 = tpu.reciprocal %71 {approx = true} : vector<2x1xf32> -> vector<2x1xf32>
    %73 = vector.broadcast %72 : vector<2x1xf32> to vector<2x8xf32>
    %74 = arith.mulf %67, %73 : vector<2x8xf32>
    %75 = arith.truncf %74 : vector<2x8xf32> to vector<2x8xbf16>
    %cst_25 = arith.constant dense<0.000000e+00> : vector<2x16xf32>
    %76 = tpu.matmul %75, %50, %cst_25 {dimension_numbers = #tpu.dot_dimension_numbers<[1], [0], [0], [1], [0, 0, 1, 1], [], []>} : vector<2x8xbf16>, vector<8x16xbf16>, vector<2x16xf32> -> vector<2x16xf32>
    %77 = arith.truncf %76 : vector<2x16xf32> to vector<2x16xbf16>
    %cst_26 = arith.constant dense<0.000000e+00> : vector<2x16xf32>
    %78 = tpu.matmul %77, %54, %cst_26 {dimension_numbers = #tpu.dot_dimension_numbers<[1], [0], [0], [1], [0, 0, 1, 1], [], []>} : vector<2x16xbf16>, vector<16x16xbf16>, vector<2x16xf32> -> vector<2x16xf32>
    %79 = tpu.concatenate %44, %78 in 1 : vector<2x16xf32>, vector<2x16xf32> -> vector<2x32xf32>
    %c0_27 = arith.constant 0 : index
    %c0_28 = arith.constant 0 : index
    %80 = vector.load %arg7[%c0_27, %c0_28] : memref<6x96xf32, #tpu.memory_space<vmem>>, vector<6x96xf32>
    %c0_29 = arith.constant 0 : index
    %c0_30 = arith.constant 0 : index
    %81 = vector.load %arg8[%c0_29, %c0_30] : memref<2x6xf32, #tpu.memory_space<vmem>>, vector<2x6xf32>
    %c0_31 = arith.constant 0 : index
    %c0_32 = arith.constant 0 : index
    %82 = vector.load %arg9[%c0_31, %c0_32] : memref<2x6xi32, #tpu.memory_space<vmem>>, vector<2x6xi32>
    %83 = vector.broadcast %1 : i32 to vector<2x6xi32>
    %84 = arith.cmpi eq, %82, %83 : vector<2x6xi32>
    %85 = arith.extui %84 : vector<2x6xi1> to vector<2x6xi32>
    %86 = arith.sitofp %85 : vector<2x6xi32> to vector<2x6xf32>
    %c0_33 = arith.constant 0 : index
    %c0_34 = arith.constant 0 : index
    %87 = vector.load %arg10[%c0_33, %c0_34] : memref<2x16xf32, #tpu.memory_space<vmem>>, vector<2x16xf32>
    %c0_35 = arith.constant 0 : index
    %c0_36 = arith.constant 0 : index
    %88 = vector.load %arg11[%c0_35, %c0_36] : memref<32x16xf32, #tpu.memory_space<vmem>>, vector<32x16xf32>
    %89 = vector.extract_strided_slice %0 {offsets = [0, 32], sizes = [2, 16], strides = [1, 1]} : vector<2x96xf32> to vector<2x16xf32>
    %90 = arith.truncf %89 : vector<2x16xf32> to vector<2x16xbf16>
    %91 = vector.extract_strided_slice %80 {offsets = [0, 0], sizes = [6, 16], strides = [1, 1]} : vector<6x96xf32> to vector<6x16xf32>
    %92 = arith.truncf %91 : vector<6x16xf32> to vector<6x16xbf16>
    %93 = vector.extract_strided_slice %80 {offsets = [0, 64], sizes = [6, 16], strides = [1, 1]} : vector<6x96xf32> to vector<6x16xf32>
    %94 = arith.truncf %93 : vector<6x16xf32> to vector<6x16xbf16>
    %95 = vector.extract_strided_slice %87 {offsets = [0, 0], sizes = [1, 16], strides = [1, 1]} : vector<2x16xf32> to vector<1x16xf32>
    %96 = arith.truncf %95 : vector<1x16xf32> to vector<1x16xbf16>
    %97 = vector.extract_strided_slice %88 {offsets = [0, 0], sizes = [16, 16], strides = [1, 1]} : vector<32x16xf32> to vector<16x16xf32>
    %98 = arith.truncf %97 : vector<16x16xf32> to vector<16x16xbf16>
    %cst_37 = arith.constant dense<0.000000e+00> : vector<1x6xf32>
    %99 = tpu.matmul %96, %92, %cst_37 {dimension_numbers = #tpu.dot_dimension_numbers<[1], [1], [0], [0], [0, 0, 1, 0], [], []>} : vector<1x16xbf16>, vector<6x16xbf16>, vector<1x6xf32> -> vector<1x6xf32>
    %cst_38 = arith.constant dense<0.000000e+00> : vector<2x6xf32>
    %100 = tpu.matmul %90, %92, %cst_38 {dimension_numbers = #tpu.dot_dimension_numbers<[1], [1], [0], [0], [0, 0, 1, 0], [], []>} : vector<2x16xbf16>, vector<6x16xbf16>, vector<2x6xf32> -> vector<2x6xf32>
    %101 = vector.broadcast %99 : vector<1x6xf32> to vector<2x6xf32>
    %102 = arith.mulf %81, %101 : vector<2x6xf32>
    %103 = arith.addf %100, %102 : vector<2x6xf32>
    %cst_39 = arith.constant 2.500000e-01 : f32
    %104 = vector.broadcast %cst_39 : f32 to vector<2x6xf32>
    %105 = arith.mulf %103, %104 : vector<2x6xf32>
    %cst_40 = arith.constant dense<0xFF800000> : vector<2xf32>
    %106 = vector.multi_reduction <maximumf>, %105, %cst_40 [1] : vector<2x6xf32> to vector<2xf32>
    %107 = vector.shape_cast %106 : vector<2xf32> to vector<2x1xf32>
    %108 = vector.broadcast %107 : vector<2x1xf32> to vector<2x6xf32>
    %109 = arith.subf %105, %108 : vector<2x6xf32>
    %110 = math.exp %109 : vector<2x6xf32>
    %111 = arith.mulf %110, %86 : vector<2x6xf32>
    %cst_41 = arith.constant dense<0.000000e+00> : vector<2xf32>
    %112 = vector.multi_reduction <add>, %111, %cst_41 [1] : vector<2x6xf32> to vector<2xf32>
    %113 = vector.shape_cast %112 : vector<2xf32> to vector<2x1xf32>
    %cst_42 = arith.constant 1.000000e-30 : f32
    %114 = vector.broadcast %cst_42 : f32 to vector<2x1xf32>
    %115 = arith.maximumf %113, %114 : vector<2x1xf32>
    %116 = tpu.reciprocal %115 {approx = true} : vector<2x1xf32> -> vector<2x1xf32>
    %117 = vector.broadcast %116 : vector<2x1xf32> to vector<2x6xf32>
    %118 = arith.mulf %111, %117 : vector<2x6xf32>
    %119 = arith.truncf %118 : vector<2x6xf32> to vector<2x6xbf16>
    %cst_43 = arith.constant dense<0.000000e+00> : vector<2x16xf32>
    %120 = tpu.matmul %119, %94, %cst_43 {dimension_numbers = #tpu.dot_dimension_numbers<[1], [0], [0], [1], [0, 0, 1, 1], [], []>} : vector<2x6xbf16>, vector<6x16xbf16>, vector<2x16xf32> -> vector<2x16xf32>
    %121 = arith.truncf %120 : vector<2x16xf32> to vector<2x16xbf16>
    %cst_44 = arith.constant dense<0.000000e+00> : vector<2x16xf32>
    %122 = tpu.matmul %121, %98, %cst_44 {dimension_numbers = #tpu.dot_dimension_numbers<[1], [0], [0], [1], [0, 0, 1, 1], [], []>} : vector<2x16xbf16>, vector<16x16xbf16>, vector<2x16xf32> -> vector<2x16xf32>
    %123 = vector.extract_strided_slice %0 {offsets = [0, 48], sizes = [2, 16], strides = [1, 1]} : vector<2x96xf32> to vector<2x16xf32>
    %124 = arith.truncf %123 : vector<2x16xf32> to vector<2x16xbf16>
    %125 = vector.extract_strided_slice %80 {offsets = [0, 16], sizes = [6, 16], strides = [1, 1]} : vector<6x96xf32> to vector<6x16xf32>
    %126 = arith.truncf %125 : vector<6x16xf32> to vector<6x16xbf16>
    %127 = vector.extract_strided_slice %80 {offsets = [0, 80], sizes = [6, 16], strides = [1, 1]} : vector<6x96xf32> to vector<6x16xf32>
    %128 = arith.truncf %127 : vector<6x16xf32> to vector<6x16xbf16>
    %129 = vector.extract_strided_slice %87 {offsets = [1, 0], sizes = [1, 16], strides = [1, 1]} : vector<2x16xf32> to vector<1x16xf32>
    %130 = arith.truncf %129 : vector<1x16xf32> to vector<1x16xbf16>
    %131 = vector.extract_strided_slice %88 {offsets = [16, 0], sizes = [16, 16], strides = [1, 1]} : vector<32x16xf32> to vector<16x16xf32>
    %132 = arith.truncf %131 : vector<16x16xf32> to vector<16x16xbf16>
    %cst_45 = arith.constant dense<0.000000e+00> : vector<1x6xf32>
    %133 = tpu.matmul %130, %126, %cst_45 {dimension_numbers = #tpu.dot_dimension_numbers<[1], [1], [0], [0], [0, 0, 1, 0], [], []>} : vector<1x16xbf16>, vector<6x16xbf16>, vector<1x6xf32> -> vector<1x6xf32>
    %cst_46 = arith.constant dense<0.000000e+00> : vector<2x6xf32>
    %134 = tpu.matmul %124, %126, %cst_46 {dimension_numbers = #tpu.dot_dimension_numbers<[1], [1], [0], [0], [0, 0, 1, 0], [], []>} : vector<2x16xbf16>, vector<6x16xbf16>, vector<2x6xf32> -> vector<2x6xf32>
    %135 = vector.broadcast %133 : vector<1x6xf32> to vector<2x6xf32>
    %136 = arith.mulf %81, %135 : vector<2x6xf32>
    %137 = arith.addf %134, %136 : vector<2x6xf32>
    %cst_47 = arith.constant 2.500000e-01 : f32
    %138 = vector.broadcast %cst_47 : f32 to vector<2x6xf32>
    %139 = arith.mulf %137, %138 : vector<2x6xf32>
    %cst_48 = arith.constant dense<0xFF800000> : vector<2xf32>
    %140 = vector.multi_reduction <maximumf>, %139, %cst_48 [1] : vector<2x6xf32> to vector<2xf32>
    %141 = vector.shape_cast %140 : vector<2xf32> to vector<2x1xf32>
    %142 = vector.broadcast %141 : vector<2x1xf32> to vector<2x6xf32>
    %143 = arith.subf %139, %142 : vector<2x6xf32>
    %144 = math.exp %143 : vector<2x6xf32>
    %145 = arith.mulf %144, %86 : vector<2x6xf32>
    %cst_49 = arith.constant dense<0.000000e+00> : vector<2xf32>
    %146 = vector.multi_reduction <add>, %145, %cst_49 [1] : vector<2x6xf32> to vector<2xf32>
    %147 = vector.shape_cast %146 : vector<2xf32> to vector<2x1xf32>
    %cst_50 = arith.constant 1.000000e-30 : f32
    %148 = vector.broadcast %cst_50 : f32 to vector<2x1xf32>
    %149 = arith.maximumf %147, %148 : vector<2x1xf32>
    %150 = tpu.reciprocal %149 {approx = true} : vector<2x1xf32> -> vector<2x1xf32>
    %151 = vector.broadcast %150 : vector<2x1xf32> to vector<2x6xf32>
    %152 = arith.mulf %145, %151 : vector<2x6xf32>
    %153 = arith.truncf %152 : vector<2x6xf32> to vector<2x6xbf16>
    %cst_51 = arith.constant dense<0.000000e+00> : vector<2x16xf32>
    %154 = tpu.matmul %153, %128, %cst_51 {dimension_numbers = #tpu.dot_dimension_numbers<[1], [0], [0], [1], [0, 0, 1, 1], [], []>} : vector<2x6xbf16>, vector<6x16xbf16>, vector<2x16xf32> -> vector<2x16xf32>
    %155 = arith.truncf %154 : vector<2x16xf32> to vector<2x16xbf16>
    %cst_52 = arith.constant dense<0.000000e+00> : vector<2x16xf32>
    %156 = tpu.matmul %155, %132, %cst_52 {dimension_numbers = #tpu.dot_dimension_numbers<[1], [0], [0], [1], [0, 0, 1, 1], [], []>} : vector<2x16xbf16>, vector<16x16xbf16>, vector<2x16xf32> -> vector<2x16xf32>
    %157 = tpu.concatenate %122, %156 in 1 : vector<2x16xf32>, vector<2x16xf32> -> vector<2x32xf32>
    %158 = arith.addf %79, %157 : vector<2x32xf32>
    %cst_53 = arith.constant 5.000000e-01 : f32
    %159 = vector.broadcast %cst_53 : f32 to vector<2x32xf32>
    %160 = arith.mulf %158, %159 : vector<2x32xf32>
    %cst_54 = arith.constant 0.000000e+00 : f32
    %161 = vector.broadcast %cst_54 : f32 to vector<2x32xf32>
    %162 = arith.maximumf %160, %161 : vector<2x32xf32>
    %cst_55 = arith.constant dense<0.000000e+00> : vector<2xf32>
    %163 = vector.multi_reduction <add>, %162, %cst_55 [1] : vector<2x32xf32> to vector<2xf32>
    %164 = vector.shape_cast %163 : vector<2xf32> to vector<2x1xf32>
    %cst_56 = arith.constant 3.200000e+01 : f32
    %165 = vector.broadcast %cst_56 : f32 to vector<2x1xf32>
    %166 = arith.divf %164, %165 : vector<2x1xf32>
    %167 = vector.broadcast %166 : vector<2x1xf32> to vector<2x32xf32>
    %168 = arith.subf %162, %167 : vector<2x32xf32>
    %169 = arith.mulf %168, %168 : vector<2x32xf32>
    %cst_57 = arith.constant dense<0.000000e+00> : vector<2xf32>
    %170 = vector.multi_reduction <add>, %169, %cst_57 [1] : vector<2x32xf32> to vector<2xf32>
    %171 = vector.shape_cast %170 : vector<2xf32> to vector<2x1xf32>
    %cst_58 = arith.constant 3.200000e+01 : f32
    %172 = vector.broadcast %cst_58 : f32 to vector<2x1xf32>
    %173 = arith.divf %171, %172 : vector<2x1xf32>
    %cst_59 = arith.constant 9.99999974E-6 : f32
    %174 = vector.broadcast %cst_59 : f32 to vector<2x1xf32>
    %175 = arith.addf %173, %174 : vector<2x1xf32>
    %176 = math.rsqrt %175 : vector<2x1xf32>
    %177 = vector.broadcast %176 : vector<2x1xf32> to vector<2x32xf32>
    %178 = arith.mulf %168, %177 : vector<2x32xf32>
    %c0_60 = arith.constant 0 : index
    %c0_61 = arith.constant 0 : index
    %179 = vector.load %arg12[%c0_60, %c0_61] : memref<1x32xf32, #tpu.memory_space<vmem>>, vector<1x32xf32>
    %180 = vector.broadcast %179 : vector<1x32xf32> to vector<2x32xf32>
    %181 = arith.mulf %178, %180 : vector<2x32xf32>
    %c0_62 = arith.constant 0 : index
    %c0_63 = arith.constant 0 : index
    %182 = vector.load %arg13[%c0_62, %c0_63] : memref<1x32xf32, #tpu.memory_space<vmem>>, vector<1x32xf32>
    %183 = vector.broadcast %182 : vector<1x32xf32> to vector<2x32xf32>
    %184 = arith.addf %181, %183 : vector<2x32xf32>
    %c0_64 = arith.constant 0 : index
    %c0_65 = arith.constant 0 : index
    %185 = vector.load %arg14[%c0_64, %c0_65] : memref<2x32xf32, #tpu.memory_space<vmem>>, vector<2x32xf32>
    tpu.vector_store %arg14[%c0_64, %c0_65], %184 {strides = array<i32>} : memref<2x32xf32, #tpu.memory_space<vmem>>, vector<2x32xf32>,
    return
  }
}

module attributes {stable_mosaic.version = 11 : i64} {
  func.func @_linear_kernel(%arg0: memref<1x96xf32, #tpu.memory_space<vmem>>, %arg1: memref<96x1xf32, #tpu.memory_space<vmem>>, %arg2: memref<1x1xf32, #tpu.memory_space<vmem>>, %arg3: memref<1x1xf32, #tpu.memory_space<vmem>>) attributes {dimension_semantics = [], scalar_prefetch = 0 : i64, scratch_operands = 0 : i64, tpu.core_type = #tpu.core_type<tc>} {
    %c0 = arith.constant 0 : index
    %c0_0 = arith.constant 0 : index
    %0 = vector.load %arg0[%c0, %c0_0] : memref<1x96xf32, #tpu.memory_space<vmem>>, vector<1x96xf32>
    %c0_1 = arith.constant 0 : index
    %c0_2 = arith.constant 0 : index
    %1 = vector.load %arg1[%c0_1, %c0_2] : memref<96x1xf32, #tpu.memory_space<vmem>>, vector<96x1xf32>
    %cst = arith.constant dense<0.000000e+00> : vector<1x1xf32>
    %2 = tpu.matmul %0, %1, %cst {dimension_numbers = #tpu.dot_dimension_numbers<[1], [0], [0], [1], [0, 0, 1, 1], [], []>} : vector<1x96xf32>, vector<96x1xf32>, vector<1x1xf32> -> vector<1x1xf32>
    %c0_3 = arith.constant 0 : index
    %c0_4 = arith.constant 0 : index
    %3 = vector.load %arg2[%c0_3, %c0_4] : memref<1x1xf32, #tpu.memory_space<vmem>>, vector<1x1xf32>
    %4 = arith.addf %2, %3 : vector<1x1xf32>
    %c0_5 = arith.constant 0 : index
    %c0_6 = arith.constant 0 : index
    %5 = vector.load %arg3[%c0_5, %c0_6] : memref<1x1xf32, #tpu.memory_space<vmem>>, vector<1x1xf32>
    tpu.vector_store %arg3[%c0_5, %c0_6], %4 {strides = array<i32>} : memref<1x1xf32, #tpu.memory_space<vmem>>, vector<1x1xf32>,
    return
  }
}

</mosaic_0001>

<llo_original>
// kernel: model_forward.44
$region0: #{model_forward.44}
  #allocation0 [shape = 'u32[]', space=smem, size = 0x4, offset = 0x4, fixed_abs, tag = 'smem constant byte address 0x4 - core index']
  #allocation1 [shape = 'u32[144,128]{1,0:T(1,128)}', space=vmem, size = 0x12000, scoped, tag = 'internal scratch']
  %s0 = inlined_call_operand.vmem [shape: f32[6,32], index: 0, kind: input, shape index: {}]
  %s1 = inlined_call_operand.vmem [shape: bf16[32,96], index: 1, kind: input, shape index: {}]
  %s2 = inlined_call_operand.vmem [shape: f32[1,96], index: 2, kind: input, shape index: {}]
  %s3 = inlined_call_operand.vmem [shape: f32[6,96], index: 3, kind: output, shape index: {}]
  %s4 = sld [smem:[#allocation0]]
  $region22: #{model_forward.44} parent=0
    _
  %s6 = ssub.s32 1, %s4
  %s7 = scalar_select 0, %s6, %s4
  // Predicated region
  $region2: #{model_forward.44} parent=0 // pred_check
    _
  $region3: #{model_forward.44} parent=0 // pred_check_branch
    %9 = sbr.rel (0) target = $region5
  $region4: #{model_forward.44} parent=0 // pred_region
    _
  $region5: #{model_forward.44} parent=0 // pred_fallthru
    _
  // Predicated region
  $region6: #{model_forward.44} parent=0 // pred_check
    _
  $region7: #{model_forward.44} parent=0 // pred_check_branch
    %11 = sbr.rel (0) target = $region9
  $region8: #{model_forward.44} parent=0 // pred_region
    _
  $region9: #{model_forward.44} parent=0 // pred_fallthru
    _
  // Predicated region
  $region10: #{model_forward.44} parent=0 // pred_check
    _
  $region11: #{model_forward.44} parent=0 // pred_check_branch
    %13 = sbr.rel (0) target = $region13
  $region12: #{model_forward.44} parent=0 // pred_region
    _
  $region13: #{model_forward.44} parent=0 // pred_fallthru
    _
  %v15 = vld [vmem:[%s0] sm:$0x3f]
  %v16 = vpack.c.bf16 %v15, %v15
  %v17 = vld [vmem:[%s1] sm:$0xf]
  %v18 = vld [vmem:[%s1 + $0x4] sm:$0xf]
  %v19 = vld [vmem:[%s1 + $0x8] sm:$0xf]
  %v20 = vld [vmem:[%s1 + $0xc] sm:$0xf]
  %v21 = vld [vmem:[%s2] sm:$0x1]
  %v23 = vlaneseq
  %v24 = vshrl.u32 %v23, 7
  %v25 = vsub.s32 0, %v24
  %v26 = vrot.slane %v21, %v25
  %v32 = vunpack.c.l.b16 %v17
  %v33 = vunpack.c.l.b16 %v18
  %v34 = vunpack.c.l.b16 %v19
  %v35 = vunpack.c.l.b16 %v20
  %v36 = vpack.c.b16 %v33, %v32
  %v37 = vpack.c.b16 %v35, %v34
  %vm40 = vcmask 261120
  %v42 = vsel %vm40, %v16, 0
  %44 = vmatprep.subr.bf16.mxu0 0
  %45 = vmatpush1.bf16.msra.mxu0 0
  %46 = vmatprep.subr.bf16.mxu0 0
  %47 = vmatpush1.bf16.msra.mxu0 0
  %48 = vmatprep.subr.bf16.mxu0 0
  %49 = vmatpush1.bf16.msra.mxu0 0
  %50 = vmatprep.subr.bf16.mxu0 0
  %51 = vmatpush1.bf16.msra.mxu0 0
  %52 = vmatprep.subr.bf16.mxu0 0
  %53 = vmatpush1.bf16.msra.mxu0 0
  %54 = vmatprep.subr.bf16.mxu0 0
  %55 = vmatpush1.bf16.msra.mxu0 0
  %56 = vmatprep.subr.bf16.mxu0 0
  %57 = vmatpush1.bf16.msra.mxu0 %v37
  %58 = vmatprep.subr.bf16.mxu0 0
  %59 = vmatpush1.bf16.msra.mxu0 %v36
  %60 = vmatprep.subr.bf16.mxu0 0
  %61 = vmatpush2.bf16.msra.mxu0 0
  %62 = vmatprep.subr.bf16.mxu0 0
  %63 = vmatpush2.bf16.msra.mxu0 0
  %64 = vmatprep.subr.bf16.mxu0 0
  %65 = vmatpush2.bf16.msra.mxu0 0
  %66 = vmatprep.subr.bf16.mxu0 0
  %67 = vmatpush2.bf16.msra.mxu0 0
  %68 = vmatprep.subr.bf16.mxu0 0
  %69 = vmatpush2.bf16.msra.mxu0 0
  %70 = vmatprep.subr.bf16.mxu0 0
  %71 = vmatpush2.bf16.msra.mxu0 0
  %72 = vmatprep.subr.bf16.mxu0 0
  %73 = vmatpush2.bf16.msra.mxu0 0
  %74 = vmatprep.subr.bf16.mxu0 0
  %75 = vmatpush2.bf16.msra.mxu0 0
  %76 = vmatprep.mubr.bf16.mxu0 0
  %77 = vmatmul.mubr.bf16.gmra.mxu0 %v42
  %v78 = vpop.f32.mrf.mxu0
  %v79 = vadd.f32 %v26, %v78
  %v80 = vpop.f32.mrf.mxu0
  %v81 = vpop.f32.mrf.mxu0
  %v82 = vpop.f32.mrf.mxu0
  %83 = vdwg.mxu0
  %vm84 = vcmask 783360
  %85 = vst.msk [vmem:[%s3] sm:$0x3f] %vm84, %v79
  // Predicated region
  $region14: #{model_forward.44} parent=0 // pred_check
    _
  $region15: #{model_forward.44} parent=0 // pred_check_branch
    %87 = sbr.rel (0) target = $region17
  $region16: #{model_forward.44} parent=0 // pred_region
    _
  $region17: #{model_forward.44} parent=0 // pred_fallthru
    _
  // Predicated region
  $region18: #{model_forward.44} parent=0 // pred_check
    _
  $region19: #{model_forward.44} parent=0 // pred_check_branch
    %89 = sbr.rel (0) target = $region21
  $region20: #{model_forward.44} parent=0 // pred_region
    _
  $region21: #{model_forward.44} parent=0 // pred_fallthru
    _

// kernel: model_forward.30
$region0: #{model_forward.30}
  #allocation0 [shape = 'u32[]', space=smem, size = 0x4, offset = 0x4, fixed_abs, tag = 'smem constant byte address 0x4 - core index']
  #allocation1 [shape = 'u32[144,128]{1,0:T(1,128)}', space=vmem, size = 0x12000, scoped, tag = 'internal scratch']
  %s0 = inlined_call_operand.vmem [shape: f32[8,16], index: 0, kind: input, shape index: {}]
  %s1 = inlined_call_operand.vmem [shape: bf16[16,32], index: 1, kind: input, shape index: {}]
  %s2 = inlined_call_operand.vmem [shape: f32[1,32], index: 2, kind: input, shape index: {}]
  %s3 = inlined_call_operand.vmem [shape: f32[8,32], index: 3, kind: output, shape index: {}]
  %s4 = sld [smem:[#allocation0]]
  $region22: #{model_forward.30} parent=0
    _
  %s6 = ssub.s32 1, %s4
  %s7 = scalar_select 0, %s6, %s4
  // Predicated region
  $region2: #{model_forward.30} parent=0 // pred_check
    _
  $region3: #{model_forward.30} parent=0 // pred_check_branch
    %9 = sbr.rel (0) target = $region5
  $region4: #{model_forward.30} parent=0 // pred_region
    _
  $region5: #{model_forward.30} parent=0 // pred_fallthru
    _
  // Predicated region
  $region6: #{model_forward.30} parent=0 // pred_check
    _
  $region7: #{model_forward.30} parent=0 // pred_check_branch
    %11 = sbr.rel (0) target = $region9
  $region8: #{model_forward.30} parent=0 // pred_region
    _
  $region9: #{model_forward.30} parent=0 // pred_fallthru
    _
  // Predicated region
  $region10: #{model_forward.30} parent=0 // pred_check
    _
  $region11: #{model_forward.30} parent=0 // pred_check_branch
    %13 = sbr.rel (0) target = $region13
  $region12: #{model_forward.30} parent=0 // pred_region
    _
  $region13: #{model_forward.30} parent=0 // pred_fallthru
    _
  %v15 = vld [vmem:[%s0] sm:$0xff]
  %v16 = vpack.c.bf16 %v15, %v15
  %v17 = vld [vmem:[%s1] sm:$0xf]
  %v18 = vld [vmem:[%s1 + $0x4] sm:$0xf]
  %v19 = vld [vmem:[%s2] sm:$0x1]
  %v21 = vlaneseq
  %v22 = vshrl.u32 %v21, 7
  %v23 = vsub.s32 0, %v22
  %v24 = vrot.slane %v19, %v23
  %v28 = vunpack.c.l.b16 %v17
  %v29 = vunpack.c.l.b16 %v18
  %v30 = vpack.c.b16 %v29, %v28
  %vm32 = vcmask 130048
  %v34 = vsel %vm32, %v16, 0
  %36 = vmatprep.subr.bf16.mxu0 0
  %37 = vmatpush1.bf16.msra.mxu0 0
  %38 = vmatprep.subr.bf16.mxu0 0
  %39 = vmatpush1.bf16.msra.mxu0 0
  %40 = vmatprep.subr.bf16.mxu0 0
  %41 = vmatpush1.bf16.msra.mxu0 0
  %42 = vmatprep.subr.bf16.mxu0 0
  %43 = vmatpush1.bf16.msra.mxu0 0
  %44 = vmatprep.subr.bf16.mxu0 0
  %45 = vmatpush1.bf16.msra.mxu0 0
  %46 = vmatprep.subr.bf16.mxu0 0
  %47 = vmatpush1.bf16.msra.mxu0 0
  %48 = vmatprep.subr.bf16.mxu0 0
  %49 = vmatpush1.bf16.msra.mxu0 0
  %50 = vmatprep.subr.bf16.mxu0 0
  %51 = vmatpush1.bf16.msra.mxu0 %v30
  %52 = vmatprep.subr.bf16.mxu0 0
  %53 = vmatpush2.bf16.msra.mxu0 0
  %54 = vmatprep.subr.bf16.mxu0 0
  %55 = vmatpush2.bf16.msra.mxu0 0
  %56 = vmatprep.subr.bf16.mxu0 0
  %57 = vmatpush2.bf16.msra.mxu0 0
  %58 = vmatprep.subr.bf16.mxu0 0
  %59 = vmatpush2.bf16.msra.mxu0 0
  %60 = vmatprep.subr.bf16.mxu0 0
  %61 = vmatpush2.bf16.msra.mxu0 0
  %62 = vmatprep.subr.bf16.mxu0 0
  %63 = vmatpush2.bf16.msra.mxu0 0
  %64 = vmatprep.subr.bf16.mxu0 0
  %65 = vmatpush2.bf16.msra.mxu0 0
  %66 = vmatprep.subr.bf16.mxu0 0
  %67 = vmatpush2.bf16.msra.mxu0 0
  %68 = vmatprep.mubr.bf16.mxu0 0
  %69 = vmatmul.mubr.bf16.gmra.mxu0 %v34
  %v70 = vpop.f32.mrf.mxu0
  %v71 = vadd.f32 %v24, %v70
  %v72 = vpop.f32.mrf.mxu0
  %v73 = vpop.f32.mrf.mxu0
  %v74 = vpop.f32.mrf.mxu0
  %75 = vdwg.mxu0
  %vm76 = vcmask 261120
  %77 = vst.msk [vmem:[%s3] sm:$0xff] %vm76, %v71
  // Predicated region
  $region14: #{model_forward.30} parent=0 // pred_check
    _
  $region15: #{model_forward.30} parent=0 // pred_check_branch
    %79 = sbr.rel (0) target = $region17
  $region16: #{model_forward.30} parent=0 // pred_region
    _
  $region17: #{model_forward.30} parent=0 // pred_fallthru
    _
  // Predicated region
  $region18: #{model_forward.30} parent=0 // pred_check
    _
  $region19: #{model_forward.30} parent=0 // pred_check_branch
    %81 = sbr.rel (0) target = $region21
  $region20: #{model_forward.30} parent=0 // pred_region
    _
  $region21: #{model_forward.30} parent=0 // pred_fallthru
    _

// kernel: model_forward.43
$region0: #{model_forward.43}
  #allocation0 [shape = 'u32[]', space=smem, size = 0x4, offset = 0x4, fixed_abs, tag = 'smem constant byte address 0x4 - core index']
  #allocation1 [shape = 'u32[144,128]{1,0:T(1,128)}', space=vmem, size = 0x12000, scoped, tag = 'internal scratch']
  %s0 = inlined_call_operand.vmem [shape: f32[8,32], index: 0, kind: input, shape index: {}]
  %s1 = inlined_call_operand.vmem [shape: bf16[32,96], index: 1, kind: input, shape index: {}]
  %s2 = inlined_call_operand.vmem [shape: f32[1,96], index: 2, kind: input, shape index: {}]
  %s3 = inlined_call_operand.vmem [shape: f32[8,96], index: 3, kind: output, shape index: {}]
  %s4 = sld [smem:[#allocation0]]
  $region22: #{model_forward.43} parent=0
    _
  %s6 = ssub.s32 1, %s4
  %s7 = scalar_select 0, %s6, %s4
  // Predicated region
  $region2: #{model_forward.43} parent=0 // pred_check
    _
  $region3: #{model_forward.43} parent=0 // pred_check_branch
    %9 = sbr.rel (0) target = $region5
  $region4: #{model_forward.43} parent=0 // pred_region
    _
  $region5: #{model_forward.43} parent=0 // pred_fallthru
    _
  // Predicated region
  $region6: #{model_forward.43} parent=0 // pred_check
    _
  $region7: #{model_forward.43} parent=0 // pred_check_branch
    %11 = sbr.rel (0) target = $region9
  $region8: #{model_forward.43} parent=0 // pred_region
    _
  $region9: #{model_forward.43} parent=0 // pred_fallthru
    _
  // Predicated region
  $region10: #{model_forward.43} parent=0 // pred_check
    _
  $region11: #{model_forward.43} parent=0 // pred_check_branch
    %13 = sbr.rel (0) target = $region13
  $region12: #{model_forward.43} parent=0 // pred_region
    _
  $region13: #{model_forward.43} parent=0 // pred_fallthru
    _
  %v15 = vld [vmem:[%s0] sm:$0xff]
  %v16 = vpack.c.bf16 %v15, %v15
  %v17 = vld [vmem:[%s1] sm:$0xf]
  %v18 = vld [vmem:[%s1 + $0x4] sm:$0xf]
  %v19 = vld [vmem:[%s1 + $0x8] sm:$0xf]
  %v20 = vld [vmem:[%s1 + $0xc] sm:$0xf]
  %v21 = vld [vmem:[%s2] sm:$0x1]
  %v23 = vlaneseq
  %v24 = vshrl.u32 %v23, 7
  %v25 = vsub.s32 0, %v24
  %v26 = vrot.slane %v21, %v25
  %v32 = vunpack.c.l.b16 %v17
  %v33 = vunpack.c.l.b16 %v18
  %v34 = vunpack.c.l.b16 %v19
  %v35 = vunpack.c.l.b16 %v20
  %v36 = vpack.c.b16 %v33, %v32
  %v37 = vpack.c.b16 %v35, %v34
  %vm40 = vcmask 261120
  %v42 = vsel %vm40, %v16, 0
  %44 = vmatprep.subr.bf16.mxu0 0
  %45 = vmatpush1.bf16.msra.mxu0 0
  %46 = vmatprep.subr.bf16.mxu0 0
  %47 = vmatpush1.bf16.msra.mxu0 0
  %48 = vmatprep.subr.bf16.mxu0 0
  %49 = vmatpush1.bf16.msra.mxu0 0
  %50 = vmatprep.subr.bf16.mxu0 0
  %51 = vmatpush1.bf16.msra.mxu0 0
  %52 = vmatprep.subr.bf16.mxu0 0
  %53 = vmatpush1.bf16.msra.mxu0 0
  %54 = vmatprep.subr.bf16.mxu0 0
  %55 = vmatpush1.bf16.msra.mxu0 0
  %56 = vmatprep.subr.bf16.mxu0 0
  %57 = vmatpush1.bf16.msra.mxu0 %v37
  %58 = vmatprep.subr.bf16.mxu0 0
  %59 = vmatpush1.bf16.msra.mxu0 %v36
  %60 = vmatprep.subr.bf16.mxu0 0
  %61 = vmatpush2.bf16.msra.mxu0 0
  %62 = vmatprep.subr.bf16.mxu0 0
  %63 = vmatpush2.bf16.msra.mxu0 0
  %64 = vmatprep.subr.bf16.mxu0 0
  %65 = vmatpush2.bf16.msra.mxu0 0
  %66 = vmatprep.subr.bf16.mxu0 0
  %67 = vmatpush2.bf16.msra.mxu0 0
  %68 = vmatprep.subr.bf16.mxu0 0
  %69 = vmatpush2.bf16.msra.mxu0 0
  %70 = vmatprep.subr.bf16.mxu0 0
  %71 = vmatpush2.bf16.msra.mxu0 0
  %72 = vmatprep.subr.bf16.mxu0 0
  %73 = vmatpush2.bf16.msra.mxu0 0
  %74 = vmatprep.subr.bf16.mxu0 0
  %75 = vmatpush2.bf16.msra.mxu0 0
  %76 = vmatprep.mubr.bf16.mxu0 0
  %77 = vmatmul.mubr.bf16.gmra.mxu0 %v42
  %v78 = vpop.f32.mrf.mxu0
  %v79 = vadd.f32 %v26, %v78
  %v80 = vpop.f32.mrf.mxu0
  %v81 = vpop.f32.mrf.mxu0
  %v82 = vpop.f32.mrf.mxu0
  %83 = vdwg.mxu0
  %vm84 = vcmask 785408
  %85 = vst.msk [vmem:[%s3] sm:$0xff] %vm84, %v79
  // Predicated region
  $region14: #{model_forward.43} parent=0 // pred_check
    _
  $region15: #{model_forward.43} parent=0 // pred_check_branch
    %87 = sbr.rel (0) target = $region17
  $region16: #{model_forward.43} parent=0 // pred_region
    _
  $region17: #{model_forward.43} parent=0 // pred_fallthru
    _
  // Predicated region
  $region18: #{model_forward.43} parent=0 // pred_check
    _
  $region19: #{model_forward.43} parent=0 // pred_check_branch
    %89 = sbr.rel (0) target = $region21
  $region20: #{model_forward.43} parent=0 // pred_region
    _
  $region21: #{model_forward.43} parent=0 // pred_fallthru
    _

// kernel: model_forward.45
$region0: #{model_forward.45}
  #allocation0 [shape = 'u32[]', space=smem, size = 0x4, offset = 0x4, fixed_abs, tag = 'smem constant byte address 0x4 - core index']
  #allocation1 [shape = 'u32[144,128]{1,0:T(1,128)}', space=vmem, size = 0x12000, scoped, tag = 'internal scratch']
  %s0 = inlined_call_operand.vmem [shape: f32[2,32], index: 0, kind: input, shape index: {}]
  %s1 = inlined_call_operand.vmem [shape: bf16[32,96], index: 1, kind: input, shape index: {}]
  %s2 = inlined_call_operand.vmem [shape: f32[1,96], index: 2, kind: input, shape index: {}]
  %s3 = inlined_call_operand.vmem [shape: f32[2,96], index: 3, kind: output, shape index: {}]
  %s4 = sld [smem:[#allocation0]]
  $region22: #{model_forward.45} parent=0
    _
  %s6 = ssub.s32 1, %s4
  %s7 = scalar_select 0, %s6, %s4
  // Predicated region
  $region2: #{model_forward.45} parent=0 // pred_check
    _
  $region3: #{model_forward.45} parent=0 // pred_check_branch
    %9 = sbr.rel (0) target = $region5
  $region4: #{model_forward.45} parent=0 // pred_region
    _
  $region5: #{model_forward.45} parent=0 // pred_fallthru
    _
  // Predicated region
  $region6: #{model_forward.45} parent=0 // pred_check
    _
  $region7: #{model_forward.45} parent=0 // pred_check_branch
    %11 = sbr.rel (0) target = $region9
  $region8: #{model_forward.45} parent=0 // pred_region
    _
  $region9: #{model_forward.45} parent=0 // pred_fallthru
    _
  // Predicated region
  $region10: #{model_forward.45} parent=0 // pred_check
    _
  $region11: #{model_forward.45} parent=0 // pred_check_branch
    %13 = sbr.rel (0) target = $region13
  $region12: #{model_forward.45} parent=0 // pred_region
    _
  $region13: #{model_forward.45} parent=0 // pred_fallthru
    _
  %v15 = vld [vmem:[%s0] sm:$0x3]
  %v16 = vpack.c.bf16 %v15, %v15
  %v17 = vld [vmem:[%s1] sm:$0xf]
  %v18 = vld [vmem:[%s1 + $0x4] sm:$0xf]
  %v19 = vld [vmem:[%s1 + $0x8] sm:$0xf]
  %v20 = vld [vmem:[%s1 + $0xc] sm:$0xf]
  %v21 = vld [vmem:[%s2] sm:$0x1]
  %v23 = vlaneseq
  %v24 = vshrl.u32 %v23, 7
  %v25 = vsub.s32 0, %v24
  %v26 = vrot.slane %v21, %v25
  %v32 = vunpack.c.l.b16 %v17
  %v33 = vunpack.c.l.b16 %v18
  %v34 = vunpack.c.l.b16 %v19
  %v35 = vunpack.c.l.b16 %v20
  %v36 = vpack.c.b16 %v33, %v32
  %v37 = vpack.c.b16 %v35, %v34
  %vm40 = vcmask 261120
  %v42 = vsel %vm40, %v16, 0
  %44 = vmatprep.subr.bf16.mxu0 0
  %45 = vmatpush1.bf16.msra.mxu0 0
  %46 = vmatprep.subr.bf16.mxu0 0
  %47 = vmatpush1.bf16.msra.mxu0 0
  %48 = vmatprep.subr.bf16.mxu0 0
  %49 = vmatpush1.bf16.msra.mxu0 0
  %50 = vmatprep.subr.bf16.mxu0 0
  %51 = vmatpush1.bf16.msra.mxu0 0
  %52 = vmatprep.subr.bf16.mxu0 0
  %53 = vmatpush1.bf16.msra.mxu0 0
  %54 = vmatprep.subr.bf16.mxu0 0
  %55 = vmatpush1.bf16.msra.mxu0 0
  %56 = vmatprep.subr.bf16.mxu0 0
  %57 = vmatpush1.bf16.msra.mxu0 %v37
  %58 = vmatprep.subr.bf16.mxu0 0
  %59 = vmatpush1.bf16.msra.mxu0 %v36
  %60 = vmatprep.subr.bf16.mxu0 0
  %61 = vmatpush2.bf16.msra.mxu0 0
  %62 = vmatprep.subr.bf16.mxu0 0
  %63 = vmatpush2.bf16.msra.mxu0 0
  %64 = vmatprep.subr.bf16.mxu0 0
  %65 = vmatpush2.bf16.msra.mxu0 0
  %66 = vmatprep.subr.bf16.mxu0 0
  %67 = vmatpush2.bf16.msra.mxu0 0
  %68 = vmatprep.subr.bf16.mxu0 0
  %69 = vmatpush2.bf16.msra.mxu0 0
  %70 = vmatprep.subr.bf16.mxu0 0
  %71 = vmatpush2.bf16.msra.mxu0 0
  %72 = vmatprep.subr.bf16.mxu0 0
  %73 = vmatpush2.bf16.msra.mxu0 0
  %74 = vmatprep.subr.bf16.mxu0 0
  %75 = vmatpush2.bf16.msra.mxu0 0
  %76 = vmatprep.mubr.bf16.mxu0 0
  %77 = vmatmul.mubr.bf16.gmra.mxu0 %v42
  %v78 = vpop.f32.mrf.mxu0
  %v79 = vadd.f32 %v26, %v78
  %v80 = vpop.f32.mrf.mxu0
  %v81 = vpop.f32.mrf.mxu0
  %v82 = vpop.f32.mrf.mxu0
  %83 = vdwg.mxu0
  %vm84 = vcmask 779264
  %85 = vst.msk [vmem:[%s3] sm:$0x3] %vm84, %v79
  // Predicated region
  $region14: #{model_forward.45} parent=0 // pred_check
    _
  $region15: #{model_forward.45} parent=0 // pred_check_branch
    %87 = sbr.rel (0) target = $region17
  $region16: #{model_forward.45} parent=0 // pred_region
    _
  $region17: #{model_forward.45} parent=0 // pred_fallthru
    _
  // Predicated region
  $region18: #{model_forward.45} parent=0 // pred_check
    _
  $region19: #{model_forward.45} parent=0 // pred_check_branch
    %89 = sbr.rel (0) target = $region21
  $region20: #{model_forward.45} parent=0 // pred_region
    _
  $region21: #{model_forward.45} parent=0 // pred_fallthru
    _

// kernel: model_forward.48
$region0: #{model_forward.48}
  #allocation0 [shape = 'u32[]', space=smem, size = 0x4, offset = 0x4, fixed_abs, tag = 'smem constant byte address 0x4 - core index']
  #allocation1 [shape = 'u32[144,128]{1,0:T(1,128)}', space=vmem, size = 0x12000, scoped, tag = 'internal scratch']
  #allocation2 [shape = 's32[1]{0:T(128)S(6)}', space=smem, size = 0x200, scoped, tag = 'scoped memory for model_forward.48']
  %s0 = inlined_call_operand.<no memory space> [shape: s32[1], index: 0, kind: input, shape index: {}]
  %s1 = inlined_call_operand.vmem [shape: f32[8,96], index: 1, kind: input, shape index: {}, may-alias: {1,2}]
  %s2 = inlined_call_operand.vmem [shape: f32[8,96], index: 2, kind: input, shape index: {}, may-alias: {1,2}]
  %s3 = inlined_call_operand.vmem [shape: f32[8,8], index: 3, kind: input, shape index: {}]
  %s4 = inlined_call_operand.vmem [shape: s32[8,8], index: 4, kind: input, shape index: {}]
  %s5 = inlined_call_operand.vmem [shape: f32[2,16], index: 5, kind: input, shape index: {}]
  %s6 = inlined_call_operand.vmem [shape: f32[32,16], index: 6, kind: input, shape index: {}]
  %s7 = inlined_call_operand.vmem [shape: f32[6,96], index: 7, kind: input, shape index: {}]
  %s8 = inlined_call_operand.vmem [shape: f32[8,6], index: 8, kind: input, shape index: {}]
  %s9 = inlined_call_operand.vmem [shape: s32[8,6], index: 9, kind: input, shape index: {}]
  %s10 = inlined_call_operand.vmem [shape: f32[2,16], index: 10, kind: input, shape index: {}]
  %s11 = inlined_call_operand.vmem [shape: f32[32,16], index: 11, kind: input, shape index: {}]
  %s12 = inlined_call_operand.vmem [shape: f32[1,32], index: 12, kind: input, shape index: {}]
  %s13 = inlined_call_operand.vmem [shape: f32[1,32], index: 13, kind: input, shape index: {}]
  %s14 = inlined_call_operand.vmem [shape: f32[8,32], index: 14, kind: output, shape index: {}]
  %s15 = sld [smem:[#allocation0]]
  $region66: #{model_forward.48} parent=0
    _
  %s17 = ssub.s32 1, %s15
  %s18 = scalar_select 0, %s17, %s15
  %19 = sst [smem:[#allocation2]] %s0
  // Predicated region
  $region2: #{model_forward.48} parent=0 // pred_check
    _
  $region3: #{model_forward.48} parent=0 // pred_check_branch
    %21 = sbr.rel (0) target = $region5
  $region4: #{model_forward.48} parent=0 // pred_region
    _
  $region5: #{model_forward.48} parent=0 // pred_fallthru
    _
  // Predicated region
  $region6: #{model_forward.48} parent=0 // pred_check
    _
  $region7: #{model_forward.48} parent=0 // pred_check_branch
    %23 = sbr.rel (0) target = $region9
  $region8: #{model_forward.48} parent=0 // pred_region
    _
  $region9: #{model_forward.48} parent=0 // pred_fallthru
    _
  // Predicated region
  $region10: #{model_forward.48} parent=0 // pred_check
    _
  $region11: #{model_forward.48} parent=0 // pred_check_branch
    %25 = sbr.rel (0) target = $region13
  $region12: #{model_forward.48} parent=0 // pred_region
    _
  $region13: #{model_forward.48} parent=0 // pred_fallthru
    _
  // Predicated region
  $region14: #{model_forward.48} parent=0 // pred_check
    _
  $region15: #{model_forward.48} parent=0 // pred_check_branch
    %27 = sbr.rel (0) target = $region17
  $region16: #{model_forward.48} parent=0 // pred_region
    _
  $region17: #{model_forward.48} parent=0 // pred_fallthru
    _
  // Predicated region
  $region18: #{model_forward.48} parent=0 // pred_check
    _
  $region19: #{model_forward.48} parent=0 // pred_check_branch
    %29 = sbr.rel (0) target = $region21
  $region20: #{model_forward.48} parent=0 // pred_region
    _
  $region21: #{model_forward.48} parent=0 // pred_fallthru
    _
  // Predicated region
  $region22: #{model_forward.48} parent=0 // pred_check
    _
  $region23: #{model_forward.48} parent=0 // pred_check_branch
    %31 = sbr.rel (0) target = $region25
  $region24: #{model_forward.48} parent=0 // pred_region
    _
  $region25: #{model_forward.48} parent=0 // pred_fallthru
    _
  // Predicated region
  $region26: #{model_forward.48} parent=0 // pred_check
    _
  $region27: #{model_forward.48} parent=0 // pred_check_branch
    %33 = sbr.rel (0) target = $region29
  $region28: #{model_forward.48} parent=0 // pred_region
    _
  $region29: #{model_forward.48} parent=0 // pred_fallthru
    _
  // Predicated region
  $region30: #{model_forward.48} parent=0 // pred_check
    _
  $region31: #{model_forward.48} parent=0 // pred_check_branch
    %35 = sbr.rel (0) target = $region33
  $region32: #{model_forward.48} parent=0 // pred_region
    _
  $region33: #{model_forward.48} parent=0 // pred_fallthru
    _
  // Predicated region
  $region34: #{model_forward.48} parent=0 // pred_check
    _
  $region35: #{model_forward.48} parent=0 // pred_check_branch
    %37 = sbr.rel (0) target = $region37
  $region36: #{model_forward.48} parent=0 // pred_region
    _
  $region37: #{model_forward.48} parent=0 // pred_fallthru
    _
  // Predicated region
  $region38: #{model_forward.48} parent=0 // pred_check
    _
  $region39: #{model_forward.48} parent=0 // pred_check_branch
    %39 = sbr.rel (0) target = $region41
  $region40: #{model_forward.48} parent=0 // pred_region
    _
  $region41: #{model_forward.48} parent=0 // pred_fallthru
    _
  // Predicated region
  $region42: #{model_forward.48} parent=0 // pred_check
    _
  $region43: #{model_forward.48} parent=0 // pred_check_branch
    %41 = sbr.rel (0) target = $region45
  $region44: #{model_forward.48} parent=0 // pred_region
    _
  $region45: #{model_forward.48} parent=0 // pred_fallthru
    _
  // Predicated region
  $region46: #{model_forward.48} parent=0 // pred_check
    _
  $region47: #{model_forward.48} parent=0 // pred_check_branch
    %43 = sbr.rel (0) target = $region49
  $region48: #{model_forward.48} parent=0 // pred_region
    _
  $region49: #{model_forward.48} parent=0 // pred_fallthru
    _
  // Predicated region
  $region50: #{model_forward.48} parent=0 // pred_check
    _
  $region51: #{model_forward.48} parent=0 // pred_check_branch
    %45 = sbr.rel (0) target = $region53
  $region52: #{model_forward.48} parent=0 // pred_region
    _
  $region53: #{model_forward.48} parent=0 // pred_fallthru
    _
  // Predicated region
  $region54: #{model_forward.48} parent=0 // pred_check
    _
  $region55: #{model_forward.48} parent=0 // pred_check_branch
    %47 = sbr.rel (0) target = $region57
  $region56: #{model_forward.48} parent=0 // pred_region
    _
  $region57: #{model_forward.48} parent=0 // pred_fallthru
    _
  %v49 = vld [vmem:[%s1] sm:$0xff]
  %s50 = sld [smem:[#allocation2]]
  %v51 = vld [vmem:[%s2] sm:$0xff]
  %v52 = vld [vmem:[%s3] sm:$0xff]
  %v53 = vld [vmem:[%s4] sm:$0xff]
  %v54 = vstv %s50
  %vm55 = vcmp.eq.s32.totalorder %v53, %v54
  %v56 = vsel %vm55, 1, 0
  %v57 = vcvt.s32.f32 %v56
  %v58 = vld [vmem:[%s5] sm:$0x3]
  %v59 = vld [vmem:[%s6] sm:$0xff]
  %v60 = vld [vmem:[%s6 + $0x8] sm:$0xff]
  %v61 = vld [vmem:[%s6 + $0x10] sm:$0xff]
  %v62 = vld [vmem:[%s6 + $0x18] sm:$0xff]
  %v63 = vpack.c.bf16 %v49, %v49
  %v64 = vpack.c.bf16 %v51, %v51
  %v65 = vpack.c.bf16 %v58, %v58
  %v66 = vpack.c.bf16 %v60, %v59
  %vm67 = vcmask 130048
  %v69 = vsel %vm67, %v65, 0
  %v72 = vsel %vm67, %v64, 0
  %74 = vmatprep.subr.bf16.mxu0 0
  %75 = vmatpush1.bf16.xpose.msra.mxu0 0
  %76 = vmatprep.subr.bf16.mxu0 0
  %77 = vmatpush1.bf16.xpose.msra.mxu0 0
  %78 = vmatprep.subr.bf16.mxu0 0
  %79 = vmatpush1.bf16.xpose.msra.mxu0 0
  %80 = vmatprep.subr.bf16.mxu0 0
  %81 = vmatpush1.bf16.xpose.msra.mxu0 0
  %82 = vmatprep.subr.bf16.mxu0 0
  %83 = vmatpush1.bf16.xpose.msra.mxu0 0
  %84 = vmatprep.subr.bf16.mxu0 0
  %85 = vmatpush1.bf16.xpose.msra.mxu0 0
  %86 = vmatprep.subr.bf16.mxu0 0
  %87 = vmatpush1.bf16.xpose.msra.mxu0 0
  %88 = vmatprep.subr.bf16.mxu0 0
  %89 = vmatpush1.bf16.xpose.msra.mxu0 %v72
  %90 = vmatprep.subr.bf16.mxu0 0
  %91 = vmatpush2.bf16.xpose.msra.mxu0 0
  %92 = vmatprep.subr.bf16.mxu0 0
  %93 = vmatpush2.bf16.xpose.msra.mxu0 0
  %94 = vmatprep.subr.bf16.mxu0 0
  %95 = vmatpush2.bf16.xpose.msra.mxu0 0
  %96 = vmatprep.subr.bf16.mxu0 0
  %97 = vmatpush2.bf16.xpose.msra.mxu0 0
  %98 = vmatprep.subr.bf16.mxu0 0
  %99 = vmatpush2.bf16.xpose.msra.mxu0 0
  %100 = vmatprep.subr.bf16.mxu0 0
  %101 = vmatpush2.bf16.xpose.msra.mxu0 0
  %102 = vmatprep.subr.bf16.mxu0 0
  %103 = vmatpush2.bf16.xpose.msra.mxu0 0
  %104 = vmatprep.subr.bf16.mxu0 0
  %105 = vmatpush2.bf16.xpose.msra.mxu0 0
  %106 = vmatprep.mubr.bf16.mxu0 0
  %107 = vmatmul.mubr.bf16.gmra.mxu0 %v69
  %v108 = vpop.f32.mrf.mxu0
  %v109 = vadd.f32 0.0, %v108
  %v110 = vpop.f32.mrf.mxu0
  %v111 = vpop.f32.mrf.mxu0
  %v112 = vpop.f32.mrf.mxu0
  %113 = vdwg.mxu0
  %v114 = vlaneseq
  %v115 = vshrl.u32 %v114, 7
  %v116 = vsub.s32 0, %v115
  %v117 = vrot.slane %v109, %v116
  %v118 = vmul.f32 %v52, %v117
  %120 = vrot.lane.b32.xlu0 %v63, 96
  %v121 = vpop.permute.xlu0 %120
  %v123 = vsel %vm67, %v121, 0
  %125 = vmatprep.subr.bf16.mxu0 0
  %126 = vmatpush1.bf16.xpose.msra.mxu0 0
  %127 = vmatprep.subr.bf16.mxu0 0
  %128 = vmatpush1.bf16.xpose.msra.mxu0 0
  %129 = vmatprep.subr.bf16.mxu0 0
  %130 = vmatpush1.bf16.xpose.msra.mxu0 0
  %131 = vmatprep.subr.bf16.mxu0 0
  %132 = vmatpush1.bf16.xpose.msra.mxu0 0
  %133 = vmatprep.subr.bf16.mxu0 0
  %134 = vmatpush1.bf16.xpose.msra.mxu0 0
  %135 = vmatprep.subr.bf16.mxu0 0
  %136 = vmatpush1.bf16.xpose.msra.mxu0 0
  %137 = vmatprep.subr.bf16.mxu0 0
  %138 = vmatpush1.bf16.xpose.msra.mxu0 0
  %139 = vmatprep.subr.bf16.mxu0 0
  %140 = vmatpush1.bf16.xpose.msra.mxu0 %v72
  %141 = vmatprep.subr.bf16.mxu0 0
  %142 = vmatpush2.bf16.xpose.msra.mxu0 0
  %143 = vmatprep.subr.bf16.mxu0 0
  %144 = vmatpush2.bf16.xpose.msra.mxu0 0
  %145 = vmatprep.subr.bf16.mxu0 0
  %146 = vmatpush2.bf16.xpose.msra.mxu0 0
  %147 = vmatprep.subr.bf16.mxu0 0
  %148 = vmatpush2.bf16.xpose.msra.mxu0 0
  %149 = vmatprep.subr.bf16.mxu0 0
  %150 = vmatpush2.bf16.xpose.msra.mxu0 0
  %151 = vmatprep.subr.bf16.mxu0 0
  %152 = vmatpush2.bf16.xpose.msra.mxu0 0
  %153 = vmatprep.subr.bf16.mxu0 0
  %154 = vmatpush2.bf16.xpose.msra.mxu0 0
  %155 = vmatprep.subr.bf16.mxu0 0
  %156 = vmatpush2.bf16.xpose.msra.mxu0 0
  %157 = vmatprep.mubr.bf16.mxu0 0
  %158 = vmatmul.mubr.bf16.gmra.mxu0 %v123
  %v159 = vpop.f32.mrf.mxu0
  %v160 = vadd.f32 %v118, %v159
  %v161 = vpop.f32.mrf.mxu0
  %v162 = vpop.f32.mrf.mxu0
  %v163 = vpop.f32.mrf.mxu0
  %164 = vdwg.mxu0
  %v165 = vmul.f32 %v160, 0.25
  %vm166 = vcmask 64512
  %v167 = vsel %vm166, %v165, -inf
  %168 = vmax.xlane.f32.xlu0 %v167
  %v169 = vpop.xlane.xlu0 %168
  %v170 = vsub.f32 %v165, %v169
  %v171 = vmul.f32 %v170, 1.442695
  %v172 = vpow.pop %v171
  %v173 = vmul.f32 %v172, %v57
  %v174 = vsel %vm166, %v173, 0.0
  %175 = vadd.xlane.f32.xlu0 %v174
  %v176 = vpop.xlane.xlu0 %175
  %v177 = vmax.f32 %v176, 1e-30
  %v178 = vrcp.pop %v177
  %v179 = vmul.f32 %v173, %v178
  %v180 = vpack.c.bf16 %v179, %v179
  %182 = vrot.lane.b32.xlu0 %v64, 64
  %v183 = vpop.permute.xlu0 %182
  %v185 = vsel %vm166, %v180, 0
  %vm187 = vcmask 1043456
  %v189 = vsel %vm187, %v183, 0
  %191 = vmatprep.subr.bf16.mxu0 0
  %192 = vmatpush1.bf16.msra.mxu0 0
  %193 = vmatprep.subr.bf16.mxu0 0
  %194 = vmatpush1.bf16.msra.mxu0 0
  %195 = vmatprep.subr.bf16.mxu0 0
  %196 = vmatpush1.bf16.msra.mxu0 0
  %197 = vmatprep.subr.bf16.mxu0 0
  %198 = vmatpush1.bf16.msra.mxu0 0
  %199 = vmatprep.subr.bf16.mxu0 0
  %200 = vmatpush1.bf16.msra.mxu0 0
  %201 = vmatprep.subr.bf16.mxu0 0
  %202 = vmatpush1.bf16.msra.mxu0 0
  %203 = vmatprep.subr.bf16.mxu0 0
  %204 = vmatpush1.bf16.msra.mxu0 0
  %205 = vmatprep.subr.bf16.mxu0 0
  %206 = vmatpush1.bf16.msra.mxu0 %v189
  %207 = vmatprep.subr.bf16.mxu0 0
  %208 = vmatpush2.bf16.msra.mxu0 0
  %209 = vmatprep.subr.bf16.mxu0 0
  %210 = vmatpush2.bf16.msra.mxu0 0
  %211 = vmatprep.subr.bf16.mxu0 0
  %212 = vmatpush2.bf16.msra.mxu0 0
  %213 = vmatprep.subr.bf16.mxu0 0
  %214 = vmatpush2.bf16.msra.mxu0 0
  %215 = vmatprep.subr.bf16.mxu0 0
  %216 = vmatpush2.bf16.msra.mxu0 0
  %217 = vmatprep.subr.bf16.mxu0 0
  %218 = vmatpush2.bf16.msra.mxu0 0
  %219 = vmatprep.subr.bf16.mxu0 0
  %220 = vmatpush2.bf16.msra.mxu0 0
  %221 = vmatprep.subr.bf16.mxu0 0
  %222 = vmatpush2.bf16.msra.mxu0 0
  %223 = vmatprep.mubr.bf16.mxu0 0
  %224 = vmatmul.mubr.bf16.gmra.mxu0 %v185
  %v225 = vpop.f32.mrf.mxu0
  %v226 = vadd.f32 0.0, %v225
  %v227 = vpop.f32.mrf.mxu0
  %v228 = vpop.f32.mrf.mxu0
  %v229 = vpop.f32.mrf.mxu0
  %230 = vdwg.mxu0
  %v231 = vpack.c.bf16 %v226, %v226
  %v233 = vsel %vm67, %v231, 0
  %235 = vmatprep.subr.bf16.mxu0 0
  %236 = vmatpush1.bf16.msra.mxu0 0
  %237 = vmatprep.subr.bf16.mxu0 0
  %238 = vmatpush1.bf16.msra.mxu0 0
  %239 = vmatprep.subr.bf16.mxu0 0
  %240 = vmatpush1.bf16.msra.mxu0 0
  %241 = vmatprep.subr.bf16.mxu0 0
  %242 = vmatpush1.bf16.msra.mxu0 0
  %243 = vmatprep.subr.bf16.mxu0 0
  %244 = vmatpush1.bf16.msra.mxu0 0
  %245 = vmatprep.subr.bf16.mxu0 0
  %246 = vmatpush1.bf16.msra.mxu0 0
  %247 = vmatprep.subr.bf16.mxu0 0
  %248 = vmatpush1.bf16.msra.mxu0 0
  %249 = vmatprep.subr.bf16.mxu0 0
  %250 = vmatpush1.bf16.msra.mxu0 %v66
  %251 = vmatprep.subr.bf16.mxu0 0
  %252 = vmatpush2.bf16.msra.mxu0 0
  %253 = vmatprep.subr.bf16.mxu0 0
  %254 = vmatpush2.bf16.msra.mxu0 0
  %255 = vmatprep.subr.bf16.mxu0 0
  %256 = vmatpush2.bf16.msra.mxu0 0
  %257 = vmatprep.subr.bf16.mxu0 0
  %258 = vmatpush2.bf16.msra.mxu0 0
  %259 = vmatprep.subr.bf16.mxu0 0
  %260 = vmatpush2.bf16.msra.mxu0 0
  %261 = vmatprep.subr.bf16.mxu0 0
  %262 = vmatpush2.bf16.msra.mxu0 0
  %263 = vmatprep.subr.bf16.mxu0 0
  %264 = vmatpush2.bf16.msra.mxu0 0
  %265 = vmatprep.subr.bf16.mxu0 0
  %266 = vmatpush2.bf16.msra.mxu0 0
  %267 = vmatprep.mubr.bf16.mxu0 0
  %268 = vmatmul.mubr.bf16.gmra.mxu0 %v233
  %v269 = vpop.f32.mrf.mxu0
  %v270 = vadd.f32 0.0, %v269
  %v271 = vpop.f32.mrf.mxu0
  %v272 = vpop.f32.mrf.mxu0
  %v273 = vpop.f32.mrf.mxu0
  %274 = vdwg.mxu0
  %v275 = vpack.c.bf16 %v62, %v61
  %v276 = vshrl.u32 %v65, 16
  %278 = vrot.lane.b32.xlu0 %v64, 112
  %v279 = vpop.permute.xlu0 %278
  %v281 = vsel %vm67, %v276, 0
  %v284 = vsel %vm67, %v279, 0
  %286 = vmatprep.subr.bf16.mxu0 0
  %287 = vmatpush1.bf16.xpose.msra.mxu0 0
  %288 = vmatprep.subr.bf16.mxu0 0
  %289 = vmatpush1.bf16.xpose.msra.mxu0 0
  %290 = vmatprep.subr.bf16.mxu0 0
  %291 = vmatpush1.bf16.xpose.msra.mxu0 0
  %292 = vmatprep.subr.bf16.mxu0 0
  %293 = vmatpush1.bf16.xpose.msra.mxu0 0
  %294 = vmatprep.subr.bf16.mxu0 0
  %295 = vmatpush1.bf16.xpose.msra.mxu0 0
  %296 = vmatprep.subr.bf16.mxu0 0
  %297 = vmatpush1.bf16.xpose.msra.mxu0 0
  %298 = vmatprep.subr.bf16.mxu0 0
  %299 = vmatpush1.bf16.xpose.msra.mxu0 0
  %300 = vmatprep.subr.bf16.mxu0 0
  %301 = vmatpush1.bf16.xpose.msra.mxu0 %v284
  %302 = vmatprep.subr.bf16.mxu0 0
  %303 = vmatpush2.bf16.xpose.msra.mxu0 0
  %304 = vmatprep.subr.bf16.mxu0 0
  %305 = vmatpush2.bf16.xpose.msra.mxu0 0
  %306 = vmatprep.subr.bf16.mxu0 0
  %307 = vmatpush2.bf16.xpose.msra.mxu0 0
  %308 = vmatprep.subr.bf16.mxu0 0
  %309 = vmatpush2.bf16.xpose.msra.mxu0 0
  %310 = vmatprep.subr.bf16.mxu0 0
  %311 = vmatpush2.bf16.xpose.msra.mxu0 0
  %312 = vmatprep.subr.bf16.mxu0 0
  %313 = vmatpush2.bf16.xpose.msra.mxu0 0
  %314 = vmatprep.subr.bf16.mxu0 0
  %315 = vmatpush2.bf16.xpose.msra.mxu0 0
  %316 = vmatprep.subr.bf16.mxu0 0
  %317 = vmatpush2.bf16.xpose.msra.mxu0 0
  %318 = vmatprep.mubr.bf16.mxu0 0
  %319 = vmatmul.mubr.bf16.gmra.mxu0 %v281
  %v320 = vpop.f32.mrf.mxu0
  %v321 = vadd.f32 0.0, %v320
  %v322 = vpop.f32.mrf.mxu0
  %v323 = vpop.f32.mrf.mxu0
  %v324 = vpop.f32.mrf.mxu0
  %325 = vdwg.mxu0
  %v326 = vlaneseq
  %v327 = vshrl.u32 %v326, 7
  %v328 = vsub.s32 0, %v327
  %v329 = vrot.slane %v321, %v328
  %v330 = vmul.f32 %v52, %v329
  %331 = vrot.lane.b32.xlu0 %v63, 80
  %v332 = vpop.permute.xlu0 %331
  %v334 = vsel %vm67, %v332, 0
  %336 = vmatprep.subr.bf16.mxu0 0
  %337 = vmatpush1.bf16.xpose.msra.mxu0 0
  %338 = vmatprep.subr.bf16.mxu0 0
  %339 = vmatpush1.bf16.xpose.msra.mxu0 0
  %340 = vmatprep.subr.bf16.mxu0 0
  %341 = vmatpush1.bf16.xpose.msra.mxu0 0
  %342 = vmatprep.subr.bf16.mxu0 0
  %343 = vmatpush1.bf16.xpose.msra.mxu0 0
  %344 = vmatprep.subr.bf16.mxu0 0
  %345 = vmatpush1.bf16.xpose.msra.mxu0 0
  %346 = vmatprep.subr.bf16.mxu0 0
  %347 = vmatpush1.bf16.xpose.msra.mxu0 0
  %348 = vmatprep.subr.bf16.mxu0 0
  %349 = vmatpush1.bf16.xpose.msra.mxu0 0
  %350 = vmatprep.subr.bf16.mxu0 0
  %351 = vmatpush1.bf16.xpose.msra.mxu0 %v284
  %352 = vmatprep.subr.bf16.mxu0 0
  %353 = vmatpush2.bf16.xpose.msra.mxu0 0
  %354 = vmatprep.subr.bf16.mxu0 0
  %355 = vmatpush2.bf16.xpose.msra.mxu0 0
  %356 = vmatprep.subr.bf16.mxu0 0
  %357 = vmatpush2.bf16.xpose.msra.mxu0 0
  %358 = vmatprep.subr.bf16.mxu0 0
  %359 = vmatpush2.bf16.xpose.msra.mxu0 0
  %360 = vmatprep.subr.bf16.mxu0 0
  %361 = vmatpush2.bf16.xpose.msra.mxu0 0
  %362 = vmatprep.subr.bf16.mxu0 0
  %363 = vmatpush2.bf16.xpose.msra.mxu0 0
  %364 = vmatprep.subr.bf16.mxu0 0
  %365 = vmatpush2.bf16.xpose.msra.mxu0 0
  %366 = vmatprep.subr.bf16.mxu0 0
  %367 = vmatpush2.bf16.xpose.msra.mxu0 0
  %368 = vmatprep.mubr.bf16.mxu0 0
  %369 = vmatmul.mubr.bf16.gmra.mxu0 %v334
  %v370 = vpop.f32.mrf.mxu0
  %v371 = vadd.f32 %v330, %v370
  %v372 = vpop.f32.mrf.mxu0
  %v373 = vpop.f32.mrf.mxu0
  %v374 = vpop.f32.mrf.mxu0
  %375 = vdwg.mxu0
  %v376 = vmul.f32 %v371, 0.25
  %v377 = vsel %vm166, %v376, -inf
  %378 = vmax.xlane.f32.xlu0 %v377
  %v379 = vpop.xlane.xlu0 %378
  %v380 = vsub.f32 %v376, %v379
  %v381 = vmul.f32 %v380, 1.442695
  %v382 = vpow.pop %v381
  %v383 = vmul.f32 %v382, %v57
  %v384 = vsel %vm166, %v383, 0.0
  %385 = vadd.xlane.f32.xlu0 %v384
  %v386 = vpop.xlane.xlu0 %385
  %v387 = vmax.f32 %v386, 1e-30
  %v388 = vrcp.pop %v387
  %v389 = vmul.f32 %v383, %v388
  %v390 = vpack.c.bf16 %v389, %v389
  %391 = vrot.lane.b32.xlu0 %v64, 48
  %v392 = vpop.permute.xlu0 %391
  %v394 = vsel %vm166, %v390, 0
  %v397 = vsel %vm187, %v392, 0
  %399 = vmatprep.subr.bf16.mxu0 0
  %400 = vmatpush1.bf16.msra.mxu0 0
  %401 = vmatprep.subr.bf16.mxu0 0
  %402 = vmatpush1.bf16.msra.mxu0 0
  %403 = vmatprep.subr.bf16.mxu0 0
  %404 = vmatpush1.bf16.msra.mxu0 0
  %405 = vmatprep.subr.bf16.mxu0 0
  %406 = vmatpush1.bf16.msra.mxu0 0
  %407 = vmatprep.subr.bf16.mxu0 0
  %408 = vmatpush1.bf16.msra.mxu0 0
  %409 = vmatprep.subr.bf16.mxu0 0
  %410 = vmatpush1.bf16.msra.mxu0 0
  %411 = vmatprep.subr.bf16.mxu0 0
  %412 = vmatpush1.bf16.msra.mxu0 0
  %413 = vmatprep.subr.bf16.mxu0 0
  %414 = vmatpush1.bf16.msra.mxu0 %v397
  %415 = vmatprep.subr.bf16.mxu0 0
  %416 = vmatpush2.bf16.msra.mxu0 0
  %417 = vmatprep.subr.bf16.mxu0 0
  %418 = vmatpush2.bf16.msra.mxu0 0
  %419 = vmatprep.subr.bf16.mxu0 0
  %420 = vmatpush2.bf16.msra.mxu0 0
  %421 = vmatprep.subr.bf16.mxu0 0
  %422 = vmatpush2.bf16.msra.mxu0 0
  %423 = vmatprep.subr.bf16.mxu0 0
  %424 = vmatpush2.bf16.msra.mxu0 0
  %425 = vmatprep.subr.bf16.mxu0 0
  %426 = vmatpush2.bf16.msra.mxu0 0
  %427 = vmatprep.subr.bf16.mxu0 0
  %428 = vmatpush2.bf16.msra.mxu0 0
  %429 = vmatprep.subr.bf16.mxu0 0
  %430 = vmatpush2.bf16.msra.mxu0 0
  %431 = vmatprep.mubr.bf16.mxu0 0
  %432 = vmatmul.mubr.bf16.gmra.mxu0 %v394
  %v433 = vpop.f32.mrf.mxu0
  %v434 = vadd.f32 0.0, %v433
  %v435 = vpop.f32.mrf.mxu0
  %v436 = vpop.f32.mrf.mxu0
  %v437 = vpop.f32.mrf.mxu0
  %438 = vdwg.mxu0
  %v439 = vpack.c.bf16 %v434, %v434
  %v441 = vsel %vm67, %v439, 0
  %443 = vmatprep.subr.bf16.mxu0 0
  %444 = vmatpush1.bf16.msra.mxu0 0
  %445 = vmatprep.subr.bf16.mxu0 0
  %446 = vmatpush1.bf16.msra.mxu0 0
  %447 = vmatprep.subr.bf16.mxu0 0
  %448 = vmatpush1.bf16.msra.mxu0 0
  %449 = vmatprep.subr.bf16.mxu0 0
  %450 = vmatpush1.bf16.msra.mxu0 0
  %451 = vmatprep.subr.bf16.mxu0 0
  %452 = vmatpush1.bf16.msra.mxu0 0
  %453 = vmatprep.subr.bf16.mxu0 0
  %454 = vmatpush1.bf16.msra.mxu0 0
  %455 = vmatprep.subr.bf16.mxu0 0
  %456 = vmatpush1.bf16.msra.mxu0 0
  %457 = vmatprep.subr.bf16.mxu0 0
  %458 = vmatpush1.bf16.msra.mxu0 %v275
  %459 = vmatprep.subr.bf16.mxu0 0
  %460 = vmatpush2.bf16.msra.mxu0 0
  %461 = vmatprep.subr.bf16.mxu0 0
  %462 = vmatpush2.bf16.msra.mxu0 0
  %463 = vmatprep.subr.bf16.mxu0 0
  %464 = vmatpush2.bf16.msra.mxu0 0
  %465 = vmatprep.subr.bf16.mxu0 0
  %466 = vmatpush2.bf16.msra.mxu0 0
  %467 = vmatprep.subr.bf16.mxu0 0
  %468 = vmatpush2.bf16.msra.mxu0 0
  %469 = vmatprep.subr.bf16.mxu0 0
  %470 = vmatpush2.bf16.msra.mxu0 0
  %471 = vmatprep.subr.bf16.mxu0 0
  %472 = vmatpush2.bf16.msra.mxu0 0
  %473 = vmatprep.subr.bf16.mxu0 0
  %474 = vmatpush2.bf16.msra.mxu0 0
  %475 = vmatprep.mubr.bf16.mxu0 0
  %476 = vmatmul.mubr.bf16.gmra.mxu0 %v441
  %v477 = vpop.f32.mrf.mxu0
  %v478 = vadd.f32 0.0, %v477
  %v479 = vpop.f32.mrf.mxu0
  %v480 = vpop.f32.mrf.mxu0
  %v481 = vpop.f32.mrf.mxu0
  %482 = vdwg.mxu0
  %484 = vrot.lane.b32.xlu0 %v478, 16
  %v485 = vpop.permute.xlu0 %484
  %v487 = vsel %vm67, %v270, %v485
  %v488 = vld [vmem:[%s7] sm:$0x3f]
  %v489 = vld [vmem:[%s8] sm:$0xff]
  %v490 = vld [vmem:[%s9] sm:$0xff]
  %vm491 = vcmp.eq.s32.totalorder %v490, %v54
  %v492 = vsel %vm491, 1, 0
  %v493 = vcvt.s32.f32 %v492
  %v494 = vld [vmem:[%s10] sm:$0x3]
  %v495 = vld [vmem:[%s11] sm:$0xff]
  %v496 = vld [vmem:[%s11 + $0x8] sm:$0xff]
  %v497 = vld [vmem:[%s11 + $0x10] sm:$0xff]
  %v498 = vld [vmem:[%s11 + $0x18] sm:$0xff]
  %v499 = vpack.c.bf16 %v488, %v488
  %v500 = vpack.c.bf16 %v494, %v494
  %v501 = vpack.c.bf16 %v496, %v495
  %v503 = vsel %vm67, %v500, 0
  %v506 = vsel %vm67, %v499, 0
  %508 = vmatprep.subr.bf16.mxu0 0
  %509 = vmatpush1.bf16.xpose.msra.mxu0 0
  %510 = vmatprep.subr.bf16.mxu0 0
  %511 = vmatpush1.bf16.xpose.msra.mxu0 0
  %512 = vmatprep.subr.bf16.mxu0 0
  %513 = vmatpush1.bf16.xpose.msra.mxu0 0
  %514 = vmatprep.subr.bf16.mxu0 0
  %515 = vmatpush1.bf16.xpose.msra.mxu0 0
  %516 = vmatprep.subr.bf16.mxu0 0
  %517 = vmatpush1.bf16.xpose.msra.mxu0 0
  %518 = vmatprep.subr.bf16.mxu0 0
  %519 = vmatpush1.bf16.xpose.msra.mxu0 0
  %520 = vmatprep.subr.bf16.mxu0 0
  %521 = vmatpush1.bf16.xpose.msra.mxu0 0
  %522 = vmatprep.subr.bf16.mxu0 0
  %523 = vmatpush1.bf16.xpose.msra.mxu0 %v506
  %524 = vmatprep.subr.bf16.mxu0 0
  %525 = vmatpush2.bf16.xpose.msra.mxu0 0
  %526 = vmatprep.subr.bf16.mxu0 0
  %527 = vmatpush2.bf16.xpose.msra.mxu0 0
  %528 = vmatprep.subr.bf16.mxu0 0
  %529 = vmatpush2.bf16.xpose.msra.mxu0 0
  %530 = vmatprep.subr.bf16.mxu0 0
  %531 = vmatpush2.bf16.xpose.msra.mxu0 0
  %532 = vmatprep.subr.bf16.mxu0 0
  %533 = vmatpush2.bf16.xpose.msra.mxu0 0
  %534 = vmatprep.subr.bf16.mxu0 0
  %535 = vmatpush2.bf16.xpose.msra.mxu0 0
  %536 = vmatprep.subr.bf16.mxu0 0
  %537 = vmatpush2.bf16.xpose.msra.mxu0 0
  %538 = vmatprep.subr.bf16.mxu0 0
  %539 = vmatpush2.bf16.xpose.msra.mxu0 0
  %540 = vmatprep.mubr.bf16.mxu0 0
  %541 = vmatmul.mubr.bf16.gmra.mxu0 %v503
  %v542 = vpop.f32.mrf.mxu0
  %v543 = vadd.f32 0.0, %v542
  %v544 = vpop.f32.mrf.mxu0
  %v545 = vpop.f32.mrf.mxu0
  %v546 = vpop.f32.mrf.mxu0
  %547 = vdwg.mxu0
  %v548 = vlaneseq
  %v549 = vshrl.u32 %v548, 7
  %v550 = vsub.s32 0, %v549
  %v551 = vrot.slane %v543, %v550
  %v552 = vmul.f32 %v489, %v551
  %553 = vmatprep.subr.bf16.mxu0 0
  %554 = vmatpush1.bf16.xpose.msra.mxu0 0
  %555 = vmatprep.subr.bf16.mxu0 0
  %556 = vmatpush1.bf16.xpose.msra.mxu0 0
  %557 = vmatprep.subr.bf16.mxu0 0
  %558 = vmatpush1.bf16.xpose.msra.mxu0 0
  %559 = vmatprep.subr.bf16.mxu0 0
  %560 = vmatpush1.bf16.xpose.msra.mxu0 0
  %561 = vmatprep.subr.bf16.mxu0 0
  %562 = vmatpush1.bf16.xpose.msra.mxu0 0
  %563 = vmatprep.subr.bf16.mxu0 0
  %564 = vmatpush1.bf16.xpose.msra.mxu0 0
  %565 = vmatprep.subr.bf16.mxu0 0
  %566 = vmatpush1.bf16.xpose.msra.mxu0 0
  %567 = vmatprep.subr.bf16.mxu0 0
  %568 = vmatpush1.bf16.xpose.msra.mxu0 %v506
  %569 = vmatprep.subr.bf16.mxu0 0
  %570 = vmatpush2.bf16.xpose.msra.mxu0 0
  %571 = vmatprep.subr.bf16.mxu0 0
  %572 = vmatpush2.bf16.xpose.msra.mxu0 0
  %573 = vmatprep.subr.bf16.mxu0 0
  %574 = vmatpush2.bf16.xpose.msra.mxu0 0
  %575 = vmatprep.subr.bf16.mxu0 0
  %576 = vmatpush2.bf16.xpose.msra.mxu0 0
  %577 = vmatprep.subr.bf16.mxu0 0
  %578 = vmatpush2.bf16.xpose.msra.mxu0 0
  %579 = vmatprep.subr.bf16.mxu0 0
  %580 = vmatpush2.bf16.xpose.msra.mxu0 0
  %581 = vmatprep.subr.bf16.mxu0 0
  %582 = vmatpush2.bf16.xpose.msra.mxu0 0
  %583 = vmatprep.subr.bf16.mxu0 0
  %584 = vmatpush2.bf16.xpose.msra.mxu0 0
  %585 = vmatprep.mubr.bf16.mxu0 0
  %586 = vmatmul.mubr.bf16.gmra.mxu0 %v123
  %v587 = vpop.f32.mrf.mxu0
  %v588 = vadd.f32 %v552, %v587
  %v589 = vpop.f32.mrf.mxu0
  %v590 = vpop.f32.mrf.mxu0
  %v591 = vpop.f32.mrf.mxu0
  %592 = vdwg.mxu0
  %v593 = vmul.f32 %v588, 0.25
  %vm594 = vcmask 48128
  %v595 = vsel %vm594, %v593, -inf
  %596 = vmax.xlane.f32.xlu0 %v595
  %v597 = vpop.xlane.xlu0 %596
  %v598 = vsub.f32 %v593, %v597
  %v599 = vmul.f32 %v598, 1.442695
  %v600 = vpow.pop %v599
  %v601 = vmul.f32 %v600, %v493
  %v602 = vsel %vm594, %v601, 0.0
  %603 = vadd.xlane.f32.xlu0 %v602
  %v604 = vpop.xlane.xlu0 %603
  %v605 = vmax.f32 %v604, 1e-30
  %v606 = vrcp.pop %v605
  %v607 = vmul.f32 %v601, %v606
  %v608 = vpack.c.bf16 %v607, %v607
  %610 = vrot.lane.b32.xlu0 %v499, 64
  %v611 = vpop.permute.xlu0 %610
  %v613 = vsel %vm594, %v608, 0
  %vm615 = vcmask 1042432
  %v617 = vsel %vm615, %v611, 0
  %619 = vmatprep.subr.bf16.mxu0 0
  %620 = vmatpush1.bf16.msra.mxu0 0
  %621 = vmatprep.subr.bf16.mxu0 0
  %622 = vmatpush1.bf16.msra.mxu0 0
  %623 = vmatprep.subr.bf16.mxu0 0
  %624 = vmatpush1.bf16.msra.mxu0 0
  %625 = vmatprep.subr.bf16.mxu0 0
  %626 = vmatpush1.bf16.msra.mxu0 0
  %627 = vmatprep.subr.bf16.mxu0 0
  %628 = vmatpush1.bf16.msra.mxu0 0
  %629 = vmatprep.subr.bf16.mxu0 0
  %630 = vmatpush1.bf16.msra.mxu0 0
  %631 = vmatprep.subr.bf16.mxu0 0
  %632 = vmatpush1.bf16.msra.mxu0 0
  %633 = vmatprep.subr.bf16.mxu0 0
  %634 = vmatpush1.bf16.msra.mxu0 %v617
  %635 = vmatprep.subr.bf16.mxu0 0
  %636 = vmatpush2.bf16.msra.mxu0 0
  %637 = vmatprep.subr.bf16.mxu0 0
  %638 = vmatpush2.bf16.msra.mxu0 0
  %639 = vmatprep.subr.bf16.mxu0 0
  %640 = vmatpush2.bf16.msra.mxu0 0
  %641 = vmatprep.subr.bf16.mxu0 0
  %642 = vmatpush2.bf16.msra.mxu0 0
  %643 = vmatprep.subr.bf16.mxu0 0
  %644 = vmatpush2.bf16.msra.mxu0 0
  %645 = vmatprep.subr.bf16.mxu0 0
  %646 = vmatpush2.bf16.msra.mxu0 0
  %647 = vmatprep.subr.bf16.mxu0 0
  %648 = vmatpush2.bf16.msra.mxu0 0
  %649 = vmatprep.subr.bf16.mxu0 0
  %650 = vmatpush2.bf16.msra.mxu0 0
  %651 = vmatprep.mubr.bf16.mxu0 0
  %652 = vmatmul.mubr.bf16.gmra.mxu0 %v613
  %v653 = vpop.f32.mrf.mxu0
  %v654 = vadd.f32 0.0, %v653
  %v655 = vpop.f32.mrf.mxu0
  %v656 = vpop.f32.mrf.mxu0
  %v657 = vpop.f32.mrf.mxu0
  %658 = vdwg.mxu0
  %v659 = vpack.c.bf16 %v654, %v654
  %v661 = vsel %vm67, %v659, 0
  %663 = vmatprep.subr.bf16.mxu0 0
  %664 = vmatpush1.bf16.msra.mxu0 0
  %665 = vmatprep.subr.bf16.mxu0 0
  %666 = vmatpush1.bf16.msra.mxu0 0
  %667 = vmatprep.subr.bf16.mxu0 0
  %668 = vmatpush1.bf16.msra.mxu0 0
  %669 = vmatprep.subr.bf16.mxu0 0
  %670 = vmatpush1.bf16.msra.mxu0 0
  %671 = vmatprep.subr.bf16.mxu0 0
  %672 = vmatpush1.bf16.msra.mxu0 0
  %673 = vmatprep.subr.bf16.mxu0 0
  %674 = vmatpush1.bf16.msra.mxu0 0
  %675 = vmatprep.subr.bf16.mxu0 0
  %676 = vmatpush1.bf16.msra.mxu0 0
  %677 = vmatprep.subr.bf16.mxu0 0
  %678 = vmatpush1.bf16.msra.mxu0 %v501
  %679 = vmatprep.subr.bf16.mxu0 0
  %680 = vmatpush2.bf16.msra.mxu0 0
  %681 = vmatprep.subr.bf16.mxu0 0
  %682 = vmatpush2.bf16.msra.mxu0 0
  %683 = vmatprep.subr.bf16.mxu0 0
  %684 = vmatpush2.bf16.msra.mxu0 0
  %685 = vmatprep.subr.bf16.mxu0 0
  %686 = vmatpush2.bf16.msra.mxu0 0
  %687 = vmatprep.subr.bf16.mxu0 0
  %688 = vmatpush2.bf16.msra.mxu0 0
  %689 = vmatprep.subr.bf16.mxu0 0
  %690 = vmatpush2.bf16.msra.mxu0 0
  %691 = vmatprep.subr.bf16.mxu0 0
  %692 = vmatpush2.bf16.msra.mxu0 0
  %693 = vmatprep.subr.bf16.mxu0 0
  %694 = vmatpush2.bf16.msra.mxu0 0
  %695 = vmatprep.mubr.bf16.mxu0 0
  %696 = vmatmul.mubr.bf16.gmra.mxu0 %v661
  %v697 = vpop.f32.mrf.mxu0
  %v698 = vadd.f32 0.0, %v697
  %v699 = vpop.f32.mrf.mxu0
  %v700 = vpop.f32.mrf.mxu0
  %v701 = vpop.f32.mrf.mxu0
  %702 = vdwg.mxu0
  %v703 = vpack.c.bf16 %v498, %v497
  %v704 = vshrl.u32 %v500, 16
  %706 = vrot.lane.b32.xlu0 %v499, 112
  %v707 = vpop.permute.xlu0 %706
  %v709 = vsel %vm67, %v704, 0
  %v712 = vsel %vm67, %v707, 0
  %714 = vmatprep.subr.bf16.mxu0 0
  %715 = vmatpush1.bf16.xpose.msra.mxu0 0
  %716 = vmatprep.subr.bf16.mxu0 0
  %717 = vmatpush1.bf16.xpose.msra.mxu0 0
  %718 = vmatprep.subr.bf16.mxu0 0
  %719 = vmatpush1.bf16.xpose.msra.mxu0 0
  %720 = vmatprep.subr.bf16.mxu0 0
  %721 = vmatpush1.bf16.xpose.msra.mxu0 0
  %722 = vmatprep.subr.bf16.mxu0 0
  %723 = vmatpush1.bf16.xpose.msra.mxu0 0
  %724 = vmatprep.subr.bf16.mxu0 0
  %725 = vmatpush1.bf16.xpose.msra.mxu0 0
  %726 = vmatprep.subr.bf16.mxu0 0
  %727 = vmatpush1.bf16.xpose.msra.mxu0 0
  %728 = vmatprep.subr.bf16.mxu0 0
  %729 = vmatpush1.bf16.xpose.msra.mxu0 %v712
  %730 = vmatprep.subr.bf16.mxu0 0
  %731 = vmatpush2.bf16.xpose.msra.mxu0 0
  %732 = vmatprep.subr.bf16.mxu0 0
  %733 = vmatpush2.bf16.xpose.msra.mxu0 0
  %734 = vmatprep.subr.bf16.mxu0 0
  %735 = vmatpush2.bf16.xpose.msra.mxu0 0
  %736 = vmatprep.subr.bf16.mxu0 0
  %737 = vmatpush2.bf16.xpose.msra.mxu0 0
  %738 = vmatprep.subr.bf16.mxu0 0
  %739 = vmatpush2.bf16.xpose.msra.mxu0 0
  %740 = vmatprep.subr.bf16.mxu0 0
  %741 = vmatpush2.bf16.xpose.msra.mxu0 0
  %742 = vmatprep.subr.bf16.mxu0 0
  %743 = vmatpush2.bf16.xpose.msra.mxu0 0
  %744 = vmatprep.subr.bf16.mxu0 0
  %745 = vmatpush2.bf16.xpose.msra.mxu0 0
  %746 = vmatprep.mubr.bf16.mxu0 0
  %747 = vmatmul.mubr.bf16.gmra.mxu0 %v709
  %v748 = vpop.f32.mrf.mxu0
  %v749 = vadd.f32 0.0, %v748
  %v750 = vpop.f32.mrf.mxu0
  %v751 = vpop.f32.mrf.mxu0
  %v752 = vpop.f32.mrf.mxu0
  %753 = vdwg.mxu0
  %v754 = vlaneseq
  %v755 = vshrl.u32 %v754, 7
  %v756 = vsub.s32 0, %v755
  %v757 = vrot.slane %v749, %v756
  %v758 = vmul.f32 %v489, %v757
  %759 = vmatprep.subr.bf16.mxu0 0
  %760 = vmatpush1.bf16.xpose.msra.mxu0 0
  %761 = vmatprep.subr.bf16.mxu0 0
  %762 = vmatpush1.bf16.xpose.msra.mxu0 0
  %763 = vmatprep.subr.bf16.mxu0 0
  %764 = vmatpush1.bf16.xpose.msra.mxu0 0
  %765 = vmatprep.subr.bf16.mxu0 0
  %766 = vmatpush1.bf16.xpose.msra.mxu0 0
  %767 = vmatprep.subr.bf16.mxu0 0
  %768 = vmatpush1.bf16.xpose.msra.mxu0 0
  %769 = vmatprep.subr.bf16.mxu0 0
  %770 = vmatpush1.bf16.xpose.msra.mxu0 0
  %771 = vmatprep.subr.bf16.mxu0 0
  %772 = vmatpush1.bf16.xpose.msra.mxu0 0
  %773 = vmatprep.subr.bf16.mxu0 0
  %774 = vmatpush1.bf16.xpose.msra.mxu0 %v712
  %775 = vmatprep.subr.bf16.mxu0 0
  %776 = vmatpush2.bf16.xpose.msra.mxu0 0
  %777 = vmatprep.subr.bf16.mxu0 0
  %778 = vmatpush2.bf16.xpose.msra.mxu0 0
  %779 = vmatprep.subr.bf16.mxu0 0
  %780 = vmatpush2.bf16.xpose.msra.mxu0 0
  %781 = vmatprep.subr.bf16.mxu0 0
  %782 = vmatpush2.bf16.xpose.msra.mxu0 0
  %783 = vmatprep.subr.bf16.mxu0 0
  %784 = vmatpush2.bf16.xpose.msra.mxu0 0
  %785 = vmatprep.subr.bf16.mxu0 0
  %786 = vmatpush2.bf16.xpose.msra.mxu0 0
  %787 = vmatprep.subr.bf16.mxu0 0
  %788 = vmatpush2.bf16.xpose.msra.mxu0 0
  %789 = vmatprep.subr.bf16.mxu0 0
  %790 = vmatpush2.bf16.xpose.msra.mxu0 0
  %791 = vmatprep.mubr.bf16.mxu0 0
  %792 = vmatmul.mubr.bf16.gmra.mxu0 %v334
  %v793 = vpop.f32.mrf.mxu0
  %v794 = vadd.f32 %v758, %v793
  %v795 = vpop.f32.mrf.mxu0
  %v796 = vpop.f32.mrf.mxu0
  %v797 = vpop.f32.mrf.mxu0
  %798 = vdwg.mxu0
  %v799 = vmul.f32 %v794, 0.25
  %v800 = vsel %vm594, %v799, -inf
  %801 = vmax.xlane.f32.xlu0 %v800
  %v802 = vpop.xlane.xlu0 %801
  %v803 = vsub.f32 %v799, %v802
  %v804 = vmul.f32 %v803, 1.442695
  %v805 = vpow.pop %v804
  %v806 = vmul.f32 %v805, %v493
  %v807 = vsel %vm594, %v806, 0.0
  %808 = vadd.xlane.f32.xlu0 %v807
  %v809 = vpop.xlane.xlu0 %808
  %v810 = vmax.f32 %v809, 1e-30
  %v811 = vrcp.pop %v810
  %v812 = vmul.f32 %v806, %v811
  %v813 = vpack.c.bf16 %v812, %v812
  %814 = vrot.lane.b32.xlu0 %v499, 48
  %v815 = vpop.permute.xlu0 %814
  %v817 = vsel %vm594, %v813, 0
  %v820 = vsel %vm615, %v815, 0
  %822 = vmatprep.subr.bf16.mxu0 0
  %823 = vmatpush1.bf16.msra.mxu0 0
  %824 = vmatprep.subr.bf16.mxu0 0
  %825 = vmatpush1.bf16.msra.mxu0 0
  %826 = vmatprep.subr.bf16.mxu0 0
  %827 = vmatpush1.bf16.msra.mxu0 0
  %828 = vmatprep.subr.bf16.mxu0 0
  %829 = vmatpush1.bf16.msra.mxu0 0
  %830 = vmatprep.subr.bf16.mxu0 0
  %831 = vmatpush1.bf16.msra.mxu0 0
  %832 = vmatprep.subr.bf16.mxu0 0
  %833 = vmatpush1.bf16.msra.mxu0 0
  %834 = vmatprep.subr.bf16.mxu0 0
  %835 = vmatpush1.bf16.msra.mxu0 0
  %836 = vmatprep.subr.bf16.mxu0 0
  %837 = vmatpush1.bf16.msra.mxu0 %v820
  %838 = vmatprep.subr.bf16.mxu0 0
  %839 = vmatpush2.bf16.msra.mxu0 0
  %840 = vmatprep.subr.bf16.mxu0 0
  %841 = vmatpush2.bf16.msra.mxu0 0
  %842 = vmatprep.subr.bf16.mxu0 0
  %843 = vmatpush2.bf16.msra.mxu0 0
  %844 = vmatprep.subr.bf16.mxu0 0
  %845 = vmatpush2.bf16.msra.mxu0 0
  %846 = vmatprep.subr.bf16.mxu0 0
  %847 = vmatpush2.bf16.msra.mxu0 0
  %848 = vmatprep.subr.bf16.mxu0 0
  %849 = vmatpush2.bf16.msra.mxu0 0
  %850 = vmatprep.subr.bf16.mxu0 0
  %851 = vmatpush2.bf16.msra.mxu0 0
  %852 = vmatprep.subr.bf16.mxu0 0
  %853 = vmatpush2.bf16.msra.mxu0 0
  %854 = vmatprep.mubr.bf16.mxu0 0
  %855 = vmatmul.mubr.bf16.gmra.mxu0 %v817
  %v856 = vpop.f32.mrf.mxu0
  %v857 = vadd.f32 0.0, %v856
  %v858 = vpop.f32.mrf.mxu0
  %v859 = vpop.f32.mrf.mxu0
  %v860 = vpop.f32.mrf.mxu0
  %861 = vdwg.mxu0
  %v862 = vpack.c.bf16 %v857, %v857
  %v864 = vsel %vm67, %v862, 0
  %866 = vmatprep.subr.bf16.mxu0 0
  %867 = vmatpush1.bf16.msra.mxu0 0
  %868 = vmatprep.subr.bf16.mxu0 0
  %869 = vmatpush1.bf16.msra.mxu0 0
  %870 = vmatprep.subr.bf16.mxu0 0
  %871 = vmatpush1.bf16.msra.mxu0 0
  %872 = vmatprep.subr.bf16.mxu0 0
  %873 = vmatpush1.bf16.msra.mxu0 0
  %874 = vmatprep.subr.bf16.mxu0 0
  %875 = vmatpush1.bf16.msra.mxu0 0
  %876 = vmatprep.subr.bf16.mxu0 0
  %877 = vmatpush1.bf16.msra.mxu0 0
  %878 = vmatprep.subr.bf16.mxu0 0
  %879 = vmatpush1.bf16.msra.mxu0 0
  %880 = vmatprep.subr.bf16.mxu0 0
  %881 = vmatpush1.bf16.msra.mxu0 %v703
  %882 = vmatprep.subr.bf16.mxu0 0
  %883 = vmatpush2.bf16.msra.mxu0 0
  %884 = vmatprep.subr.bf16.mxu0 0
  %885 = vmatpush2.bf16.msra.mxu0 0
  %886 = vmatprep.subr.bf16.mxu0 0
  %887 = vmatpush2.bf16.msra.mxu0 0
  %888 = vmatprep.subr.bf16.mxu0 0
  %889 = vmatpush2.bf16.msra.mxu0 0
  %890 = vmatprep.subr.bf16.mxu0 0
  %891 = vmatpush2.bf16.msra.mxu0 0
  %892 = vmatprep.subr.bf16.mxu0 0
  %893 = vmatpush2.bf16.msra.mxu0 0
  %894 = vmatprep.subr.bf16.mxu0 0
  %895 = vmatpush2.bf16.msra.mxu0 0
  %896 = vmatprep.subr.bf16.mxu0 0
  %897 = vmatpush2.bf16.msra.mxu0 0
  %898 = vmatprep.mubr.bf16.mxu0 0
  %899 = vmatmul.mubr.bf16.gmra.mxu0 %v864
  %v900 = vpop.f32.mrf.mxu0
  %v901 = vadd.f32 0.0, %v900
  %v902 = vpop.f32.mrf.mxu0
  %v903 = vpop.f32.mrf.mxu0
  %v904 = vpop.f32.mrf.mxu0
  %905 = vdwg.mxu0
  %907 = vrot.lane.b32.xlu0 %v901, 16
  %v908 = vpop.permute.xlu0 %907
  %v910 = vsel %vm67, %v698, %v908
  %v911 = vadd.f32 %v487, %v910
  %v912 = vmul.f32 %v911, 0.5
  %v913 = vmax.f32 %v912, 0.0
  %vm914 = vcmask 261120
  %v915 = vsel %vm914, %v913, 0.0
  %916 = vadd.xlane.f32.xlu0 %v915
  %v917 = vpop.xlane.xlu0 %916
  %v918 = vrcp.pop 32.0
  %v919 = vmul.f32 %v917, %v918
  %v920 = vsub.f32 %v913, %v919
  %v921 = vmul.f32 %v920, %v920
  %v922 = vsel %vm914, %v921, 0.0
  %923 = vadd.xlane.f32.xlu0 %v922
  %v924 = vpop.xlane.xlu0 %923
  %v925 = vmul.f32 %v924, %v918
  %v926 = vadd.f32 %v925, 1e-05
  %v927 = vrsqrt.pop %v926
  %v928 = vmul.f32 %v920, %v927
  %v929 = vld [vmem:[%s12] sm:$0x1]
  %v931 = vlaneseq
  %v932 = vshrl.u32 %v931, 7
  %v933 = vsub.s32 0, %v932
  %v934 = vrot.slane %v929, %v933
  %v936 = vmul.f32 %v928, %v934
  %v937 = vld [vmem:[%s13] sm:$0x1]
  %v939 = vlaneseq
  %v940 = vshrl.u32 %v939, 7
  %v941 = vsub.s32 0, %v940
  %v942 = vrot.slane %v937, %v941
  %v944 = vadd.f32 %v936, %v942
  %945 = vst.msk [vmem:[%s14] sm:$0xff] %vm914, %v944
  // Predicated region
  $region58: #{model_forward.48} parent=0 // pred_check
    _
  $region59: #{model_forward.48} parent=0 // pred_check_branch
    %947 = sbr.rel (0) target = $region61
  $region60: #{model_forward.48} parent=0 // pred_region
    _
  $region61: #{model_forward.48} parent=0 // pred_fallthru
    _
  // Predicated region
  $region62: #{model_forward.48} parent=0 // pred_check
    _
  $region63: #{model_forward.48} parent=0 // pred_check_branch
    %949 = sbr.rel (0) target = $region65
  $region64: #{model_forward.48} parent=0 // pred_region
    _
  $region65: #{model_forward.48} parent=0 // pred_fallthru
    _

// kernel: model_forward.47
$region0: #{model_forward.47}
  #allocation0 [shape = 'u32[]', space=smem, size = 0x4, offset = 0x4, fixed_abs, tag = 'smem constant byte address 0x4 - core index']
  #allocation1 [shape = 'u32[144,128]{1,0:T(1,128)}', space=vmem, size = 0x12000, scoped, tag = 'internal scratch']
  #allocation2 [shape = 's32[1]{0:T(128)S(6)}', space=smem, size = 0x200, scoped, tag = 'scoped memory for model_forward.47']
  %s0 = inlined_call_operand.<no memory space> [shape: s32[1], index: 0, kind: input, shape index: {}]
  %s1 = inlined_call_operand.vmem [shape: f32[6,96], index: 1, kind: input, shape index: {}, may-alias: {1,2}]
  %s2 = inlined_call_operand.vmem [shape: f32[6,96], index: 2, kind: input, shape index: {}, may-alias: {1,2}]
  %s3 = inlined_call_operand.vmem [shape: f32[6,6], index: 3, kind: input, shape index: {}]
  %s4 = inlined_call_operand.vmem [shape: s32[6,6], index: 4, kind: input, shape index: {}]
  %s5 = inlined_call_operand.vmem [shape: f32[2,16], index: 5, kind: input, shape index: {}]
  %s6 = inlined_call_operand.vmem [shape: f32[32,16], index: 6, kind: input, shape index: {}]
  %s7 = inlined_call_operand.vmem [shape: f32[1,32], index: 7, kind: input, shape index: {}]
  %s8 = inlined_call_operand.vmem [shape: f32[1,32], index: 8, kind: input, shape index: {}]
  %s9 = inlined_call_operand.vmem [shape: f32[6,32], index: 9, kind: output, shape index: {}]
  %s10 = sld [smem:[#allocation0]]
  $region46: #{model_forward.47} parent=0
    _
  %s12 = ssub.s32 1, %s10
  %s13 = scalar_select 0, %s12, %s10
  %14 = sst [smem:[#allocation2]] %s0
  // Predicated region
  $region2: #{model_forward.47} parent=0 // pred_check
    _
  $region3: #{model_forward.47} parent=0 // pred_check_branch
    %16 = sbr.rel (0) target = $region5
  $region4: #{model_forward.47} parent=0 // pred_region
    _
  $region5: #{model_forward.47} parent=0 // pred_fallthru
    _
  // Predicated region
  $region6: #{model_forward.47} parent=0 // pred_check
    _
  $region7: #{model_forward.47} parent=0 // pred_check_branch
    %18 = sbr.rel (0) target = $region9
  $region8: #{model_forward.47} parent=0 // pred_region
    _
  $region9: #{model_forward.47} parent=0 // pred_fallthru
    _
  // Predicated region
  $region10: #{model_forward.47} parent=0 // pred_check
    _
  $region11: #{model_forward.47} parent=0 // pred_check_branch
    %20 = sbr.rel (0) target = $region13
  $region12: #{model_forward.47} parent=0 // pred_region
    _
  $region13: #{model_forward.47} parent=0 // pred_fallthru
    _
  // Predicated region
  $region14: #{model_forward.47} parent=0 // pred_check
    _
  $region15: #{model_forward.47} parent=0 // pred_check_branch
    %22 = sbr.rel (0) target = $region17
  $region16: #{model_forward.47} parent=0 // pred_region
    _
  $region17: #{model_forward.47} parent=0 // pred_fallthru
    _
  // Predicated region
  $region18: #{model_forward.47} parent=0 // pred_check
    _
  $region19: #{model_forward.47} parent=0 // pred_check_branch
    %24 = sbr.rel (0) target = $region21
  $region20: #{model_forward.47} parent=0 // pred_region
    _
  $region21: #{model_forward.47} parent=0 // pred_fallthru
    _
  // Predicated region
  $region22: #{model_forward.47} parent=0 // pred_check
    _
  $region23: #{model_forward.47} parent=0 // pred_check_branch
    %26 = sbr.rel (0) target = $region25
  $region24: #{model_forward.47} parent=0 // pred_region
    _
  $region25: #{model_forward.47} parent=0 // pred_fallthru
    _
  // Predicated region
  $region26: #{model_forward.47} parent=0 // pred_check
    _
  $region27: #{model_forward.47} parent=0 // pred_check_branch
    %28 = sbr.rel (0) target = $region29
  $region28: #{model_forward.47} parent=0 // pred_region
    _
  $region29: #{model_forward.47} parent=0 // pred_fallthru
    _
  // Predicated region
  $region30: #{model_forward.47} parent=0 // pred_check
    _
  $region31: #{model_forward.47} parent=0 // pred_check_branch
    %30 = sbr.rel (0) target = $region33
  $region32: #{model_forward.47} parent=0 // pred_region
    _
  $region33: #{model_forward.47} parent=0 // pred_fallthru
    _
  // Predicated region
  $region34: #{model_forward.47} parent=0 // pred_check
    _
  $region35: #{model_forward.47} parent=0 // pred_check_branch
    %32 = sbr.rel (0) target = $region37
  $region36: #{model_forward.47} parent=0 // pred_region
    _
  $region37: #{model_forward.47} parent=0 // pred_fallthru
    _
  %v34 = vld [vmem:[%s1] sm:$0x3f]
  %v35 = vld [vmem:[%s2] sm:$0x3f]
  %v36 = vld [vmem:[%s3] sm:$0x3f]
  %v37 = vld [vmem:[%s5] sm:$0x3]
  %v38 = vld [vmem:[%s6] sm:$0xff]
  %v39 = vld [vmem:[%s6 + $0x8] sm:$0xff]
  %v40 = vld [vmem:[%s6 + $0x10] sm:$0xff]
  %v41 = vld [vmem:[%s6 + $0x18] sm:$0xff]
  %v42 = vpack.c.bf16 %v34, %v34
  %v43 = vpack.c.bf16 %v35, %v35
  %v44 = vpack.c.bf16 %v37, %v37
  %v45 = vpack.c.bf16 %v39, %v38
  %vm46 = vcmask 130048
  %v48 = vsel %vm46, %v44, 0
  %v51 = vsel %vm46, %v43, 0
  %53 = vmatprep.subr.bf16.mxu0 0
  %54 = vmatpush1.bf16.xpose.msra.mxu0 0
  %55 = vmatprep.subr.bf16.mxu0 0
  %56 = vmatpush1.bf16.xpose.msra.mxu0 0
  %57 = vmatprep.subr.bf16.mxu0 0
  %58 = vmatpush1.bf16.xpose.msra.mxu0 0
  %59 = vmatprep.subr.bf16.mxu0 0
  %60 = vmatpush1.bf16.xpose.msra.mxu0 0
  %61 = vmatprep.subr.bf16.mxu0 0
  %62 = vmatpush1.bf16.xpose.msra.mxu0 0
  %63 = vmatprep.subr.bf16.mxu0 0
  %64 = vmatpush1.bf16.xpose.msra.mxu0 0
  %65 = vmatprep.subr.bf16.mxu0 0
  %66 = vmatpush1.bf16.xpose.msra.mxu0 0
  %67 = vmatprep.subr.bf16.mxu0 0
  %68 = vmatpush1.bf16.xpose.msra.mxu0 %v51
  %69 = vmatprep.subr.bf16.mxu0 0
  %70 = vmatpush2.bf16.xpose.msra.mxu0 0
  %71 = vmatprep.subr.bf16.mxu0 0
  %72 = vmatpush2.bf16.xpose.msra.mxu0 0
  %73 = vmatprep.subr.bf16.mxu0 0
  %74 = vmatpush2.bf16.xpose.msra.mxu0 0
  %75 = vmatprep.subr.bf16.mxu0 0
  %76 = vmatpush2.bf16.xpose.msra.mxu0 0
  %77 = vmatprep.subr.bf16.mxu0 0
  %78 = vmatpush2.bf16.xpose.msra.mxu0 0
  %79 = vmatprep.subr.bf16.mxu0 0
  %80 = vmatpush2.bf16.xpose.msra.mxu0 0
  %81 = vmatprep.subr.bf16.mxu0 0
  %82 = vmatpush2.bf16.xpose.msra.mxu0 0
  %83 = vmatprep.subr.bf16.mxu0 0
  %84 = vmatpush2.bf16.xpose.msra.mxu0 0
  %85 = vmatprep.mubr.bf16.mxu0 0
  %86 = vmatmul.mubr.bf16.gmra.mxu0 %v48
  %v87 = vpop.f32.mrf.mxu0
  %v88 = vadd.f32 0.0, %v87
  %v89 = vpop.f32.mrf.mxu0
  %v90 = vpop.f32.mrf.mxu0
  %v91 = vpop.f32.mrf.mxu0
  %92 = vdwg.mxu0
  %v93 = vlaneseq
  %v94 = vshrl.u32 %v93, 7
  %v95 = vsub.s32 0, %v94
  %v96 = vrot.slane %v88, %v95
  %v97 = vmul.f32 %v36, %v96
  %99 = vrot.lane.b32.xlu0 %v42, 96
  %v100 = vpop.permute.xlu0 %99
  %v102 = vsel %vm46, %v100, 0
  %104 = vmatprep.subr.bf16.mxu0 0
  %105 = vmatpush1.bf16.xpose.msra.mxu0 0
  %106 = vmatprep.subr.bf16.mxu0 0
  %107 = vmatpush1.bf16.xpose.msra.mxu0 0
  %108 = vmatprep.subr.bf16.mxu0 0
  %109 = vmatpush1.bf16.xpose.msra.mxu0 0
  %110 = vmatprep.subr.bf16.mxu0 0
  %111 = vmatpush1.bf16.xpose.msra.mxu0 0
  %112 = vmatprep.subr.bf16.mxu0 0
  %113 = vmatpush1.bf16.xpose.msra.mxu0 0
  %114 = vmatprep.subr.bf16.mxu0 0
  %115 = vmatpush1.bf16.xpose.msra.mxu0 0
  %116 = vmatprep.subr.bf16.mxu0 0
  %117 = vmatpush1.bf16.xpose.msra.mxu0 0
  %118 = vmatprep.subr.bf16.mxu0 0
  %119 = vmatpush1.bf16.xpose.msra.mxu0 %v51
  %120 = vmatprep.subr.bf16.mxu0 0
  %121 = vmatpush2.bf16.xpose.msra.mxu0 0
  %122 = vmatprep.subr.bf16.mxu0 0
  %123 = vmatpush2.bf16.xpose.msra.mxu0 0
  %124 = vmatprep.subr.bf16.mxu0 0
  %125 = vmatpush2.bf16.xpose.msra.mxu0 0
  %126 = vmatprep.subr.bf16.mxu0 0
  %127 = vmatpush2.bf16.xpose.msra.mxu0 0
  %128 = vmatprep.subr.bf16.mxu0 0
  %129 = vmatpush2.bf16.xpose.msra.mxu0 0
  %130 = vmatprep.subr.bf16.mxu0 0
  %131 = vmatpush2.bf16.xpose.msra.mxu0 0
  %132 = vmatprep.subr.bf16.mxu0 0
  %133 = vmatpush2.bf16.xpose.msra.mxu0 0
  %134 = vmatprep.subr.bf16.mxu0 0
  %135 = vmatpush2.bf16.xpose.msra.mxu0 0
  %136 = vmatprep.mubr.bf16.mxu0 0
  %137 = vmatmul.mubr.bf16.gmra.mxu0 %v102
  %v138 = vpop.f32.mrf.mxu0
  %v139 = vadd.f32 %v97, %v138
  %v140 = vpop.f32.mrf.mxu0
  %v141 = vpop.f32.mrf.mxu0
  %v142 = vpop.f32.mrf.mxu0
  %143 = vdwg.mxu0
  %v144 = vmul.f32 %v139, 0.25
  %vm145 = vcmask 46080
  %v146 = vsel %vm145, %v144, -inf
  %147 = vmax.xlane.f32.xlu0 %v146
  %v148 = vpop.xlane.xlu0 %147
  %v149 = vsub.f32 %v144, %v148
  %v150 = vmul.f32 %v149, 1.442695
  %v151 = vpow.pop %v150
  %v152 = vsel %vm145, %v151, 0.0
  %153 = vadd.xlane.f32.xlu0 %v152
  %v154 = vpop.xlane.xlu0 %153
  %v155 = vmax.f32 %v154, 1e-30
  %v156 = vrcp.pop %v155
  %v157 = vmul.f32 %v151, %v156
  %v158 = vpack.c.bf16 %v157, %v157
  %160 = vrot.lane.b32.xlu0 %v43, 64
  %v161 = vpop.permute.xlu0 %160
  %vm162 = vcmask 48128
  %v164 = vsel %vm162, %v158, 0
  %vm166 = vcmask 1042432
  %v168 = vsel %vm166, %v161, 0
  %170 = vmatprep.subr.bf16.mxu0 0
  %171 = vmatpush1.bf16.msra.mxu0 0
  %172 = vmatprep.subr.bf16.mxu0 0
  %173 = vmatpush1.bf16.msra.mxu0 0
  %174 = vmatprep.subr.bf16.mxu0 0
  %175 = vmatpush1.bf16.msra.mxu0 0
  %176 = vmatprep.subr.bf16.mxu0 0
  %177 = vmatpush1.bf16.msra.mxu0 0
  %178 = vmatprep.subr.bf16.mxu0 0
  %179 = vmatpush1.bf16.msra.mxu0 0
  %180 = vmatprep.subr.bf16.mxu0 0
  %181 = vmatpush1.bf16.msra.mxu0 0
  %182 = vmatprep.subr.bf16.mxu0 0
  %183 = vmatpush1.bf16.msra.mxu0 0
  %184 = vmatprep.subr.bf16.mxu0 0
  %185 = vmatpush1.bf16.msra.mxu0 %v168
  %186 = vmatprep.subr.bf16.mxu0 0
  %187 = vmatpush2.bf16.msra.mxu0 0
  %188 = vmatprep.subr.bf16.mxu0 0
  %189 = vmatpush2.bf16.msra.mxu0 0
  %190 = vmatprep.subr.bf16.mxu0 0
  %191 = vmatpush2.bf16.msra.mxu0 0
  %192 = vmatprep.subr.bf16.mxu0 0
  %193 = vmatpush2.bf16.msra.mxu0 0
  %194 = vmatprep.subr.bf16.mxu0 0
  %195 = vmatpush2.bf16.msra.mxu0 0
  %196 = vmatprep.subr.bf16.mxu0 0
  %197 = vmatpush2.bf16.msra.mxu0 0
  %198 = vmatprep.subr.bf16.mxu0 0
  %199 = vmatpush2.bf16.msra.mxu0 0
  %200 = vmatprep.subr.bf16.mxu0 0
  %201 = vmatpush2.bf16.msra.mxu0 0
  %202 = vmatprep.mubr.bf16.mxu0 0
  %203 = vmatmul.mubr.bf16.gmra.mxu0 %v164
  %v204 = vpop.f32.mrf.mxu0
  %v205 = vadd.f32 0.0, %v204
  %v206 = vpop.f32.mrf.mxu0
  %v207 = vpop.f32.mrf.mxu0
  %v208 = vpop.f32.mrf.mxu0
  %209 = vdwg.mxu0
  %v210 = vpack.c.bf16 %v205, %v205
  %v212 = vsel %vm46, %v210, 0
  %214 = vmatprep.subr.bf16.mxu0 0
  %215 = vmatpush1.bf16.msra.mxu0 0
  %216 = vmatprep.subr.bf16.mxu0 0
  %217 = vmatpush1.bf16.msra.mxu0 0
  %218 = vmatprep.subr.bf16.mxu0 0
  %219 = vmatpush1.bf16.msra.mxu0 0
  %220 = vmatprep.subr.bf16.mxu0 0
  %221 = vmatpush1.bf16.msra.mxu0 0
  %222 = vmatprep.subr.bf16.mxu0 0
  %223 = vmatpush1.bf16.msra.mxu0 0
  %224 = vmatprep.subr.bf16.mxu0 0
  %225 = vmatpush1.bf16.msra.mxu0 0
  %226 = vmatprep.subr.bf16.mxu0 0
  %227 = vmatpush1.bf16.msra.mxu0 0
  %228 = vmatprep.subr.bf16.mxu0 0
  %229 = vmatpush1.bf16.msra.mxu0 %v45
  %230 = vmatprep.subr.bf16.mxu0 0
  %231 = vmatpush2.bf16.msra.mxu0 0
  %232 = vmatprep.subr.bf16.mxu0 0
  %233 = vmatpush2.bf16.msra.mxu0 0
  %234 = vmatprep.subr.bf16.mxu0 0
  %235 = vmatpush2.bf16.msra.mxu0 0
  %236 = vmatprep.subr.bf16.mxu0 0
  %237 = vmatpush2.bf16.msra.mxu0 0
  %238 = vmatprep.subr.bf16.mxu0 0
  %239 = vmatpush2.bf16.msra.mxu0 0
  %240 = vmatprep.subr.bf16.mxu0 0
  %241 = vmatpush2.bf16.msra.mxu0 0
  %242 = vmatprep.subr.bf16.mxu0 0
  %243 = vmatpush2.bf16.msra.mxu0 0
  %244 = vmatprep.subr.bf16.mxu0 0
  %245 = vmatpush2.bf16.msra.mxu0 0
  %246 = vmatprep.mubr.bf16.mxu0 0
  %247 = vmatmul.mubr.bf16.gmra.mxu0 %v212
  %v248 = vpop.f32.mrf.mxu0
  %v249 = vadd.f32 0.0, %v248
  %v250 = vpop.f32.mrf.mxu0
  %v251 = vpop.f32.mrf.mxu0
  %v252 = vpop.f32.mrf.mxu0
  %253 = vdwg.mxu0
  %v254 = vpack.c.bf16 %v41, %v40
  %v255 = vshrl.u32 %v44, 16
  %257 = vrot.lane.b32.xlu0 %v43, 112
  %v258 = vpop.permute.xlu0 %257
  %v260 = vsel %vm46, %v255, 0
  %v263 = vsel %vm46, %v258, 0
  %265 = vmatprep.subr.bf16.mxu0 0
  %266 = vmatpush1.bf16.xpose.msra.mxu0 0
  %267 = vmatprep.subr.bf16.mxu0 0
  %268 = vmatpush1.bf16.xpose.msra.mxu0 0
  %269 = vmatprep.subr.bf16.mxu0 0
  %270 = vmatpush1.bf16.xpose.msra.mxu0 0
  %271 = vmatprep.subr.bf16.mxu0 0
  %272 = vmatpush1.bf16.xpose.msra.mxu0 0
  %273 = vmatprep.subr.bf16.mxu0 0
  %274 = vmatpush1.bf16.xpose.msra.mxu0 0
  %275 = vmatprep.subr.bf16.mxu0 0
  %276 = vmatpush1.bf16.xpose.msra.mxu0 0
  %277 = vmatprep.subr.bf16.mxu0 0
  %278 = vmatpush1.bf16.xpose.msra.mxu0 0
  %279 = vmatprep.subr.bf16.mxu0 0
  %280 = vmatpush1.bf16.xpose.msra.mxu0 %v263
  %281 = vmatprep.subr.bf16.mxu0 0
  %282 = vmatpush2.bf16.xpose.msra.mxu0 0
  %283 = vmatprep.subr.bf16.mxu0 0
  %284 = vmatpush2.bf16.xpose.msra.mxu0 0
  %285 = vmatprep.subr.bf16.mxu0 0
  %286 = vmatpush2.bf16.xpose.msra.mxu0 0
  %287 = vmatprep.subr.bf16.mxu0 0
  %288 = vmatpush2.bf16.xpose.msra.mxu0 0
  %289 = vmatprep.subr.bf16.mxu0 0
  %290 = vmatpush2.bf16.xpose.msra.mxu0 0
  %291 = vmatprep.subr.bf16.mxu0 0
  %292 = vmatpush2.bf16.xpose.msra.mxu0 0
  %293 = vmatprep.subr.bf16.mxu0 0
  %294 = vmatpush2.bf16.xpose.msra.mxu0 0
  %295 = vmatprep.subr.bf16.mxu0 0
  %296 = vmatpush2.bf16.xpose.msra.mxu0 0
  %297 = vmatprep.mubr.bf16.mxu0 0
  %298 = vmatmul.mubr.bf16.gmra.mxu0 %v260
  %v299 = vpop.f32.mrf.mxu0
  %v300 = vadd.f32 0.0, %v299
  %v301 = vpop.f32.mrf.mxu0
  %v302 = vpop.f32.mrf.mxu0
  %v303 = vpop.f32.mrf.mxu0
  %304 = vdwg.mxu0
  %v305 = vlaneseq
  %v306 = vshrl.u32 %v305, 7
  %v307 = vsub.s32 0, %v306
  %v308 = vrot.slane %v300, %v307
  %v309 = vmul.f32 %v36, %v308
  %310 = vrot.lane.b32.xlu0 %v42, 80
  %v311 = vpop.permute.xlu0 %310
  %v313 = vsel %vm46, %v311, 0
  %315 = vmatprep.subr.bf16.mxu0 0
  %316 = vmatpush1.bf16.xpose.msra.mxu0 0
  %317 = vmatprep.subr.bf16.mxu0 0
  %318 = vmatpush1.bf16.xpose.msra.mxu0 0
  %319 = vmatprep.subr.bf16.mxu0 0
  %320 = vmatpush1.bf16.xpose.msra.mxu0 0
  %321 = vmatprep.subr.bf16.mxu0 0
  %322 = vmatpush1.bf16.xpose.msra.mxu0 0
  %323 = vmatprep.subr.bf16.mxu0 0
  %324 = vmatpush1.bf16.xpose.msra.mxu0 0
  %325 = vmatprep.subr.bf16.mxu0 0
  %326 = vmatpush1.bf16.xpose.msra.mxu0 0
  %327 = vmatprep.subr.bf16.mxu0 0
  %328 = vmatpush1.bf16.xpose.msra.mxu0 0
  %329 = vmatprep.subr.bf16.mxu0 0
  %330 = vmatpush1.bf16.xpose.msra.mxu0 %v263
  %331 = vmatprep.subr.bf16.mxu0 0
  %332 = vmatpush2.bf16.xpose.msra.mxu0 0
  %333 = vmatprep.subr.bf16.mxu0 0
  %334 = vmatpush2.bf16.xpose.msra.mxu0 0
  %335 = vmatprep.subr.bf16.mxu0 0
  %336 = vmatpush2.bf16.xpose.msra.mxu0 0
  %337 = vmatprep.subr.bf16.mxu0 0
  %338 = vmatpush2.bf16.xpose.msra.mxu0 0
  %339 = vmatprep.subr.bf16.mxu0 0
  %340 = vmatpush2.bf16.xpose.msra.mxu0 0
  %341 = vmatprep.subr.bf16.mxu0 0
  %342 = vmatpush2.bf16.xpose.msra.mxu0 0
  %343 = vmatprep.subr.bf16.mxu0 0
  %344 = vmatpush2.bf16.xpose.msra.mxu0 0
  %345 = vmatprep.subr.bf16.mxu0 0
  %346 = vmatpush2.bf16.xpose.msra.mxu0 0
  %347 = vmatprep.mubr.bf16.mxu0 0
  %348 = vmatmul.mubr.bf16.gmra.mxu0 %v313
  %v349 = vpop.f32.mrf.mxu0
  %v350 = vadd.f32 %v309, %v349
  %v351 = vpop.f32.mrf.mxu0
  %v352 = vpop.f32.mrf.mxu0
  %v353 = vpop.f32.mrf.mxu0
  %354 = vdwg.mxu0
  %v355 = vmul.f32 %v350, 0.25
  %v356 = vsel %vm145, %v355, -inf
  %357 = vmax.xlane.f32.xlu0 %v356
  %v358 = vpop.xlane.xlu0 %357
  %v359 = vsub.f32 %v355, %v358
  %v360 = vmul.f32 %v359, 1.442695
  %v361 = vpow.pop %v360
  %v362 = vsel %vm145, %v361, 0.0
  %363 = vadd.xlane.f32.xlu0 %v362
  %v364 = vpop.xlane.xlu0 %363
  %v365 = vmax.f32 %v364, 1e-30
  %v366 = vrcp.pop %v365
  %v367 = vmul.f32 %v361, %v366
  %v368 = vpack.c.bf16 %v367, %v367
  %369 = vrot.lane.b32.xlu0 %v43, 48
  %v370 = vpop.permute.xlu0 %369
  %v372 = vsel %vm162, %v368, 0
  %v375 = vsel %vm166, %v370, 0
  %377 = vmatprep.subr.bf16.mxu0 0
  %378 = vmatpush1.bf16.msra.mxu0 0
  %379 = vmatprep.subr.bf16.mxu0 0
  %380 = vmatpush1.bf16.msra.mxu0 0
  %381 = vmatprep.subr.bf16.mxu0 0
  %382 = vmatpush1.bf16.msra.mxu0 0
  %383 = vmatprep.subr.bf16.mxu0 0
  %384 = vmatpush1.bf16.msra.mxu0 0
  %385 = vmatprep.subr.bf16.mxu0 0
  %386 = vmatpush1.bf16.msra.mxu0 0
  %387 = vmatprep.subr.bf16.mxu0 0
  %388 = vmatpush1.bf16.msra.mxu0 0
  %389 = vmatprep.subr.bf16.mxu0 0
  %390 = vmatpush1.bf16.msra.mxu0 0
  %391 = vmatprep.subr.bf16.mxu0 0
  %392 = vmatpush1.bf16.msra.mxu0 %v375
  %393 = vmatprep.subr.bf16.mxu0 0
  %394 = vmatpush2.bf16.msra.mxu0 0
  %395 = vmatprep.subr.bf16.mxu0 0
  %396 = vmatpush2.bf16.msra.mxu0 0
  %397 = vmatprep.subr.bf16.mxu0 0
  %398 = vmatpush2.bf16.msra.mxu0 0
  %399 = vmatprep.subr.bf16.mxu0 0
  %400 = vmatpush2.bf16.msra.mxu0 0
  %401 = vmatprep.subr.bf16.mxu0 0
  %402 = vmatpush2.bf16.msra.mxu0 0
  %403 = vmatprep.subr.bf16.mxu0 0
  %404 = vmatpush2.bf16.msra.mxu0 0
  %405 = vmatprep.subr.bf16.mxu0 0
  %406 = vmatpush2.bf16.msra.mxu0 0
  %407 = vmatprep.subr.bf16.mxu0 0
  %408 = vmatpush2.bf16.msra.mxu0 0
  %409 = vmatprep.mubr.bf16.mxu0 0
  %410 = vmatmul.mubr.bf16.gmra.mxu0 %v372
  %v411 = vpop.f32.mrf.mxu0
  %v412 = vadd.f32 0.0, %v411
  %v413 = vpop.f32.mrf.mxu0
  %v414 = vpop.f32.mrf.mxu0
  %v415 = vpop.f32.mrf.mxu0
  %416 = vdwg.mxu0
  %v417 = vpack.c.bf16 %v412, %v412
  %v419 = vsel %vm46, %v417, 0
  %421 = vmatprep.subr.bf16.mxu0 0
  %422 = vmatpush1.bf16.msra.mxu0 0
  %423 = vmatprep.subr.bf16.mxu0 0
  %424 = vmatpush1.bf16.msra.mxu0 0
  %425 = vmatprep.subr.bf16.mxu0 0
  %426 = vmatpush1.bf16.msra.mxu0 0
  %427 = vmatprep.subr.bf16.mxu0 0
  %428 = vmatpush1.bf16.msra.mxu0 0
  %429 = vmatprep.subr.bf16.mxu0 0
  %430 = vmatpush1.bf16.msra.mxu0 0
  %431 = vmatprep.subr.bf16.mxu0 0
  %432 = vmatpush1.bf16.msra.mxu0 0
  %433 = vmatprep.subr.bf16.mxu0 0
  %434 = vmatpush1.bf16.msra.mxu0 0
  %435 = vmatprep.subr.bf16.mxu0 0
  %436 = vmatpush1.bf16.msra.mxu0 %v254
  %437 = vmatprep.subr.bf16.mxu0 0
  %438 = vmatpush2.bf16.msra.mxu0 0
  %439 = vmatprep.subr.bf16.mxu0 0
  %440 = vmatpush2.bf16.msra.mxu0 0
  %441 = vmatprep.subr.bf16.mxu0 0
  %442 = vmatpush2.bf16.msra.mxu0 0
  %443 = vmatprep.subr.bf16.mxu0 0
  %444 = vmatpush2.bf16.msra.mxu0 0
  %445 = vmatprep.subr.bf16.mxu0 0
  %446 = vmatpush2.bf16.msra.mxu0 0
  %447 = vmatprep.subr.bf16.mxu0 0
  %448 = vmatpush2.bf16.msra.mxu0 0
  %449 = vmatprep.subr.bf16.mxu0 0
  %450 = vmatpush2.bf16.msra.mxu0 0
  %451 = vmatprep.subr.bf16.mxu0 0
  %452 = vmatpush2.bf16.msra.mxu0 0
  %453 = vmatprep.mubr.bf16.mxu0 0
  %454 = vmatmul.mubr.bf16.gmra.mxu0 %v419
  %v455 = vpop.f32.mrf.mxu0
  %v456 = vadd.f32 0.0, %v455
  %v457 = vpop.f32.mrf.mxu0
  %v458 = vpop.f32.mrf.mxu0
  %v459 = vpop.f32.mrf.mxu0
  %460 = vdwg.mxu0
  %462 = vrot.lane.b32.xlu0 %v456, 16
  %v463 = vpop.permute.xlu0 %462
  %v465 = vsel %vm46, %v249, %v463
  %v466 = vmax.f32 %v465, 0.0
  %vm467 = vcmask 259072
  %v468 = vsel %vm467, %v466, 0.0
  %469 = vadd.xlane.f32.xlu0 %v468
  %v470 = vpop.xlane.xlu0 %469
  %v471 = vrcp.pop 32.0
  %v472 = vmul.f32 %v470, %v471
  %v473 = vsub.f32 %v466, %v472
  %v474 = vmul.f32 %v473, %v473
  %v475 = vsel %vm467, %v474, 0.0
  %476 = vadd.xlane.f32.xlu0 %v475
  %v477 = vpop.xlane.xlu0 %476
  %v478 = vmul.f32 %v477, %v471
  %v479 = vadd.f32 %v478, 1e-05
  %v480 = vrsqrt.pop %v479
  %v481 = vmul.f32 %v473, %v480
  %v482 = vld [vmem:[%s7] sm:$0x1]
  %v484 = vlaneseq
  %v485 = vshrl.u32 %v484, 7
  %v486 = vsub.s32 0, %v485
  %v487 = vrot.slane %v482, %v486
  %v489 = vmul.f32 %v481, %v487
  %v490 = vld [vmem:[%s8] sm:$0x1]
  %v492 = vlaneseq
  %v493 = vshrl.u32 %v492, 7
  %v494 = vsub.s32 0, %v493
  %v495 = vrot.slane %v490, %v494
  %v497 = vadd.f32 %v489, %v495
  %498 = vst.msk [vmem:[%s9] sm:$0x3f] %vm467, %v497
  // Predicated region
  $region38: #{model_forward.47} parent=0 // pred_check
    _
  $region39: #{model_forward.47} parent=0 // pred_check_branch
    %500 = sbr.rel (0) target = $region41
  $region40: #{model_forward.47} parent=0 // pred_region
    _
  $region41: #{model_forward.47} parent=0 // pred_fallthru
    _
  // Predicated region
  $region42: #{model_forward.47} parent=0 // pred_check
    _
  $region43: #{model_forward.47} parent=0 // pred_check_branch
    %502 = sbr.rel (0) target = $region45
  $region44: #{model_forward.47} parent=0 // pred_region
    _
  $region45: #{model_forward.47} parent=0 // pred_fallthru
    _

// kernel: model_forward.55
$region0: #{model_forward.55}
  #allocation0 [shape = 'u32[]', space=smem, size = 0x4, offset = 0x4, fixed_abs, tag = 'smem constant byte address 0x4 - core index']
  #allocation1 [shape = 'u32[144,128]{1,0:T(1,128)}', space=vmem, size = 0x12000, scoped, tag = 'internal scratch']
  #allocation2 [shape = 'f32[1,1]{1,0:T(1,128)S(1)}', space=vmem, size = 0x200, scoped, tag = 'scoped memory for model_forward.55']
  %s0 = inlined_call_operand.vmem [shape: f32[1,96], index: 0, kind: input, shape index: {}]
  %s1 = inlined_call_operand.vmem [shape: f32[96,1], index: 1, kind: input, shape index: {}]
  %s2 = inlined_call_operand.<no memory space> [shape: f32[1,1], index: 2, kind: input, shape index: {}]
  %s3 = inlined_call_operand.hbm [shape: f32[1,1], index: 3, kind: output, shape index: {}]
  %s4 = sld [smem:[#allocation0]]
  $region22: #{model_forward.55} parent=0
    _
  %s6 = ssub.s32 1, %s4
  %s7 = scalar_select 0, %s6, %s4
  %v8 = vstv %s2
  %9 = vst [vmem:[#allocation2] sm:$0x1] %v8
  $region1: #{model_forward.55} parent=0
    #allocation3 [shape = 'u8[512]{0}', space=vmem, size = 0x400, scoped, tag = 'output window, operand 0, single buffered']
    #allocation4 [shape = 's32[1]{0}', space=sflag, size = 0x4, scoped, tag = 'scoped memory for model_forward.55']
    %10 = vsyncpa [#allocation4], 0
    // Predicated region
    $region2: #{model_forward.55} parent=1 // pred_check
      _
    $region3: #{model_forward.55} parent=1 // pred_check_branch
      %12 = sbr.rel (0) target = $region5
    $region4: #{model_forward.55} parent=1 // pred_region
      _
    $region5: #{model_forward.55} parent=1 // pred_fallthru
      _
    // Predicated region
    $region6: #{model_forward.55} parent=1 // pred_check
      _
    $region7: #{model_forward.55} parent=1 // pred_check_branch
      %14 = sbr.rel (0) target = $region9
    $region8: #{model_forward.55} parent=1 // pred_region
      _
    $region9: #{model_forward.55} parent=1 // pred_fallthru
      _
    // Predicated region
    $region10: #{model_forward.55} parent=1 // pred_check
      _
    $region11: #{model_forward.55} parent=1 // pred_check_branch
      %16 = sbr.rel (0) target = $region13
    $region12: #{model_forward.55} parent=1 // pred_region
      _
    $region13: #{model_forward.55} parent=1 // pred_fallthru
      _
    %v17 = vld [vmem:[%s0] sm:$0x1]
    %v18 = vld [vmem:[%s1] sm:$0xff]
    %v19 = vld [vmem:[%s1 + $0x8] sm:$0xff]
    %v20 = vld [vmem:[%s1 + $0x10] sm:$0xff]
    %v21 = vld [vmem:[%s1 + $0x18] sm:$0xff]
    %v22 = vld [vmem:[%s1 + $0x20] sm:$0xff]
    %v23 = vld [vmem:[%s1 + $0x28] sm:$0xff]
    %v24 = vld [vmem:[%s1 + $0x30] sm:$0xff]
    %v25 = vld [vmem:[%s1 + $0x38] sm:$0xff]
    %v26 = vld [vmem:[%s1 + $0x40] sm:$0xff]
    %v27 = vld [vmem:[%s1 + $0x48] sm:$0xff]
    %v28 = vld [vmem:[%s1 + $0x50] sm:$0xff]
    %v29 = vld [vmem:[%s1 + $0x58] sm:$0xff]
    %v30 = vld [vmem:[#allocation2] sm:$0x1]
    %vm31 = vcmask 785408
    %v33 = vsel %vm31, %v17, 0
    %35 = vmatprep.subr.mxu0 0.0
    %36 = vmatpush1.msra.mxu0 0.0
    %37 = vmatprep.subr.mxu0 0.0
    %38 = vmatpush1.msra.mxu0 0.0
    %39 = vmatprep.subr.mxu0 0.0
    %40 = vmatpush1.msra.mxu0 0.0
    %41 = vmatprep.subr.mxu0 0.0
    %42 = vmatpush1.msra.mxu0 0.0
    %43 = vmatprep.subr.mxu0 0.0
    %44 = vmatpush1.msra.mxu0 %v29
    %45 = vmatprep.subr.mxu0 0.0
    %46 = vmatpush1.msra.mxu0 %v28
    %47 = vmatprep.subr.mxu0 0.0
    %48 = vmatpush1.msra.mxu0 %v27
    %49 = vmatprep.subr.mxu0 0.0
    %50 = vmatpush1.msra.mxu0 %v26
    %51 = vmatprep.subr.mxu0 0.0
    %52 = vmatpush1.msra.mxu0 %v25
    %53 = vmatprep.subr.mxu0 0.0
    %54 = vmatpush1.msra.mxu0 %v24
    %55 = vmatprep.subr.mxu0 0.0
    %56 = vmatpush1.msra.mxu0 %v23
    %57 = vmatprep.subr.mxu0 0.0
    %58 = vmatpush1.msra.mxu0 %v22
    %59 = vmatprep.subr.mxu0 0.0
    %60 = vmatpush1.msra.mxu0 %v21
    %61 = vmatprep.subr.mxu0 0.0
    %62 = vmatpush1.msra.mxu0 %v20
    %63 = vmatprep.subr.mxu0 0.0
    %64 = vmatpush1.msra.mxu0 %v19
    %65 = vmatprep.subr.mxu0 0.0
    %66 = vmatpush1.msra.mxu0 %v18
    %67 = vmatprep.subr.mxu0 0.0
    %68 = vmatpush2.msra.mxu0 0.0
    %69 = vmatprep.subr.mxu0 0.0
    %70 = vmatpush2.msra.mxu0 0.0
    %71 = vmatprep.subr.mxu0 0.0
    %72 = vmatpush2.msra.mxu0 0.0
    %73 = vmatprep.subr.mxu0 0.0
    %74 = vmatpush2.msra.mxu0 0.0
    %75 = vmatprep.subr.mxu0 0.0
    %76 = vmatpush2.msra.mxu0 0.0
    %77 = vmatprep.subr.mxu0 0.0
    %78 = vmatpush2.msra.mxu0 0.0
    %79 = vmatprep.subr.mxu0 0.0
    %80 = vmatpush2.msra.mxu0 0.0
    %81 = vmatprep.subr.mxu0 0.0
    %82 = vmatpush2.msra.mxu0 0.0
    %83 = vmatprep.subr.mxu0 0.0
    %84 = vmatpush2.msra.mxu0 0.0
    %85 = vmatprep.subr.mxu0 0.0
    %86 = vmatpush2.msra.mxu0 0.0
    %87 = vmatprep.subr.mxu0 0.0
    %88 = vmatpush2.msra.mxu0 0.0
    %89 = vmatprep.subr.mxu0 0.0
    %90 = vmatpush2.msra.mxu0 0.0
    %91 = vmatprep.subr.mxu0 0.0
    %92 = vmatpush2.msra.mxu0 0.0
    %93 = vmatprep.subr.mxu0 0.0
    %94 = vmatpush2.msra.mxu0 0.0
    %95 = vmatprep.subr.mxu0 0.0
    %96 = vmatpush2.msra.mxu0 0.0
    %97 = vmatprep.subr.mxu0 0.0
    %98 = vmatpush2.msra.mxu0 0.0
    %99 = vmatprep.mubr.f32.mxu0 0.0
    %100 = vmatmul.mubr.f32.gmra.mxu0 %v33
    %v101 = vpop.f32.mrf.mxu0
    %v102 = vadd.f32 %v30, %v101
    %v103 = vpop.f32.mrf.mxu0
    %104 = vdwg.mxu0
    %vm105 = vcmask 0
    %106 = vst.msk [vmem:[#allocation3] sm:$0x1] %vm105, %v102
    // Predicated region
    $region14: #{model_forward.55} parent=1 // pred_check
      _
    $region15: #{model_forward.55} parent=1 // pred_check_branch
      %108 = sbr.rel (0) target = $region17
    $region16: #{model_forward.55} parent=1 // pred_region
      %s110 = ssub.s32 16, 16
      %111 = vsyncadd [#allocation4], %s110
      %s113 = sshll.u32 [#allocation3], 4
      %s114 = int_to_ptr.vmem [resolvable:$true] %s113
      %116 = dma.vmem_to_hbm [thread:$0]  %s114, 16, %s3, [#allocation4]
    $region17: #{model_forward.55} parent=1 // pred_fallthru
      _
    // Predicated region
    $region18: #{model_forward.55} parent=1 // pred_check
      _
    $region19: #{model_forward.55} parent=1 // pred_check_branch
      %118 = sbr.rel (0) target = $region21
    $region20: #{model_forward.55} parent=1 // pred_region
      %119 = dma.done [#allocation4], 16
    $region21: #{model_forward.55} parent=1 // pred_fallthru
      _
    %120 = vsyncpa [#allocation4], 1

// kernel: model_forward.46
$region0: #{model_forward.46}
  #allocation0 [shape = 'u32[]', space=smem, size = 0x4, offset = 0x4, fixed_abs, tag = 'smem constant byte address 0x4 - core index']
  #allocation1 [shape = 'u32[144,128]{1,0:T(1,128)}', space=vmem, size = 0x12000, scoped, tag = 'internal scratch']
  #allocation2 [shape = 's32[1]{0:T(128)S(6)}', space=smem, size = 0x200, scoped, tag = 'scoped memory for model_forward.46']
  %s0 = inlined_call_operand.<no memory space> [shape: s32[1], index: 0, kind: input, shape index: {}]
  %s1 = inlined_call_operand.vmem [shape: f32[2,96], index: 1, kind: input, shape index: {}]
  %s2 = inlined_call_operand.vmem [shape: f32[8,96], index: 2, kind: input, shape index: {}]
  %s3 = inlined_call_operand.vmem [shape: f32[2,8], index: 3, kind: input, shape index: {}]
  %s4 = inlined_call_operand.vmem [shape: s32[2,8], index: 4, kind: input, shape index: {}]
  %s5 = inlined_call_operand.vmem [shape: f32[2,16], index: 5, kind: input, shape index: {}]
  %s6 = inlined_call_operand.vmem [shape: f32[32,16], index: 6, kind: input, shape index: {}]
  %s7 = inlined_call_operand.vmem [shape: f32[6,96], index: 7, kind: input, shape index: {}]
  %s8 = inlined_call_operand.vmem [shape: f32[2,6], index: 8, kind: input, shape index: {}]
  %s9 = inlined_call_operand.vmem [shape: s32[2,6], index: 9, kind: input, shape index: {}]
  %s10 = inlined_call_operand.vmem [shape: f32[2,16], index: 10, kind: input, shape index: {}]
  %s11 = inlined_call_operand.vmem [shape: f32[32,16], index: 11, kind: input, shape index: {}]
  %s12 = inlined_call_operand.vmem [shape: f32[1,32], index: 12, kind: input, shape index: {}]
  %s13 = inlined_call_operand.vmem [shape: f32[1,32], index: 13, kind: input, shape index: {}]
  %s14 = inlined_call_operand.vmem [shape: f32[2,32], index: 14, kind: output, shape index: {}]
  %s15 = sld [smem:[#allocation0]]
  $region66: #{model_forward.46} parent=0
    _
  %s17 = ssub.s32 1, %s15
  %s18 = scalar_select 0, %s17, %s15
  %19 = sst [smem:[#allocation2]] %s0
  // Predicated region
  $region2: #{model_forward.46} parent=0 // pred_check
    _
  $region3: #{model_forward.46} parent=0 // pred_check_branch
    %21 = sbr.rel (0) target = $region5
  $region4: #{model_forward.46} parent=0 // pred_region
    _
  $region5: #{model_forward.46} parent=0 // pred_fallthru
    _
  // Predicated region
  $region6: #{model_forward.46} parent=0 // pred_check
    _
  $region7: #{model_forward.46} parent=0 // pred_check_branch
    %23 = sbr.rel (0) target = $region9
  $region8: #{model_forward.46} parent=0 // pred_region
    _
  $region9: #{model_forward.46} parent=0 // pred_fallthru
    _
  // Predicated region
  $region10: #{model_forward.46} parent=0 // pred_check
    _
  $region11: #{model_forward.46} parent=0 // pred_check_branch
    %25 = sbr.rel (0) target = $region13
  $region12: #{model_forward.46} parent=0 // pred_region
    _
  $region13: #{model_forward.46} parent=0 // pred_fallthru
    _
  // Predicated region
  $region14: #{model_forward.46} parent=0 // pred_check
    _
  $region15: #{model_forward.46} parent=0 // pred_check_branch
    %27 = sbr.rel (0) target = $region17
  $region16: #{model_forward.46} parent=0 // pred_region
    _
  $region17: #{model_forward.46} parent=0 // pred_fallthru
    _
  // Predicated region
  $region18: #{model_forward.46} parent=0 // pred_check
    _
  $region19: #{model_forward.46} parent=0 // pred_check_branch
    %29 = sbr.rel (0) target = $region21
  $region20: #{model_forward.46} parent=0 // pred_region
    _
  $region21: #{model_forward.46} parent=0 // pred_fallthru
    _
  // Predicated region
  $region22: #{model_forward.46} parent=0 // pred_check
    _
  $region23: #{model_forward.46} parent=0 // pred_check_branch
    %31 = sbr.rel (0) target = $region25
  $region24: #{model_forward.46} parent=0 // pred_region
    _
  $region25: #{model_forward.46} parent=0 // pred_fallthru
    _
  // Predicated region
  $region26: #{model_forward.46} parent=0 // pred_check
    _
  $region27: #{model_forward.46} parent=0 // pred_check_branch
    %33 = sbr.rel (0) target = $region29
  $region28: #{model_forward.46} parent=0 // pred_region
    _
  $region29: #{model_forward.46} parent=0 // pred_fallthru
    _
  // Predicated region
  $region30: #{model_forward.46} parent=0 // pred_check
    _
  $region31: #{model_forward.46} parent=0 // pred_check_branch
    %35 = sbr.rel (0) target = $region33
  $region32: #{model_forward.46} parent=0 // pred_region
    _
  $region33: #{model_forward.46} parent=0 // pred_fallthru
    _
  // Predicated region
  $region34: #{model_forward.46} parent=0 // pred_check
    _
  $region35: #{model_forward.46} parent=0 // pred_check_branch
    %37 = sbr.rel (0) target = $region37
  $region36: #{model_forward.46} parent=0 // pred_region
    _
  $region37: #{model_forward.46} parent=0 // pred_fallthru
    _
  // Predicated region
  $region38: #{model_forward.46} parent=0 // pred_check
    _
  $region39: #{model_forward.46} parent=0 // pred_check_branch
    %39 = sbr.rel (0) target = $region41
  $region40: #{model_forward.46} parent=0 // pred_region
    _
  $region41: #{model_forward.46} parent=0 // pred_fallthru
    _
  // Predicated region
  $region42: #{model_forward.46} parent=0 // pred_check
    _
  $region43: #{model_forward.46} parent=0 // pred_check_branch
    %41 = sbr.rel (0) target = $region45
  $region44: #{model_forward.46} parent=0 // pred_region
    _
  $region45: #{model_forward.46} parent=0 // pred_fallthru
    _
  // Predicated region
  $region46: #{model_forward.46} parent=0 // pred_check
    _
  $region47: #{model_forward.46} parent=0 // pred_check_branch
    %43 = sbr.rel (0) target = $region49
  $region48: #{model_forward.46} parent=0 // pred_region
    _
  $region49: #{model_forward.46} parent=0 // pred_fallthru
    _
  // Predicated region
  $region50: #{model_forward.46} parent=0 // pred_check
    _
  $region51: #{model_forward.46} parent=0 // pred_check_branch
    %45 = sbr.rel (0) target = $region53
  $region52: #{model_forward.46} parent=0 // pred_region
    _
  $region53: #{model_forward.46} parent=0 // pred_fallthru
    _
  // Predicated region
  $region54: #{model_forward.46} parent=0 // pred_check
    _
  $region55: #{model_forward.46} parent=0 // pred_check_branch
    %47 = sbr.rel (0) target = $region57
  $region56: #{model_forward.46} parent=0 // pred_region
    _
  $region57: #{model_forward.46} parent=0 // pred_fallthru
    _
  %v49 = vld [vmem:[%s1] sm:$0x3]
  %s50 = sld [smem:[#allocation2]]
  %v51 = vld [vmem:[%s2] sm:$0xff]
  %v52 = vld [vmem:[%s3] sm:$0x3]
  %v53 = vld [vmem:[%s4] sm:$0x3]
  %v54 = vstv %s50
  %vm55 = vcmp.eq.s32.totalorder %v53, %v54
  %v56 = vsel %vm55, 1, 0
  %v57 = vcvt.s32.f32 %v56
  %v58 = vld [vmem:[%s5] sm:$0x3]
  %v59 = vld [vmem:[%s6] sm:$0xff]
  %v60 = vld [vmem:[%s6 + $0x8] sm:$0xff]
  %v61 = vld [vmem:[%s6 + $0x10] sm:$0xff]
  %v62 = vld [vmem:[%s6 + $0x18] sm:$0xff]
  %v63 = vpack.c.bf16 %v49, %v49
  %v64 = vpack.c.bf16 %v51, %v51
  %v65 = vpack.c.bf16 %v58, %v58
  %v66 = vpack.c.bf16 %v60, %v59
  %vm67 = vcmask 130048
  %v69 = vsel %vm67, %v65, 0
  %v72 = vsel %vm67, %v64, 0
  %74 = vmatprep.subr.bf16.mxu0 0
  %75 = vmatpush1.bf16.xpose.msra.mxu0 0
  %76 = vmatprep.subr.bf16.mxu0 0
  %77 = vmatpush1.bf16.xpose.msra.mxu0 0
  %78 = vmatprep.subr.bf16.mxu0 0
  %79 = vmatpush1.bf16.xpose.msra.mxu0 0
  %80 = vmatprep.subr.bf16.mxu0 0
  %81 = vmatpush1.bf16.xpose.msra.mxu0 0
  %82 = vmatprep.subr.bf16.mxu0 0
  %83 = vmatpush1.bf16.xpose.msra.mxu0 0
  %84 = vmatprep.subr.bf16.mxu0 0
  %85 = vmatpush1.bf16.xpose.msra.mxu0 0
  %86 = vmatprep.subr.bf16.mxu0 0
  %87 = vmatpush1.bf16.xpose.msra.mxu0 0
  %88 = vmatprep.subr.bf16.mxu0 0
  %89 = vmatpush1.bf16.xpose.msra.mxu0 %v72
  %90 = vmatprep.subr.bf16.mxu0 0
  %91 = vmatpush2.bf16.xpose.msra.mxu0 0
  %92 = vmatprep.subr.bf16.mxu0 0
  %93 = vmatpush2.bf16.xpose.msra.mxu0 0
  %94 = vmatprep.subr.bf16.mxu0 0
  %95 = vmatpush2.bf16.xpose.msra.mxu0 0
  %96 = vmatprep.subr.bf16.mxu0 0
  %97 = vmatpush2.bf16.xpose.msra.mxu0 0
  %98 = vmatprep.subr.bf16.mxu0 0
  %99 = vmatpush2.bf16.xpose.msra.mxu0 0
  %100 = vmatprep.subr.bf16.mxu0 0
  %101 = vmatpush2.bf16.xpose.msra.mxu0 0
  %102 = vmatprep.subr.bf16.mxu0 0
  %103 = vmatpush2.bf16.xpose.msra.mxu0 0
  %104 = vmatprep.subr.bf16.mxu0 0
  %105 = vmatpush2.bf16.xpose.msra.mxu0 0
  %106 = vmatprep.mubr.bf16.mxu0 0
  %107 = vmatmul.mubr.bf16.gmra.mxu0 %v69
  %v108 = vpop.f32.mrf.mxu0
  %v109 = vadd.f32 0.0, %v108
  %v110 = vpop.f32.mrf.mxu0
  %v111 = vpop.f32.mrf.mxu0
  %v112 = vpop.f32.mrf.mxu0
  %113 = vdwg.mxu0
  %v114 = vlaneseq
  %v115 = vshrl.u32 %v114, 7
  %v116 = vsub.s32 0, %v115
  %v117 = vrot.slane %v109, %v116
  %v118 = vmul.f32 %v52, %v117
  %120 = vrot.lane.b32.xlu0 %v63, 96
  %v121 = vpop.permute.xlu0 %120
  %v123 = vsel %vm67, %v121, 0
  %125 = vmatprep.subr.bf16.mxu0 0
  %126 = vmatpush1.bf16.xpose.msra.mxu0 0
  %127 = vmatprep.subr.bf16.mxu0 0
  %128 = vmatpush1.bf16.xpose.msra.mxu0 0
  %129 = vmatprep.subr.bf16.mxu0 0
  %130 = vmatpush1.bf16.xpose.msra.mxu0 0
  %131 = vmatprep.subr.bf16.mxu0 0
  %132 = vmatpush1.bf16.xpose.msra.mxu0 0
  %133 = vmatprep.subr.bf16.mxu0 0
  %134 = vmatpush1.bf16.xpose.msra.mxu0 0
  %135 = vmatprep.subr.bf16.mxu0 0
  %136 = vmatpush1.bf16.xpose.msra.mxu0 0
  %137 = vmatprep.subr.bf16.mxu0 0
  %138 = vmatpush1.bf16.xpose.msra.mxu0 0
  %139 = vmatprep.subr.bf16.mxu0 0
  %140 = vmatpush1.bf16.xpose.msra.mxu0 %v72
  %141 = vmatprep.subr.bf16.mxu0 0
  %142 = vmatpush2.bf16.xpose.msra.mxu0 0
  %143 = vmatprep.subr.bf16.mxu0 0
  %144 = vmatpush2.bf16.xpose.msra.mxu0 0
  %145 = vmatprep.subr.bf16.mxu0 0
  %146 = vmatpush2.bf16.xpose.msra.mxu0 0
  %147 = vmatprep.subr.bf16.mxu0 0
  %148 = vmatpush2.bf16.xpose.msra.mxu0 0
  %149 = vmatprep.subr.bf16.mxu0 0
  %150 = vmatpush2.bf16.xpose.msra.mxu0 0
  %151 = vmatprep.subr.bf16.mxu0 0
  %152 = vmatpush2.bf16.xpose.msra.mxu0 0
  %153 = vmatprep.subr.bf16.mxu0 0
  %154 = vmatpush2.bf16.xpose.msra.mxu0 0
  %155 = vmatprep.subr.bf16.mxu0 0
  %156 = vmatpush2.bf16.xpose.msra.mxu0 0
  %157 = vmatprep.mubr.bf16.mxu0 0
  %158 = vmatmul.mubr.bf16.gmra.mxu0 %v123
  %v159 = vpop.f32.mrf.mxu0
  %v160 = vadd.f32 %v118, %v159
  %v161 = vpop.f32.mrf.mxu0
  %v162 = vpop.f32.mrf.mxu0
  %v163 = vpop.f32.mrf.mxu0
  %164 = vdwg.mxu0
  %v165 = vmul.f32 %v160, 0.25
  %vm166 = vcmask 58368
  %v167 = vsel %vm166, %v165, -inf
  %168 = vmax.xlane.f32.xlu0 %v167
  %v169 = vpop.xlane.xlu0 %168
  %v170 = vsub.f32 %v165, %v169
  %v171 = vmul.f32 %v170, 1.442695
  %v172 = vpow.pop %v171
  %v173 = vmul.f32 %v172, %v57
  %v174 = vsel %vm166, %v173, 0.0
  %175 = vadd.xlane.f32.xlu0 %v174
  %v176 = vpop.xlane.xlu0 %175
  %v177 = vmax.f32 %v176, 1e-30
  %v178 = vrcp.pop %v177
  %v179 = vmul.f32 %v173, %v178
  %v180 = vpack.c.bf16 %v179, %v179
  %182 = vrot.lane.b32.xlu0 %v64, 64
  %v183 = vpop.permute.xlu0 %182
  %vm184 = vcmask 64512
  %v186 = vsel %vm184, %v180, 0
  %vm188 = vcmask 1043456
  %v190 = vsel %vm188, %v183, 0
  %192 = vmatprep.subr.bf16.mxu0 0
  %193 = vmatpush1.bf16.msra.mxu0 0
  %194 = vmatprep.subr.bf16.mxu0 0
  %195 = vmatpush1.bf16.msra.mxu0 0
  %196 = vmatprep.subr.bf16.mxu0 0
  %197 = vmatpush1.bf16.msra.mxu0 0
  %198 = vmatprep.subr.bf16.mxu0 0
  %199 = vmatpush1.bf16.msra.mxu0 0
  %200 = vmatprep.subr.bf16.mxu0 0
  %201 = vmatpush1.bf16.msra.mxu0 0
  %202 = vmatprep.subr.bf16.mxu0 0
  %203 = vmatpush1.bf16.msra.mxu0 0
  %204 = vmatprep.subr.bf16.mxu0 0
  %205 = vmatpush1.bf16.msra.mxu0 0
  %206 = vmatprep.subr.bf16.mxu0 0
  %207 = vmatpush1.bf16.msra.mxu0 %v190
  %208 = vmatprep.subr.bf16.mxu0 0
  %209 = vmatpush2.bf16.msra.mxu0 0
  %210 = vmatprep.subr.bf16.mxu0 0
  %211 = vmatpush2.bf16.msra.mxu0 0
  %212 = vmatprep.subr.bf16.mxu0 0
  %213 = vmatpush2.bf16.msra.mxu0 0
  %214 = vmatprep.subr.bf16.mxu0 0
  %215 = vmatpush2.bf16.msra.mxu0 0
  %216 = vmatprep.subr.bf16.mxu0 0
  %217 = vmatpush2.bf16.msra.mxu0 0
  %218 = vmatprep.subr.bf16.mxu0 0
  %219 = vmatpush2.bf16.msra.mxu0 0
  %220 = vmatprep.subr.bf16.mxu0 0
  %221 = vmatpush2.bf16.msra.mxu0 0
  %222 = vmatprep.subr.bf16.mxu0 0
  %223 = vmatpush2.bf16.msra.mxu0 0
  %224 = vmatprep.mubr.bf16.mxu0 0
  %225 = vmatmul.mubr.bf16.gmra.mxu0 %v186
  %v226 = vpop.f32.mrf.mxu0
  %v227 = vadd.f32 0.0, %v226
  %v228 = vpop.f32.mrf.mxu0
  %v229 = vpop.f32.mrf.mxu0
  %v230 = vpop.f32.mrf.mxu0
  %231 = vdwg.mxu0
  %v232 = vpack.c.bf16 %v227, %v227
  %v234 = vsel %vm67, %v232, 0
  %236 = vmatprep.subr.bf16.mxu0 0
  %237 = vmatpush1.bf16.msra.mxu0 0
  %238 = vmatprep.subr.bf16.mxu0 0
  %239 = vmatpush1.bf16.msra.mxu0 0
  %240 = vmatprep.subr.bf16.mxu0 0
  %241 = vmatpush1.bf16.msra.mxu0 0
  %242 = vmatprep.subr.bf16.mxu0 0
  %243 = vmatpush1.bf16.msra.mxu0 0
  %244 = vmatprep.subr.bf16.mxu0 0
  %245 = vmatpush1.bf16.msra.mxu0 0
  %246 = vmatprep.subr.bf16.mxu0 0
  %247 = vmatpush1.bf16.msra.mxu0 0
  %248 = vmatprep.subr.bf16.mxu0 0
  %249 = vmatpush1.bf16.msra.mxu0 0
  %250 = vmatprep.subr.bf16.mxu0 0
  %251 = vmatpush1.bf16.msra.mxu0 %v66
  %252 = vmatprep.subr.bf16.mxu0 0
  %253 = vmatpush2.bf16.msra.mxu0 0
  %254 = vmatprep.subr.bf16.mxu0 0
  %255 = vmatpush2.bf16.msra.mxu0 0
  %256 = vmatprep.subr.bf16.mxu0 0
  %257 = vmatpush2.bf16.msra.mxu0 0
  %258 = vmatprep.subr.bf16.mxu0 0
  %259 = vmatpush2.bf16.msra.mxu0 0
  %260 = vmatprep.subr.bf16.mxu0 0
  %261 = vmatpush2.bf16.msra.mxu0 0
  %262 = vmatprep.subr.bf16.mxu0 0
  %263 = vmatpush2.bf16.msra.mxu0 0
  %264 = vmatprep.subr.bf16.mxu0 0
  %265 = vmatpush2.bf16.msra.mxu0 0
  %266 = vmatprep.subr.bf16.mxu0 0
  %267 = vmatpush2.bf16.msra.mxu0 0
  %268 = vmatprep.mubr.bf16.mxu0 0
  %269 = vmatmul.mubr.bf16.gmra.mxu0 %v234
  %v270 = vpop.f32.mrf.mxu0
  %v271 = vadd.f32 0.0, %v270
  %v272 = vpop.f32.mrf.mxu0
  %v273 = vpop.f32.mrf.mxu0
  %v274 = vpop.f32.mrf.mxu0
  %275 = vdwg.mxu0
  %v276 = vpack.c.bf16 %v62, %v61
  %v277 = vshrl.u32 %v65, 16
  %279 = vrot.lane.b32.xlu0 %v64, 112
  %v280 = vpop.permute.xlu0 %279
  %v282 = vsel %vm67, %v277, 0
  %v285 = vsel %vm67, %v280, 0
  %287 = vmatprep.subr.bf16.mxu0 0
  %288 = vmatpush1.bf16.xpose.msra.mxu0 0
  %289 = vmatprep.subr.bf16.mxu0 0
  %290 = vmatpush1.bf16.xpose.msra.mxu0 0
  %291 = vmatprep.subr.bf16.mxu0 0
  %292 = vmatpush1.bf16.xpose.msra.mxu0 0
  %293 = vmatprep.subr.bf16.mxu0 0
  %294 = vmatpush1.bf16.xpose.msra.mxu0 0
  %295 = vmatprep.subr.bf16.mxu0 0
  %296 = vmatpush1.bf16.xpose.msra.mxu0 0
  %297 = vmatprep.subr.bf16.mxu0 0
  %298 = vmatpush1.bf16.xpose.msra.mxu0 0
  %299 = vmatprep.subr.bf16.mxu0 0
  %300 = vmatpush1.bf16.xpose.msra.mxu0 0
  %301 = vmatprep.subr.bf16.mxu0 0
  %302 = vmatpush1.bf16.xpose.msra.mxu0 %v285
  %303 = vmatprep.subr.bf16.mxu0 0
  %304 = vmatpush2.bf16.xpose.msra.mxu0 0
  %305 = vmatprep.subr.bf16.mxu0 0
  %306 = vmatpush2.bf16.xpose.msra.mxu0 0
  %307 = vmatprep.subr.bf16.mxu0 0
  %308 = vmatpush2.bf16.xpose.msra.mxu0 0
  %309 = vmatprep.subr.bf16.mxu0 0
  %310 = vmatpush2.bf16.xpose.msra.mxu0 0
  %311 = vmatprep.subr.bf16.mxu0 0
  %312 = vmatpush2.bf16.xpose.msra.mxu0 0
  %313 = vmatprep.subr.bf16.mxu0 0
  %314 = vmatpush2.bf16.xpose.msra.mxu0 0
  %315 = vmatprep.subr.bf16.mxu0 0
  %316 = vmatpush2.bf16.xpose.msra.mxu0 0
  %317 = vmatprep.subr.bf16.mxu0 0
  %318 = vmatpush2.bf16.xpose.msra.mxu0 0
  %319 = vmatprep.mubr.bf16.mxu0 0
  %320 = vmatmul.mubr.bf16.gmra.mxu0 %v282
  %v321 = vpop.f32.mrf.mxu0
  %v322 = vadd.f32 0.0, %v321
  %v323 = vpop.f32.mrf.mxu0
  %v324 = vpop.f32.mrf.mxu0
  %v325 = vpop.f32.mrf.mxu0
  %326 = vdwg.mxu0
  %v327 = vlaneseq
  %v328 = vshrl.u32 %v327, 7
  %v329 = vsub.s32 0, %v328
  %v330 = vrot.slane %v322, %v329
  %v331 = vmul.f32 %v52, %v330
  %332 = vrot.lane.b32.xlu0 %v63, 80
  %v333 = vpop.permute.xlu0 %332
  %v335 = vsel %vm67, %v333, 0
  %337 = vmatprep.subr.bf16.mxu0 0
  %338 = vmatpush1.bf16.xpose.msra.mxu0 0
  %339 = vmatprep.subr.bf16.mxu0 0
  %340 = vmatpush1.bf16.xpose.msra.mxu0 0
  %341 = vmatprep.subr.bf16.mxu0 0
  %342 = vmatpush1.bf16.xpose.msra.mxu0 0
  %343 = vmatprep.subr.bf16.mxu0 0
  %344 = vmatpush1.bf16.xpose.msra.mxu0 0
  %345 = vmatprep.subr.bf16.mxu0 0
  %346 = vmatpush1.bf16.xpose.msra.mxu0 0
  %347 = vmatprep.subr.bf16.mxu0 0
  %348 = vmatpush1.bf16.xpose.msra.mxu0 0
  %349 = vmatprep.subr.bf16.mxu0 0
  %350 = vmatpush1.bf16.xpose.msra.mxu0 0
  %351 = vmatprep.subr.bf16.mxu0 0
  %352 = vmatpush1.bf16.xpose.msra.mxu0 %v285
  %353 = vmatprep.subr.bf16.mxu0 0
  %354 = vmatpush2.bf16.xpose.msra.mxu0 0
  %355 = vmatprep.subr.bf16.mxu0 0
  %356 = vmatpush2.bf16.xpose.msra.mxu0 0
  %357 = vmatprep.subr.bf16.mxu0 0
  %358 = vmatpush2.bf16.xpose.msra.mxu0 0
  %359 = vmatprep.subr.bf16.mxu0 0
  %360 = vmatpush2.bf16.xpose.msra.mxu0 0
  %361 = vmatprep.subr.bf16.mxu0 0
  %362 = vmatpush2.bf16.xpose.msra.mxu0 0
  %363 = vmatprep.subr.bf16.mxu0 0
  %364 = vmatpush2.bf16.xpose.msra.mxu0 0
  %365 = vmatprep.subr.bf16.mxu0 0
  %366 = vmatpush2.bf16.xpose.msra.mxu0 0
  %367 = vmatprep.subr.bf16.mxu0 0
  %368 = vmatpush2.bf16.xpose.msra.mxu0 0
  %369 = vmatprep.mubr.bf16.mxu0 0
  %370 = vmatmul.mubr.bf16.gmra.mxu0 %v335
  %v371 = vpop.f32.mrf.mxu0
  %v372 = vadd.f32 %v331, %v371
  %v373 = vpop.f32.mrf.mxu0
  %v374 = vpop.f32.mrf.mxu0
  %v375 = vpop.f32.mrf.mxu0
  %376 = vdwg.mxu0
  %v377 = vmul.f32 %v372, 0.25
  %v378 = vsel %vm166, %v377, -inf
  %379 = vmax.xlane.f32.xlu0 %v378
  %v380 = vpop.xlane.xlu0 %379
  %v381 = vsub.f32 %v377, %v380
  %v382 = vmul.f32 %v381, 1.442695
  %v383 = vpow.pop %v382
  %v384 = vmul.f32 %v383, %v57
  %v385 = vsel %vm166, %v384, 0.0
  %386 = vadd.xlane.f32.xlu0 %v385
  %v387 = vpop.xlane.xlu0 %386
  %v388 = vmax.f32 %v387, 1e-30
  %v389 = vrcp.pop %v388
  %v390 = vmul.f32 %v384, %v389
  %v391 = vpack.c.bf16 %v390, %v390
  %392 = vrot.lane.b32.xlu0 %v64, 48
  %v393 = vpop.permute.xlu0 %392
  %v395 = vsel %vm184, %v391, 0
  %v398 = vsel %vm188, %v393, 0
  %400 = vmatprep.subr.bf16.mxu0 0
  %401 = vmatpush1.bf16.msra.mxu0 0
  %402 = vmatprep.subr.bf16.mxu0 0
  %403 = vmatpush1.bf16.msra.mxu0 0
  %404 = vmatprep.subr.bf16.mxu0 0
  %405 = vmatpush1.bf16.msra.mxu0 0
  %406 = vmatprep.subr.bf16.mxu0 0
  %407 = vmatpush1.bf16.msra.mxu0 0
  %408 = vmatprep.subr.bf16.mxu0 0
  %409 = vmatpush1.bf16.msra.mxu0 0
  %410 = vmatprep.subr.bf16.mxu0 0
  %411 = vmatpush1.bf16.msra.mxu0 0
  %412 = vmatprep.subr.bf16.mxu0 0
  %413 = vmatpush1.bf16.msra.mxu0 0
  %414 = vmatprep.subr.bf16.mxu0 0
  %415 = vmatpush1.bf16.msra.mxu0 %v398
  %416 = vmatprep.subr.bf16.mxu0 0
  %417 = vmatpush2.bf16.msra.mxu0 0
  %418 = vmatprep.subr.bf16.mxu0 0
  %419 = vmatpush2.bf16.msra.mxu0 0
  %420 = vmatprep.subr.bf16.mxu0 0
  %421 = vmatpush2.bf16.msra.mxu0 0
  %422 = vmatprep.subr.bf16.mxu0 0
  %423 = vmatpush2.bf16.msra.mxu0 0
  %424 = vmatprep.subr.bf16.mxu0 0
  %425 = vmatpush2.bf16.msra.mxu0 0
  %426 = vmatprep.subr.bf16.mxu0 0
  %427 = vmatpush2.bf16.msra.mxu0 0
  %428 = vmatprep.subr.bf16.mxu0 0
  %429 = vmatpush2.bf16.msra.mxu0 0
  %430 = vmatprep.subr.bf16.mxu0 0
  %431 = vmatpush2.bf16.msra.mxu0 0
  %432 = vmatprep.mubr.bf16.mxu0 0
  %433 = vmatmul.mubr.bf16.gmra.mxu0 %v395
  %v434 = vpop.f32.mrf.mxu0
  %v435 = vadd.f32 0.0, %v434
  %v436 = vpop.f32.mrf.mxu0
  %v437 = vpop.f32.mrf.mxu0
  %v438 = vpop.f32.mrf.mxu0
  %439 = vdwg.mxu0
  %v440 = vpack.c.bf16 %v435, %v435
  %v442 = vsel %vm67, %v440, 0
  %444 = vmatprep.subr.bf16.mxu0 0
  %445 = vmatpush1.bf16.msra.mxu0 0
  %446 = vmatprep.subr.bf16.mxu0 0
  %447 = vmatpush1.bf16.msra.mxu0 0
  %448 = vmatprep.subr.bf16.mxu0 0
  %449 = vmatpush1.bf16.msra.mxu0 0
  %450 = vmatprep.subr.bf16.mxu0 0
  %451 = vmatpush1.bf16.msra.mxu0 0
  %452 = vmatprep.subr.bf16.mxu0 0
  %453 = vmatpush1.bf16.msra.mxu0 0
  %454 = vmatprep.subr.bf16.mxu0 0
  %455 = vmatpush1.bf16.msra.mxu0 0
  %456 = vmatprep.subr.bf16.mxu0 0
  %457 = vmatpush1.bf16.msra.mxu0 0
  %458 = vmatprep.subr.bf16.mxu0 0
  %459 = vmatpush1.bf16.msra.mxu0 %v276
  %460 = vmatprep.subr.bf16.mxu0 0
  %461 = vmatpush2.bf16.msra.mxu0 0
  %462 = vmatprep.subr.bf16.mxu0 0
  %463 = vmatpush2.bf16.msra.mxu0 0
  %464 = vmatprep.subr.bf16.mxu0 0
  %465 = vmatpush2.bf16.msra.mxu0 0
  %466 = vmatprep.subr.bf16.mxu0 0
  %467 = vmatpush2.bf16.msra.mxu0 0
  %468 = vmatprep.subr.bf16.mxu0 0
  %469 = vmatpush2.bf16.msra.mxu0 0
  %470 = vmatprep.subr.bf16.mxu0 0
  %471 = vmatpush2.bf16.msra.mxu0 0
  %472 = vmatprep.subr.bf16.mxu0 0
  %473 = vmatpush2.bf16.msra.mxu0 0
  %474 = vmatprep.subr.bf16.mxu0 0
  %475 = vmatpush2.bf16.msra.mxu0 0
  %476 = vmatprep.mubr.bf16.mxu0 0
  %477 = vmatmul.mubr.bf16.gmra.mxu0 %v442
  %v478 = vpop.f32.mrf.mxu0
  %v479 = vadd.f32 0.0, %v478
  %v480 = vpop.f32.mrf.mxu0
  %v481 = vpop.f32.mrf.mxu0
  %v482 = vpop.f32.mrf.mxu0
  %483 = vdwg.mxu0
  %485 = vrot.lane.b32.xlu0 %v479, 16
  %v486 = vpop.permute.xlu0 %485
  %v488 = vsel %vm67, %v271, %v486
  %v489 = vld [vmem:[%s7] sm:$0x3f]
  %v490 = vld [vmem:[%s8] sm:$0x3]
  %v491 = vld [vmem:[%s9] sm:$0x3]
  %vm492 = vcmp.eq.s32.totalorder %v491, %v54
  %v493 = vsel %vm492, 1, 0
  %v494 = vcvt.s32.f32 %v493
  %v495 = vld [vmem:[%s10] sm:$0x3]
  %v496 = vld [vmem:[%s11] sm:$0xff]
  %v497 = vld [vmem:[%s11 + $0x8] sm:$0xff]
  %v498 = vld [vmem:[%s11 + $0x10] sm:$0xff]
  %v499 = vld [vmem:[%s11 + $0x18] sm:$0xff]
  %v500 = vpack.c.bf16 %v489, %v489
  %v501 = vpack.c.bf16 %v495, %v495
  %v502 = vpack.c.bf16 %v497, %v496
  %v504 = vsel %vm67, %v501, 0
  %v507 = vsel %vm67, %v500, 0
  %509 = vmatprep.subr.bf16.mxu0 0
  %510 = vmatpush1.bf16.xpose.msra.mxu0 0
  %511 = vmatprep.subr.bf16.mxu0 0
  %512 = vmatpush1.bf16.xpose.msra.mxu0 0
  %513 = vmatprep.subr.bf16.mxu0 0
  %514 = vmatpush1.bf16.xpose.msra.mxu0 0
  %515 = vmatprep.subr.bf16.mxu0 0
  %516 = vmatpush1.bf16.xpose.msra.mxu0 0
  %517 = vmatprep.subr.bf16.mxu0 0
  %518 = vmatpush1.bf16.xpose.msra.mxu0 0
  %519 = vmatprep.subr.bf16.mxu0 0
  %520 = vmatpush1.bf16.xpose.msra.mxu0 0
  %521 = vmatprep.subr.bf16.mxu0 0
  %522 = vmatpush1.bf16.xpose.msra.mxu0 0
  %523 = vmatprep.subr.bf16.mxu0 0
  %524 = vmatpush1.bf16.xpose.msra.mxu0 %v507
  %525 = vmatprep.subr.bf16.mxu0 0
  %526 = vmatpush2.bf16.xpose.msra.mxu0 0
  %527 = vmatprep.subr.bf16.mxu0 0
  %528 = vmatpush2.bf16.xpose.msra.mxu0 0
  %529 = vmatprep.subr.bf16.mxu0 0
  %530 = vmatpush2.bf16.xpose.msra.mxu0 0
  %531 = vmatprep.subr.bf16.mxu0 0
  %532 = vmatpush2.bf16.xpose.msra.mxu0 0
  %533 = vmatprep.subr.bf16.mxu0 0
  %534 = vmatpush2.bf16.xpose.msra.mxu0 0
  %535 = vmatprep.subr.bf16.mxu0 0
  %536 = vmatpush2.bf16.xpose.msra.mxu0 0
  %537 = vmatprep.subr.bf16.mxu0 0
  %538 = vmatpush2.bf16.xpose.msra.mxu0 0
  %539 = vmatprep.subr.bf16.mxu0 0
  %540 = vmatpush2.bf16.xpose.msra.mxu0 0
  %541 = vmatprep.mubr.bf16.mxu0 0
  %542 = vmatmul.mubr.bf16.gmra.mxu0 %v504
  %v543 = vpop.f32.mrf.mxu0
  %v544 = vadd.f32 0.0, %v543
  %v545 = vpop.f32.mrf.mxu0
  %v546 = vpop.f32.mrf.mxu0
  %v547 = vpop.f32.mrf.mxu0
  %548 = vdwg.mxu0
  %v549 = vlaneseq
  %v550 = vshrl.u32 %v549, 7
  %v551 = vsub.s32 0, %v550
  %v552 = vrot.slane %v544, %v551
  %v553 = vmul.f32 %v490, %v552
  %554 = vmatprep.subr.bf16.mxu0 0
  %555 = vmatpush1.bf16.xpose.msra.mxu0 0
  %556 = vmatprep.subr.bf16.mxu0 0
  %557 = vmatpush1.bf16.xpose.msra.mxu0 0
  %558 = vmatprep.subr.bf16.mxu0 0
  %559 = vmatpush1.bf16.xpose.msra.mxu0 0
  %560 = vmatprep.subr.bf16.mxu0 0
  %561 = vmatpush1.bf16.xpose.msra.mxu0 0
  %562 = vmatprep.subr.bf16.mxu0 0
  %563 = vmatpush1.bf16.xpose.msra.mxu0 0
  %564 = vmatprep.subr.bf16.mxu0 0
  %565 = vmatpush1.bf16.xpose.msra.mxu0 0
  %566 = vmatprep.subr.bf16.mxu0 0
  %567 = vmatpush1.bf16.xpose.msra.mxu0 0
  %568 = vmatprep.subr.bf16.mxu0 0
  %569 = vmatpush1.bf16.xpose.msra.mxu0 %v507
  %570 = vmatprep.subr.bf16.mxu0 0
  %571 = vmatpush2.bf16.xpose.msra.mxu0 0
  %572 = vmatprep.subr.bf16.mxu0 0
  %573 = vmatpush2.bf16.xpose.msra.mxu0 0
  %574 = vmatprep.subr.bf16.mxu0 0
  %575 = vmatpush2.bf16.xpose.msra.mxu0 0
  %576 = vmatprep.subr.bf16.mxu0 0
  %577 = vmatpush2.bf16.xpose.msra.mxu0 0
  %578 = vmatprep.subr.bf16.mxu0 0
  %579 = vmatpush2.bf16.xpose.msra.mxu0 0
  %580 = vmatprep.subr.bf16.mxu0 0
  %581 = vmatpush2.bf16.xpose.msra.mxu0 0
  %582 = vmatprep.subr.bf16.mxu0 0
  %583 = vmatpush2.bf16.xpose.msra.mxu0 0
  %584 = vmatprep.subr.bf16.mxu0 0
  %585 = vmatpush2.bf16.xpose.msra.mxu0 0
  %586 = vmatprep.mubr.bf16.mxu0 0
  %587 = vmatmul.mubr.bf16.gmra.mxu0 %v123
  %v588 = vpop.f32.mrf.mxu0
  %v589 = vadd.f32 %v553, %v588
  %v590 = vpop.f32.mrf.mxu0
  %v591 = vpop.f32.mrf.mxu0
  %v592 = vpop.f32.mrf.mxu0
  %593 = vdwg.mxu0
  %v594 = vmul.f32 %v589, 0.25
  %vm595 = vcmask 41984
  %v596 = vsel %vm595, %v594, -inf
  %597 = vmax.xlane.f32.xlu0 %v596
  %v598 = vpop.xlane.xlu0 %597
  %v599 = vsub.f32 %v594, %v598
  %v600 = vmul.f32 %v599, 1.442695
  %v601 = vpow.pop %v600
  %v602 = vmul.f32 %v601, %v494
  %v603 = vsel %vm595, %v602, 0.0
  %604 = vadd.xlane.f32.xlu0 %v603
  %v605 = vpop.xlane.xlu0 %604
  %v606 = vmax.f32 %v605, 1e-30
  %v607 = vrcp.pop %v606
  %v608 = vmul.f32 %v602, %v607
  %v609 = vpack.c.bf16 %v608, %v608
  %611 = vrot.lane.b32.xlu0 %v500, 64
  %v612 = vpop.permute.xlu0 %611
  %vm613 = vcmask 48128
  %v615 = vsel %vm613, %v609, 0
  %vm617 = vcmask 1042432
  %v619 = vsel %vm617, %v612, 0
  %621 = vmatprep.subr.bf16.mxu0 0
  %622 = vmatpush1.bf16.msra.mxu0 0
  %623 = vmatprep.subr.bf16.mxu0 0
  %624 = vmatpush1.bf16.msra.mxu0 0
  %625 = vmatprep.subr.bf16.mxu0 0
  %626 = vmatpush1.bf16.msra.mxu0 0
  %627 = vmatprep.subr.bf16.mxu0 0
  %628 = vmatpush1.bf16.msra.mxu0 0
  %629 = vmatprep.subr.bf16.mxu0 0
  %630 = vmatpush1.bf16.msra.mxu0 0
  %631 = vmatprep.subr.bf16.mxu0 0
  %632 = vmatpush1.bf16.msra.mxu0 0
  %633 = vmatprep.subr.bf16.mxu0 0
  %634 = vmatpush1.bf16.msra.mxu0 0
  %635 = vmatprep.subr.bf16.mxu0 0
  %636 = vmatpush1.bf16.msra.mxu0 %v619
  %637 = vmatprep.subr.bf16.mxu0 0
  %638 = vmatpush2.bf16.msra.mxu0 0
  %639 = vmatprep.subr.bf16.mxu0 0
  %640 = vmatpush2.bf16.msra.mxu0 0
  %641 = vmatprep.subr.bf16.mxu0 0
  %642 = vmatpush2.bf16.msra.mxu0 0
  %643 = vmatprep.subr.bf16.mxu0 0
  %644 = vmatpush2.bf16.msra.mxu0 0
  %645 = vmatprep.subr.bf16.mxu0 0
  %646 = vmatpush2.bf16.msra.mxu0 0
  %647 = vmatprep.subr.bf16.mxu0 0
  %648 = vmatpush2.bf16.msra.mxu0 0
  %649 = vmatprep.subr.bf16.mxu0 0
  %650 = vmatpush2.bf16.msra.mxu0 0
  %651 = vmatprep.subr.bf16.mxu0 0
  %652 = vmatpush2.bf16.msra.mxu0 0
  %653 = vmatprep.mubr.bf16.mxu0 0
  %654 = vmatmul.mubr.bf16.gmra.mxu0 %v615
  %v655 = vpop.f32.mrf.mxu0
  %v656 = vadd.f32 0.0, %v655
  %v657 = vpop.f32.mrf.mxu0
  %v658 = vpop.f32.mrf.mxu0
  %v659 = vpop.f32.mrf.mxu0
  %660 = vdwg.mxu0
  %v661 = vpack.c.bf16 %v656, %v656
  %v663 = vsel %vm67, %v661, 0
  %665 = vmatprep.subr.bf16.mxu0 0
  %666 = vmatpush1.bf16.msra.mxu0 0
  %667 = vmatprep.subr.bf16.mxu0 0
  %668 = vmatpush1.bf16.msra.mxu0 0
  %669 = vmatprep.subr.bf16.mxu0 0
  %670 = vmatpush1.bf16.msra.mxu0 0
  %671 = vmatprep.subr.bf16.mxu0 0
  %672 = vmatpush1.bf16.msra.mxu0 0
  %673 = vmatprep.subr.bf16.mxu0 0
  %674 = vmatpush1.bf16.msra.mxu0 0
  %675 = vmatprep.subr.bf16.mxu0 0
  %676 = vmatpush1.bf16.msra.mxu0 0
  %677 = vmatprep.subr.bf16.mxu0 0
  %678 = vmatpush1.bf16.msra.mxu0 0
  %679 = vmatprep.subr.bf16.mxu0 0
  %680 = vmatpush1.bf16.msra.mxu0 %v502
  %681 = vmatprep.subr.bf16.mxu0 0
  %682 = vmatpush2.bf16.msra.mxu0 0
  %683 = vmatprep.subr.bf16.mxu0 0
  %684 = vmatpush2.bf16.msra.mxu0 0
  %685 = vmatprep.subr.bf16.mxu0 0
  %686 = vmatpush2.bf16.msra.mxu0 0
  %687 = vmatprep.subr.bf16.mxu0 0
  %688 = vmatpush2.bf16.msra.mxu0 0
  %689 = vmatprep.subr.bf16.mxu0 0
  %690 = vmatpush2.bf16.msra.mxu0 0
  %691 = vmatprep.subr.bf16.mxu0 0
  %692 = vmatpush2.bf16.msra.mxu0 0
  %693 = vmatprep.subr.bf16.mxu0 0
  %694 = vmatpush2.bf16.msra.mxu0 0
  %695 = vmatprep.subr.bf16.mxu0 0
  %696 = vmatpush2.bf16.msra.mxu0 0
  %697 = vmatprep.mubr.bf16.mxu0 0
  %698 = vmatmul.mubr.bf16.gmra.mxu0 %v663
  %v699 = vpop.f32.mrf.mxu0
  %v700 = vadd.f32 0.0, %v699
  %v701 = vpop.f32.mrf.mxu0
  %v702 = vpop.f32.mrf.mxu0
  %v703 = vpop.f32.mrf.mxu0
  %704 = vdwg.mxu0
  %v705 = vpack.c.bf16 %v499, %v498
  %v706 = vshrl.u32 %v501, 16
  %708 = vrot.lane.b32.xlu0 %v500, 112
  %v709 = vpop.permute.xlu0 %708
  %v711 = vsel %vm67, %v706, 0
  %v714 = vsel %vm67, %v709, 0
  %716 = vmatprep.subr.bf16.mxu0 0
  %717 = vmatpush1.bf16.xpose.msra.mxu0 0
  %718 = vmatprep.subr.bf16.mxu0 0
  %719 = vmatpush1.bf16.xpose.msra.mxu0 0
  %720 = vmatprep.subr.bf16.mxu0 0
  %721 = vmatpush1.bf16.xpose.msra.mxu0 0
  %722 = vmatprep.subr.bf16.mxu0 0
  %723 = vmatpush1.bf16.xpose.msra.mxu0 0
  %724 = vmatprep.subr.bf16.mxu0 0
  %725 = vmatpush1.bf16.xpose.msra.mxu0 0
  %726 = vmatprep.subr.bf16.mxu0 0
  %727 = vmatpush1.bf16.xpose.msra.mxu0 0
  %728 = vmatprep.subr.bf16.mxu0 0
  %729 = vmatpush1.bf16.xpose.msra.mxu0 0
  %730 = vmatprep.subr.bf16.mxu0 0
  %731 = vmatpush1.bf16.xpose.msra.mxu0 %v714
  %732 = vmatprep.subr.bf16.mxu0 0
  %733 = vmatpush2.bf16.xpose.msra.mxu0 0
  %734 = vmatprep.subr.bf16.mxu0 0
  %735 = vmatpush2.bf16.xpose.msra.mxu0 0
  %736 = vmatprep.subr.bf16.mxu0 0
  %737 = vmatpush2.bf16.xpose.msra.mxu0 0
  %738 = vmatprep.subr.bf16.mxu0 0
  %739 = vmatpush2.bf16.xpose.msra.mxu0 0
  %740 = vmatprep.subr.bf16.mxu0 0
  %741 = vmatpush2.bf16.xpose.msra.mxu0 0
  %742 = vmatprep.subr.bf16.mxu0 0
  %743 = vmatpush2.bf16.xpose.msra.mxu0 0
  %744 = vmatprep.subr.bf16.mxu0 0
  %745 = vmatpush2.bf16.xpose.msra.mxu0 0
  %746 = vmatprep.subr.bf16.mxu0 0
  %747 = vmatpush2.bf16.xpose.msra.mxu0 0
  %748 = vmatprep.mubr.bf16.mxu0 0
  %749 = vmatmul.mubr.bf16.gmra.mxu0 %v711
  %v750 = vpop.f32.mrf.mxu0
  %v751 = vadd.f32 0.0, %v750
  %v752 = vpop.f32.mrf.mxu0
  %v753 = vpop.f32.mrf.mxu0
  %v754 = vpop.f32.mrf.mxu0
  %755 = vdwg.mxu0
  %v756 = vlaneseq
  %v757 = vshrl.u32 %v756, 7
  %v758 = vsub.s32 0, %v757
  %v759 = vrot.slane %v751, %v758
  %v760 = vmul.f32 %v490, %v759
  %761 = vmatprep.subr.bf16.mxu0 0
  %762 = vmatpush1.bf16.xpose.msra.mxu0 0
  %763 = vmatprep.subr.bf16.mxu0 0
  %764 = vmatpush1.bf16.xpose.msra.mxu0 0
  %765 = vmatprep.subr.bf16.mxu0 0
  %766 = vmatpush1.bf16.xpose.msra.mxu0 0
  %767 = vmatprep.subr.bf16.mxu0 0
  %768 = vmatpush1.bf16.xpose.msra.mxu0 0
  %769 = vmatprep.subr.bf16.mxu0 0
  %770 = vmatpush1.bf16.xpose.msra.mxu0 0
  %771 = vmatprep.subr.bf16.mxu0 0
  %772 = vmatpush1.bf16.xpose.msra.mxu0 0
  %773 = vmatprep.subr.bf16.mxu0 0
  %774 = vmatpush1.bf16.xpose.msra.mxu0 0
  %775 = vmatprep.subr.bf16.mxu0 0
  %776 = vmatpush1.bf16.xpose.msra.mxu0 %v714
  %777 = vmatprep.subr.bf16.mxu0 0
  %778 = vmatpush2.bf16.xpose.msra.mxu0 0
  %779 = vmatprep.subr.bf16.mxu0 0
  %780 = vmatpush2.bf16.xpose.msra.mxu0 0
  %781 = vmatprep.subr.bf16.mxu0 0
  %782 = vmatpush2.bf16.xpose.msra.mxu0 0
  %783 = vmatprep.subr.bf16.mxu0 0
  %784 = vmatpush2.bf16.xpose.msra.mxu0 0
  %785 = vmatprep.subr.bf16.mxu0 0
  %786 = vmatpush2.bf16.xpose.msra.mxu0 0
  %787 = vmatprep.subr.bf16.mxu0 0
  %788 = vmatpush2.bf16.xpose.msra.mxu0 0
  %789 = vmatprep.subr.bf16.mxu0 0
  %790 = vmatpush2.bf16.xpose.msra.mxu0 0
  %791 = vmatprep.subr.bf16.mxu0 0
  %792 = vmatpush2.bf16.xpose.msra.mxu0 0
  %793 = vmatprep.mubr.bf16.mxu0 0
  %794 = vmatmul.mubr.bf16.gmra.mxu0 %v335
  %v795 = vpop.f32.mrf.mxu0
  %v796 = vadd.f32 %v760, %v795
  %v797 = vpop.f32.mrf.mxu0
  %v798 = vpop.f32.mrf.mxu0
  %v799 = vpop.f32.mrf.mxu0
  %800 = vdwg.mxu0
  %v801 = vmul.f32 %v796, 0.25
  %v802 = vsel %vm595, %v801, -inf
  %803 = vmax.xlane.f32.xlu0 %v802
  %v804 = vpop.xlane.xlu0 %803
  %v805 = vsub.f32 %v801, %v804
  %v806 = vmul.f32 %v805, 1.442695
  %v807 = vpow.pop %v806
  %v808 = vmul.f32 %v807, %v494
  %v809 = vsel %vm595, %v808, 0.0
  %810 = vadd.xlane.f32.xlu0 %v809
  %v811 = vpop.xlane.xlu0 %810
  %v812 = vmax.f32 %v811, 1e-30
  %v813 = vrcp.pop %v812
  %v814 = vmul.f32 %v808, %v813
  %v815 = vpack.c.bf16 %v814, %v814
  %816 = vrot.lane.b32.xlu0 %v500, 48
  %v817 = vpop.permute.xlu0 %816
  %v819 = vsel %vm613, %v815, 0
  %v822 = vsel %vm617, %v817, 0
  %824 = vmatprep.subr.bf16.mxu0 0
  %825 = vmatpush1.bf16.msra.mxu0 0
  %826 = vmatprep.subr.bf16.mxu0 0
  %827 = vmatpush1.bf16.msra.mxu0 0
  %828 = vmatprep.subr.bf16.mxu0 0
  %829 = vmatpush1.bf16.msra.mxu0 0
  %830 = vmatprep.subr.bf16.mxu0 0
  %831 = vmatpush1.bf16.msra.mxu0 0
  %832 = vmatprep.subr.bf16.mxu0 0
  %833 = vmatpush1.bf16.msra.mxu0 0
  %834 = vmatprep.subr.bf16.mxu0 0
  %835 = vmatpush1.bf16.msra.mxu0 0
  %836 = vmatprep.subr.bf16.mxu0 0
  %837 = vmatpush1.bf16.msra.mxu0 0
  %838 = vmatprep.subr.bf16.mxu0 0
  %839 = vmatpush1.bf16.msra.mxu0 %v822
  %840 = vmatprep.subr.bf16.mxu0 0
  %841 = vmatpush2.bf16.msra.mxu0 0
  %842 = vmatprep.subr.bf16.mxu0 0
  %843 = vmatpush2.bf16.msra.mxu0 0
  %844 = vmatprep.subr.bf16.mxu0 0
  %845 = vmatpush2.bf16.msra.mxu0 0
  %846 = vmatprep.subr.bf16.mxu0 0
  %847 = vmatpush2.bf16.msra.mxu0 0
  %848 = vmatprep.subr.bf16.mxu0 0
  %849 = vmatpush2.bf16.msra.mxu0 0
  %850 = vmatprep.subr.bf16.mxu0 0
  %851 = vmatpush2.bf16.msra.mxu0 0
  %852 = vmatprep.subr.bf16.mxu0 0
  %853 = vmatpush2.bf16.msra.mxu0 0
  %854 = vmatprep.subr.bf16.mxu0 0
  %855 = vmatpush2.bf16.msra.mxu0 0
  %856 = vmatprep.mubr.bf16.mxu0 0
  %857 = vmatmul.mubr.bf16.gmra.mxu0 %v819
  %v858 = vpop.f32.mrf.mxu0
  %v859 = vadd.f32 0.0, %v858
  %v860 = vpop.f32.mrf.mxu0
  %v861 = vpop.f32.mrf.mxu0
  %v862 = vpop.f32.mrf.mxu0
  %863 = vdwg.mxu0
  %v864 = vpack.c.bf16 %v859, %v859
  %v866 = vsel %vm67, %v864, 0
  %868 = vmatprep.subr.bf16.mxu0 0
  %869 = vmatpush1.bf16.msra.mxu0 0
  %870 = vmatprep.subr.bf16.mxu0 0
  %871 = vmatpush1.bf16.msra.mxu0 0
  %872 = vmatprep.subr.bf16.mxu0 0
  %873 = vmatpush1.bf16.msra.mxu0 0
  %874 = vmatprep.subr.bf16.mxu0 0
  %875 = vmatpush1.bf16.msra.mxu0 0
  %876 = vmatprep.subr.bf16.mxu0 0
  %877 = vmatpush1.bf16.msra.mxu0 0
  %878 = vmatprep.subr.bf16.mxu0 0
  %879 = vmatpush1.bf16.msra.mxu0 0
  %880 = vmatprep.subr.bf16.mxu0 0
  %881 = vmatpush1.bf16.msra.mxu0 0
  %882 = vmatprep.subr.bf16.mxu0 0
  %883 = vmatpush1.bf16.msra.mxu0 %v705
  %884 = vmatprep.subr.bf16.mxu0 0
  %885 = vmatpush2.bf16.msra.mxu0 0
  %886 = vmatprep.subr.bf16.mxu0 0
  %887 = vmatpush2.bf16.msra.mxu0 0
  %888 = vmatprep.subr.bf16.mxu0 0
  %889 = vmatpush2.bf16.msra.mxu0 0
  %890 = vmatprep.subr.bf16.mxu0 0
  %891 = vmatpush2.bf16.msra.mxu0 0
  %892 = vmatprep.subr.bf16.mxu0 0
  %893 = vmatpush2.bf16.msra.mxu0 0
  %894 = vmatprep.subr.bf16.mxu0 0
  %895 = vmatpush2.bf16.msra.mxu0 0
  %896 = vmatprep.subr.bf16.mxu0 0
  %897 = vmatpush2.bf16.msra.mxu0 0
  %898 = vmatprep.subr.bf16.mxu0 0
  %899 = vmatpush2.bf16.msra.mxu0 0
  %900 = vmatprep.mubr.bf16.mxu0 0
  %901 = vmatmul.mubr.bf16.gmra.mxu0 %v866
  %v902 = vpop.f32.mrf.mxu0
  %v903 = vadd.f32 0.0, %v902
  %v904 = vpop.f32.mrf.mxu0
  %v905 = vpop.f32.mrf.mxu0
  %v906 = vpop.f32.mrf.mxu0
  %907 = vdwg.mxu0
  %909 = vrot.lane.b32.xlu0 %v903, 16
  %v910 = vpop.permute.xlu0 %909
  %v912 = vsel %vm67, %v700, %v910
  %v913 = vadd.f32 %v488, %v912
  %v914 = vmul.f32 %v913, 0.5
  %v915 = vmax.f32 %v914, 0.0
  %vm916 = vcmask 254976
  %v917 = vsel %vm916, %v915, 0.0
  %918 = vadd.xlane.f32.xlu0 %v917
  %v919 = vpop.xlane.xlu0 %918
  %v920 = vrcp.pop 32.0
  %v921 = vmul.f32 %v919, %v920
  %v922 = vsub.f32 %v915, %v921
  %v923 = vmul.f32 %v922, %v922
  %v924 = vsel %vm916, %v923, 0.0
  %925 = vadd.xlane.f32.xlu0 %v924
  %v926 = vpop.xlane.xlu0 %925
  %v927 = vmul.f32 %v926, %v920
  %v928 = vadd.f32 %v927, 1e-05
  %v929 = vrsqrt.pop %v928
  %v930 = vmul.f32 %v922, %v929
  %v931 = vld [vmem:[%s12] sm:$0x1]
  %v933 = vlaneseq
  %v934 = vshrl.u32 %v933, 7
  %v935 = vsub.s32 0, %v934
  %v936 = vrot.slane %v931, %v935
  %v938 = vmul.f32 %v930, %v936
  %v939 = vld [vmem:[%s13] sm:$0x1]
  %v941 = vlaneseq
  %v942 = vshrl.u32 %v941, 7
  %v943 = vsub.s32 0, %v942
  %v944 = vrot.slane %v939, %v943
  %v946 = vadd.f32 %v938, %v944
  %947 = vst.msk [vmem:[%s14] sm:$0x3] %vm916, %v946
  // Predicated region
  $region58: #{model_forward.46} parent=0 // pred_check
    _
  $region59: #{model_forward.46} parent=0 // pred_check_branch
    %949 = sbr.rel (0) target = $region61
  $region60: #{model_forward.46} parent=0 // pred_region
    _
  $region61: #{model_forward.46} parent=0 // pred_fallthru
    _
  // Predicated region
  $region62: #{model_forward.46} parent=0 // pred_check
    _
  $region63: #{model_forward.46} parent=0 // pred_check_branch
    %951 = sbr.rel (0) target = $region65
  $region64: #{model_forward.46} parent=0 // pred_region
    _
  $region65: #{model_forward.46} parent=0 // pred_fallthru
    _

</llo_original>
